<compile_context>
chip_gen: v5e
topology: v5e:2x2
jax: 0.10.0
libtpu: 0.0.40
codegen_flags: <defaults>
</compile_context>

<pallas_src>
import functools
import math

import jax
import jax.numpy as jnp
from jax import lax
from jax.experimental import pallas as pl
from jax.experimental.pallas import tpu as pltpu


# ----------------------------------------------------------------------------
# tiling helper
# ----------------------------------------------------------------------------

def _pick_tile(dim, target, align):
    """Largest tile <= target that divides `dim` and is a multiple of `align`
    (full dim when dim <= target or no aligned divisor exists)."""
    if dim <= target:
        return dim
    t = (target // align) * align
    while t >= align:
        if dim % t == 0:
            return t
        t -= align
    return dim


_VMEM_LIMIT = 64 * 1024 * 1024  # <= physical VMEM on v5e/v6e/v7x


# ----------------------------------------------------------------------------
# Pallas kernels
# ----------------------------------------------------------------------------

def ln_shift_kernel(x_ref, g_ref, b_ref, h_ref, xxx_ref):
    """Fused LayerNorm + token shift for one full (T, D) sequence.

    h   = LN(x)
    xxx = shift_down_by_1(h) - h    (zero row at t = 0)
    """
    x = x_ref[0]                                      # (T, D) f32
    mu = jnp.mean(x, axis=-1, keepdims=True)
    var = jnp.mean((x - mu) ** 2, axis=-1, keepdims=True)
    h = (x - mu) * lax.rsqrt(var + 1e-5) * g_ref[...] + b_ref[...]
    h_ref[0] = h.astype(h_ref.dtype)
    shifted = jnp.concatenate(
        [jnp.zeros((1, h.shape[1]), h.dtype), h[:-1, :]], axis=0)
    xxx_ref[0] = (shifted - h).astype(xxx_ref.dtype)


def layernorm_kernel(x_ref, g_ref, b_ref, o_ref):
    x = x_ref[...]                                    # (tm, D) f32
    mu = jnp.mean(x, axis=-1, keepdims=True)
    var = jnp.mean((x - mu) ** 2, axis=-1, keepdims=True)
    o_ref[...] = ((x - mu) * lax.rsqrt(var + 1e-5) * g_ref[...]
                  + b_ref[...]).astype(o_ref.dtype)


def qkv_kernel(h_ref, xxx_ref, la_ref, lb_ref, lam_ref, w_ref,
               cos_ref, sin_ref, o_ref, mix_sc, *, head_dim, scale):
    """Fused LoRA token-shift mixing + q/k/v projection + RoPE.

    grid = (row tiles, p in {q,k,v}, output-dim tiles).  The mixed input
    (h + xxx*(lambda_p + tanh(h@A_p)@B_p)) is computed once per (row, p)
    and cached in VMEM scratch; each j step multiplies it with one (D, tn)
    weight slab.  RoPE (and the 1/sqrt(hd) scale on q) is applied to q/k here
    so the attention inner loop stays pure MXU.
    """
    p = pl.program_id(1)
    j = pl.program_id(2)

    @pl.when(j == 0)
    def _():
        h = h_ref[...].astype(jnp.float32)
        xxx = xxx_ref[...].astype(jnp.float32)
        t = jnp.tanh(jnp.dot(h_ref[...], la_ref[0],
                             preferred_element_type=jnp.float32))
        lora = jnp.dot(t.astype(jnp.bfloat16), lb_ref[0],
                       preferred_element_type=jnp.float32) + lam_ref[0]
        mix_sc[...] = (h + xxx * lora).astype(jnp.bfloat16)

    y = jnp.dot(mix_sc[...], w_ref[0], preferred_element_type=jnp.float32)

    tn = y.shape[-1]
    half = head_dim // 2
    reps = tn // head_dim

    @pl.when(p < 2)                                   # q and k: apply RoPE
    def _():
        cos_t = cos_ref[...]                          # (tm, hd), [cos | cos]
        sin_t = sin_ref[...]                          # (tm, hd), [-sin | sin]
        if reps > 1:
            cos_t = jnp.concatenate([cos_t] * reps, axis=-1)
            sin_t = jnp.concatenate([sin_t] * reps, axis=-1)
        pieces = []
        for g in range(reps):                         # per-head rotate-half
            base = g * head_dim
            pieces.append(y[:, base + half:base + head_dim])
            pieces.append(y[:, base:base + half])
        rot = jnp.concatenate(pieces, axis=-1)
        roped = y * cos_t + rot * sin_t
        sc = jnp.where(p == 0, scale, 1.0)            # fold 1/sqrt(hd) into q
        o_ref[0] = (roped * sc).astype(o_ref.dtype)

    @pl.when(p == 2)                                  # v: no RoPE
    def _():
        o_ref[0] = y.astype(o_ref.dtype)


def flash_attn_kernel(q_ref, k_ref, v_ref, o_ref, m_sc, l_sc, acc_sc,
                      *, tq, tk, q_axis, k_axis):
    """Flash-style causal attention (q already RoPE'd and scaled)."""
    qi = pl.program_id(q_axis)
    ki = pl.program_id(k_axis)

    @pl.when(ki == 0)
    def _():
        m_sc[...] = jnp.full(m_sc.shape, -jnp.inf, dtype=m_sc.dtype)
        l_sc[...] = jnp.zeros(l_sc.shape, dtype=l_sc.dtype)
        acc_sc[...] = jnp.zeros(acc_sc.shape, dtype=acc_sc.dtype)

    @pl.when(ki <= qi)                 # skip fully-masked causal kv tiles
    def _():
        s = lax.dot_general(q_ref[0], k_ref[0], (((1,), (1,)), ((), ())),
                            preferred_element_type=jnp.float32)
        row = qi * tq + lax.broadcasted_iota(jnp.int32, s.shape, 0)
        col = ki * tk + lax.broadcasted_iota(jnp.int32, s.shape, 1)
        s = jnp.where(col <= row, s, -jnp.inf)

        m_prev = m_sc[...]
        m_new = jnp.maximum(m_prev, jnp.max(s, axis=-1, keepdims=True))
        alpha = jnp.exp(m_prev - m_new)
        p = jnp.exp(s - m_new)
        l_sc[...] = alpha * l_sc[...] + jnp.sum(p, axis=-1, keepdims=True)
        acc_sc[...] = alpha * acc_sc[...] + jnp.dot(
            p.astype(jnp.bfloat16), v_ref[0],
            preferred_element_type=jnp.float32)
        m_sc[...] = m_new

    @pl.when(ki == pl.num_programs(k_axis) - 1)
    def _():
        o_ref[0] = (acc_sc[...] / l_sc[...]).astype(o_ref.dtype)


def proj_residual_kernel(a_ref, w_ref, b_ref, res_ref, o_ref):
    """Attention output projection with fused bias + residual add."""
    y = jnp.dot(a_ref[...], w_ref[...], preferred_element_type=jnp.float32)
    o_ref[...] = res_ref[...] + y + b_ref[...]


def cmix_kernel(h_ref, xxx_ref, rw_ref, kw_ref, wr_ref, wk_ref, wv_ref,
                res_ref, o_ref, r_sc, acc_sc, *, slab_r, tr):
    """RWKV channel mixing (hidden dim tiled) with fused residual add.

    When slab_r, the r projection is computed one (tm, tr) output slab per
    hidden tile so Wr is never fully VMEM-resident.
    """
    j = pl.program_id(1)
    h = h_ref[...].astype(jnp.float32)
    xxx = xxx_ref[...].astype(jnp.float32)

    @pl.when(j == 0)
    def _():
        acc_sc[...] = jnp.zeros(acc_sc.shape, dtype=acc_sc.dtype)

    mixed_r = (h + xxx * rw_ref[...]).astype(jnp.bfloat16)
    if slab_r:
        off = pl.multiple_of(j * tr, tr)
        r_sc[:, pl.ds(off, tr)] = jnp.dot(
            mixed_r, wr_ref[...], preferred_element_type=jnp.float32)
    else:
        @pl.when(j == 0)
        def _():
            r_sc[...] = jnp.dot(mixed_r, wr_ref[...],
                                preferred_element_type=jnp.float32)

    mixed_k = (h + xxx * kw_ref[...]).astype(jnp.bfloat16)
    kk = jnp.dot(mixed_k, wk_ref[...], preferred_element_type=jnp.float32)
    kk = jnp.maximum(kk, 0.0)
    kk = (kk * kk).astype(jnp.bfloat16)
    acc_sc[...] += jnp.dot(kk, wv_ref[...], preferred_element_type=jnp.float32)

    @pl.when(j == pl.num_programs(1) - 1)
    def _():
        o_ref[...] = res_ref[...] + jax.nn.sigmoid(r_sc[...]) * acc_sc[...]


def lmhead_kernel(x_ref, g_ref, b_ref, wte_ref, bias_ref, o_ref, h_sc):
    """Fused final LayerNorm (computed once per row tile) + tied lm head."""
    @pl.when(pl.program_id(1) == 0)
    def _():
        x = x_ref[...]
        mu = jnp.mean(x, axis=-1, keepdims=True)
        var = jnp.mean((x - mu) ** 2, axis=-1, keepdims=True)
        h_sc[...] = ((x - mu) * lax.rsqrt(var + 1e-5) * g_ref[...]
                     + b_ref[...]).astype(jnp.bfloat16)

    logits = lax.dot_general(h_sc[...], wte_ref[...], (((1,), (1,)), ((), ())),
                             preferred_element_type=jnp.float32)
    o_ref[...] = logits + bias_ref[...]


# ----------------------------------------------------------------------------
# Wrappers (pallas_call with grids / BlockSpecs)
# ----------------------------------------------------------------------------

def ln_token_shift(x3d, g, b, *, fuse_budget=4 * 1024 * 1024):
    """Returns (h, xxx) in bf16, both shaped (B, T, D)."""
    B, T, D = x3d.shape
    if T * D * 4 <= fuse_budget:
        h, xxx = pl.pallas_call(
            ln_shift_kernel,
            out_shape=(jax.ShapeDtypeStruct((B, T, D), jnp.bfloat16),
                       jax.ShapeDtypeStruct((B, T, D), jnp.bfloat16)),
            grid=(B,),
            in_specs=[pl.BlockSpec((1, T, D), lambda bi: (bi, 0, 0)),
                      pl.BlockSpec((1, D), lambda bi: (0, 0)),
                      pl.BlockSpec((1, D), lambda bi: (0, 0))],
            out_specs=(pl.BlockSpec((1, T, D), lambda bi: (bi, 0, 0)),
                       pl.BlockSpec((1, T, D), lambda bi: (bi, 0, 0))),
            compiler_params=pltpu.CompilerParams(
                dimension_semantics=("parallel",)),
        )(x3d, g, b)
        return h, xxx

    # TODO(synk): halo-tiled fused LN+shift for very long sequences; fall back
    # to a tiled LN kernel + XLA shift when one (T, D) block won't fit VMEM.
    M = B * T
    tm = _pick_tile(M, 512, 8)
    h2d = pl.pallas_call(
        layernorm_kernel,
        out_shape=jax.ShapeDtypeStruct((M, D), jnp.bfloat16),
        grid=(M // tm,),
        in_specs=[pl.BlockSpec((tm, D), lambda i: (i, 0)),
                  pl.BlockSpec((1, D), lambda i: (0, 0)),
                  pl.BlockSpec((1, D), lambda i: (0, 0))],
        out_specs=pl.BlockSpec((tm, D), lambda i: (i, 0)),
        compiler_params=pltpu.CompilerParams(
            dimension_semantics=("parallel",)),
    )(x3d.reshape(M, D), g, b)
    h = h2d.reshape(B, T, D)
    shifted = jnp.pad(h, ((0, 0), (1, 0), (0, 0)))[:, :-1, :]
    return h, (shifted - h).astype(h.dtype)


def fused_qkv(h2d, xxx2d, la, lb, lam, w_qkv, cos_bt, sin_bt, head_dim,
              *, tm_target=256, tn_target=512):
    """Returns (3, M, D) bf16: [q | k | v] with RoPE/scale already applied."""
    M, D = h2d.shape
    r = la.shape[-1]
    tm = _pick_tile(M, tm_target, 8)
    tn = _pick_tile(D, tn_target, 128)
    if tn % head_dim != 0:
        tn = D
    scale = 1.0 / math.sqrt(head_dim)
    kernel = functools.partial(qkv_kernel, head_dim=head_dim, scale=scale)
    row = lambda i, p, j: (i, 0)
    return pl.pallas_call(
        kernel,
        out_shape=jax.ShapeDtypeStruct((3, M, D), jnp.bfloat16),
        grid=(M // tm, 3, D // tn),
        in_specs=[pl.BlockSpec((tm, D), row),                        # h
                  pl.BlockSpec((tm, D), row),                        # xxx
                  pl.BlockSpec((1, D, r), lambda i, p, j: (p, 0, 0)),  # LoRA A
                  pl.BlockSpec((1, r, D), lambda i, p, j: (p, 0, 0)),  # LoRA B
                  pl.BlockSpec((1, 1, D), lambda i, p, j: (p, 0, 0)),  # lambda
                  pl.BlockSpec((1, D, tn), lambda i, p, j: (p, 0, j)),  # W slab
                  pl.BlockSpec((tm, head_dim), row),                 # rope cos
                  pl.BlockSpec((tm, head_dim), row)],                # rope sin
        out_specs=pl.BlockSpec((1, tm, tn), lambda i, p, j: (p, i, j)),
        scratch_shapes=[pltpu.VMEM((tm, D), jnp.bfloat16)],
        compiler_params=pltpu.CompilerParams(
            dimension_semantics=("parallel", "parallel", "arbitrary"),
            vmem_limit_bytes=_VMEM_LIMIT),
    )(h2d, xxx2d, la, lb, lam, w_qkv, cos_bt, sin_bt)


def attention(q2d, k2d, v2d, B, T, n_heads, head_dim, *, tq_target=256):
    """q2d/k2d/v2d: (B*T, D) bf16 (q/k pre-RoPE'd, q pre-scaled)."""
    D = n_heads * head_dim
    tq = _pick_tile(T, tq_target, 8)
    tk = tq
    nq, nk = T // tq, T // tk
    scratch = [pltpu.VMEM((tq, 1), jnp.float32),
               pltpu.VMEM((tq, 1), jnp.float32),
               pltpu.VMEM((tq, head_dim), jnp.float32)]

    if head_dim % 128 == 0 or n_heads == 1:
        # head-indexed BlockSpecs on the (B, T, H*hd) layout: no HBM transposes
        q = q2d.reshape(B, T, D)
        k = k2d.reshape(B, T, D)
        v = v2d.reshape(B, T, D)
        kernel = functools.partial(flash_attn_kernel, tq=tq, tk=tk,
                                   q_axis=2, k_axis=3)
        q_spec = pl.BlockSpec((1, tq, head_dim), lambda b, h, i, j: (b, i, h))
        kv_spec = pl.BlockSpec((1, tk, head_dim),
                               lambda b, h, i, j: (b, jnp.minimum(j, i), h))
        o = pl.pallas_call(
            kernel,
            out_shape=jax.ShapeDtypeStruct((B, T, D), jnp.bfloat16),
            grid=(B, n_heads, nq, nk),
            in_specs=[q_spec, kv_spec, kv_spec],
            out_specs=pl.BlockSpec((1, tq, head_dim),
                                   lambda b, h, i, j: (b, i, h)),
            scratch_shapes=scratch,
            compiler_params=pltpu.CompilerParams(
                dimension_semantics=("parallel", "parallel", "parallel",
                                     "arbitrary")),
        )(q, k, v)
        return o.reshape(B * T, D)

    # fallback for small head_dim: (B*H, T, hd) layout (requires transposes)
    def to_heads(t2d):
        return (t2d.reshape(B, T, n_heads, head_dim)
                .transpose(0, 2, 1, 3).reshape(B * n_heads, T, head_dim))

    qh, kh, vh = to_heads(q2d), to_heads(k2d), to_heads(v2d)
    kernel = functools.partial(flash_attn_kernel, tq=tq, tk=tk,
                               q_axis=1, k_axis=2)
    q_spec = pl.BlockSpec((1, tq, head_dim), lambda bh, i, j: (bh, i, 0))
    kv_spec = pl.BlockSpec((1, tk, head_dim),
                           lambda bh, i, j: (bh, jnp.minimum(j, i), 0))
    o = pl.pallas_call(
        kernel,
        out_shape=jax.ShapeDtypeStruct((B * n_heads, T, head_dim),
                                       jnp.bfloat16),
        grid=(B * n_heads, nq, nk),
        in_specs=[q_spec, kv_spec, kv_spec],
        out_specs=pl.BlockSpec((1, tq, head_dim), lambda bh, i, j: (bh, i, 0)),
        scratch_shapes=scratch,
        compiler_params=pltpu.CompilerParams(
            dimension_semantics=("parallel", "parallel", "arbitrary")),
    )(qh, kh, vh)
    return (o.reshape(B, n_heads, T, head_dim).transpose(0, 2, 1, 3)
            .reshape(B * T, D))


def proj_residual(a2d, w, b, res, *, tm_target=512, tn_target=512):
    M, D = a2d.shape
    N = w.shape[1]
    tm = _pick_tile(M, tm_target, 8)
    tn = _pick_tile(N, tn_target, 128)
    return pl.pallas_call(
        proj_residual_kernel,
        out_shape=jax.ShapeDtypeStruct((M, N), jnp.float32),
        grid=(M // tm, N // tn),
        in_specs=[pl.BlockSpec((tm, D), lambda i, j: (i, 0)),
                  pl.BlockSpec((D, tn), lambda i, j: (0, j)),
                  pl.BlockSpec((1, tn), lambda i, j: (0, j)),
                  pl.BlockSpec((tm, tn), lambda i, j: (i, j))],
        out_specs=pl.BlockSpec((tm, tn), lambda i, j: (i, j)),
        compiler_params=pltpu.CompilerParams(
            dimension_semantics=("parallel", "parallel"),
            vmem_limit_bytes=_VMEM_LIMIT),
    )(a2d, w, b, res)


def channel_mix(h2d, xxx2d, rw, kw, wr, wk_c, wv_c, res,
                *, tm_target=256, th_target=1024):
    M, D = h2d.shape
    HID = wk_c.shape[1]
    tm = _pick_tile(M, tm_target, 8)
    th = _pick_tile(HID, th_target, 128)
    nj = HID // th
    # compute the r projection one output slab per hidden tile when possible
    slab_r = (nj > 1 and D % nj == 0
              and ((D // nj) % 128 == 0 or D // nj == D))
    tr = D // nj if slab_r else D
    kernel = functools.partial(cmix_kernel, slab_r=slab_r, tr=tr)
    row = lambda i, j: (i, 0)
    const = lambda i, j: (0, 0)
    wr_spec = (pl.BlockSpec((D, tr), lambda i, j: (0, j)) if slab_r
               else pl.BlockSpec((D, D), const))
    return pl.pallas_call(
        kernel,
        out_shape=jax.ShapeDtypeStruct((M, D), jnp.float32),
        grid=(M // tm, nj),
        in_specs=[pl.BlockSpec((tm, D), row),                  # h
                  pl.BlockSpec((tm, D), row),                  # xxx
                  pl.BlockSpec((1, D), const),                 # r_weight
                  pl.BlockSpec((1, D), const),                 # k_weight
                  wr_spec,                                     # Wr
                  pl.BlockSpec((D, th), lambda i, j: (0, j)),  # Wk (tiled)
                  pl.BlockSpec((th, D), lambda i, j: (j, 0)),  # Wv (tiled)
                  pl.BlockSpec((tm, D), row)],                 # residual
        out_specs=pl.BlockSpec((tm, D), row),
        scratch_shapes=[pltpu.VMEM((tm, D), jnp.float32),
                        pltpu.VMEM((tm, D), jnp.float32)],
        compiler_params=pltpu.CompilerParams(
            dimension_semantics=("parallel", "arbitrary"),
            vmem_limit_bytes=_VMEM_LIMIT),
    )(h2d, xxx2d, rw, kw, wr, wk_c, wv_c, res)


def lm_head(x2d, g, b, wte, bias, *, tm_target=256, tv_target=1024):
    M, D = x2d.shape
    V = wte.shape[0]
    tm = _pick_tile(M, tm_target, 8)
    tv = _pick_tile(V, tv_target, 128)
    return pl.pallas_call(
        lmhead_kernel,
        out_shape=jax.ShapeDtypeStruct((M, V), jnp.float32),
        grid=(M // tm, V // tv),
        in_specs=[pl.BlockSpec((tm, D), lambda i, j: (i, 0)),
                  pl.BlockSpec((1, D), lambda i, j: (0, 0)),
                  pl.BlockSpec((1, D), lambda i, j: (0, 0)),
                  pl.BlockSpec((tv, D), lambda i, j: (j, 0)),   # tied wte
                  pl.BlockSpec((1, tv), lambda i, j: (0, j))],
        out_specs=pl.BlockSpec((tm, tv), lambda i, j: (i, j)),
        scratch_shapes=[pltpu.VMEM((tm, D), jnp.bfloat16)],
        compiler_params=pltpu.CompilerParams(
            dimension_semantics=("parallel", "arbitrary"),
            vmem_limit_bytes=_VMEM_LIMIT),
    )(x2d, g, b, wte, bias)


# ----------------------------------------------------------------------------
# Model forward
# ----------------------------------------------------------------------------

def attn_forward(x, h, xxx, p, cfg, cos_bt, sin_bt):
    B, T, D = x.shape
    H, hd = cfg["n_heads"], cfg["head_dim"]
    M = B * T
    qkv = fused_qkv(h.reshape(M, D), xxx.reshape(M, D),
                    p["lora_a"], p["lora_b"], p["lambd"], p["w_qkv"],
                    cos_bt, sin_bt, hd)
    o2d = attention(qkv[0], qkv[1], qkv[2], B, T, H, hd)
    # output projection + bias + residual add, fused
    return proj_residual(o2d, p["wo"], p["bo"],
                         x.reshape(M, D)).reshape(B, T, D)


def block_forward(x, p, cfg, cos_bt, sin_bt):
    B, T, D = x.shape
    h, xxx = ln_token_shift(x, p["ln1_g"], p["ln1_b"])
    x = attn_forward(x, h, xxx, p, cfg, cos_bt, sin_bt)

    h, xxx = ln_token_shift(x, p["ln2_g"], p["ln2_b"])
    x = channel_mix(h.reshape(B * T, D), xxx.reshape(B * T, D),
                    p["r_weight"], p["k_weight"],
                    p["wr"], p["wk_c"], p["wv_c"],
                    x.reshape(B * T, D)).reshape(B, T, D)
    return x


def llm_forward(tokens, params, cfg):
    B, T = tokens.shape
    # TODO(synk): embedding gather stays in XLA (no clean tiny Pallas gather).
    x = params["wte"][tokens].astype(jnp.float32)
    cos_bt = jnp.tile(cfg["rope_c"][:T], (B, 1))      # (B*T, head_dim)
    sin_bt = jnp.tile(cfg["rope_s"][:T], (B, 1))
    for p in params["blocks"]:
        x = block_forward(x, p, cfg, cos_bt, sin_bt)
    D = x.shape[-1]
    logits = lm_head(x.reshape(B * T, D), params["ln_g"], params["ln_b"],
                     params["wte"], params["lm_bias"])
    return logits.reshape(B, T, -1)


# ----------------------------------------------------------------------------
# Deterministic parameter construction
# ----------------------------------------------------------------------------

def make_params(key, vocab_size, dim, n_heads, n_blocks, max_length,
                lora_dim=64):
    head_dim = dim // n_heads
    keys = iter(jax.random.split(key, 8 + 16 * n_blocks))

    def nrm(shape, std=0.02, dtype=jnp.bfloat16):
        return (std * jax.random.normal(next(keys), shape)).astype(dtype)

    params = {
        "wte": nrm((vocab_size, dim)),                 # bf16, tied lm head
        "ln_g": jnp.ones((1, dim), jnp.float32),
        "ln_b": jnp.zeros((1, dim), jnp.float32),
        "lm_bias": jnp.zeros((1, vocab_size), jnp.float32),
        "blocks": [],
    }

    idx = jnp.arange(dim, dtype=jnp.float32)
    for blk_id in range(n_blocks):
        r1 = 1.0 - blk_id / n_blocks
        decay = (1.0 - (idx / dim) ** r1).reshape(1, dim).astype(jnp.float32)
        p = {
            "ln1_g": jnp.ones((1, dim), jnp.float32),
            "ln1_b": jnp.zeros((1, dim), jnp.float32),
            "ln2_g": jnp.ones((1, dim), jnp.float32),
            "ln2_b": jnp.zeros((1, dim), jnp.float32),
            # q/k/v projections stacked (3, in, out), bf16 for the MXU
            "w_qkv": nrm((3, dim, dim)),
            "wo": nrm((dim, dim)),
            "bo": jnp.zeros((1, dim), jnp.float32),
            # LoRA stacked across q/k/v
            "lora_a": nrm((3, dim, lora_dim), 0.001),
            "lora_b": nrm((3, lora_dim, dim), 0.001),
            "lambd": jax.random.normal(next(keys),
                                       (3, 1, dim)).astype(jnp.float32),
            # channel mixing
            "r_weight": decay, "k_weight": decay,
            "wr": nrm((dim, dim)),
            "wk_c": nrm((dim, 4 * dim)),
            "wv_c": nrm((4 * dim, dim)),
        }
        params["blocks"].append(p)

    # RoPE tables over one head: rope(x) = x*C + rotate_half(x)*S
    pos = jnp.arange(max_length, dtype=jnp.float32)[:, None]
    theta = 1.0 / (10000.0 ** (jnp.arange(0, head_dim, 2, dtype=jnp.float32)
                               / head_dim))[None, :]
    pt = pos * theta
    cos, sin = jnp.cos(pt), jnp.sin(pt)
    cfg = {
        "n_heads": n_heads,
        "head_dim": head_dim,
        "rope_c": jnp.concatenate([cos, cos], axis=-1).astype(jnp.float32),
        "rope_s": jnp.concatenate([-sin, sin], axis=-1).astype(jnp.float32),
    }
    return params, cfg


# ----------------------------------------------------------------------------
# Main
# ----------------------------------------------------------------------------

if __name__ == "__main__":
    # small, module-consistent shapes
    vocab_size, dim, max_length, n_heads, n_blocks = 64, 32, 16, 4, 2
    B, T = 2, 8  # dropout_p = 0 so attention is deterministic

    key = jax.random.PRNGKey(0)
    pkey, tkey = jax.random.split(key)
    params, cfg = make_params(pkey, vocab_size, dim, n_heads, n_blocks,
                              max_length)
    tokens = jax.random.randint(tkey, (B, T), 0, vocab_size, dtype=jnp.int32)

    fwd = jax.jit(lambda t: llm_forward(t, params, cfg))
    logits = jax.block_until_ready(fwd(tokens))
    assert logits.shape == (B, T, vocab_size)
    assert bool(jnp.all(jnp.isfinite(logits)))
    print("KERNEL_OK")
</pallas_src>

<mosaic_0001>
module attributes {stable_mosaic.version = 11 : i64} {
  func.func @qkv_kernel(%arg0: i32, %arg1: i32, %arg2: i32, %arg3: memref<16x32xbf16, #tpu.memory_space<vmem>>, %arg4: memref<16x32xbf16, #tpu.memory_space<vmem>>, %arg5: memref<1x32x64xbf16, #tpu.memory_space<vmem>>, %arg6: memref<1x64x32xbf16, #tpu.memory_space<vmem>>, %arg7: memref<1x1x32xf32, #tpu.memory_space<vmem>>, %arg8: memref<1x32x32xbf16, #tpu.memory_space<vmem>>, %arg9: memref<16x8xf32, #tpu.memory_space<vmem>>, %arg10: memref<16x8xf32, #tpu.memory_space<vmem>>, %arg11: memref<1x16x32xbf16, #tpu.memory_space<vmem>>, %arg12: memref<16x32xbf16, #tpu.memory_space<vmem>>) attributes {dimension_semantics = [#tpu.dimension_semantics<parallel>, #tpu.dimension_semantics<parallel>, #tpu.dimension_semantics<arbitrary>], iteration_bounds = array<i64: 1, 3, 1>, scalar_prefetch = 0 : i64, scratch_operands = 1 : i64, tpu.core_type = #tpu.core_type<tc>, window_params = [{transform_indices = @transform_0, window_bounds = array<i64: 16, 32>}, {transform_indices = @transform_1, window_bounds = array<i64: 16, 32>}, {transform_indices = @transform_2, window_bounds = array<i64: 1, 32, 64>}, {transform_indices = @transform_3, window_bounds = array<i64: 1, 64, 32>}, {transform_indices = @transform_4, window_bounds = array<i64: 1, 1, 32>}, {transform_indices = @transform_5, window_bounds = array<i64: 1, 32, 32>}, {transform_indices = @transform_6, window_bounds = array<i64: 16, 8>}, {transform_indices = @transform_7, window_bounds = array<i64: 16, 8>}, {transform_indices = @transform_8, window_bounds = array<i64: 1, 16, 32>}]} {
    %c0_i32 = arith.constant 0 : i32
    %0 = arith.cmpi eq, %arg2, %c0_i32 : i32
    %1 = arith.extui %0 : i1 to i32
    %c0_i32_0 = arith.constant 0 : i32
    %2 = arith.cmpi ne, %1, %c0_i32_0 : i32
    scf.if %2 {
      %c0_8 = arith.constant 0 : index
      %c0_9 = arith.constant 0 : index
      %13 = vector.load %arg3[%c0_8, %c0_9] : memref<16x32xbf16, #tpu.memory_space<vmem>>, vector<16x32xbf16>
      %14 = arith.extf %13 : vector<16x32xbf16> to vector<16x32xf32>
      %c0_10 = arith.constant 0 : index
      %c0_11 = arith.constant 0 : index
      %15 = vector.load %arg4[%c0_10, %c0_11] : memref<16x32xbf16, #tpu.memory_space<vmem>>, vector<16x32xbf16>
      %16 = arith.extf %15 : vector<16x32xbf16> to vector<16x32xf32>
      %c0_12 = arith.constant 0 : index
      %c0_13 = arith.constant 0 : index
      %17 = vector.load %arg3[%c0_12, %c0_13] : memref<16x32xbf16, #tpu.memory_space<vmem>>, vector<16x32xbf16>
      %c0_14 = arith.constant 0 : index
      %c0_15 = arith.constant 0 : index
      %c0_16 = arith.constant 0 : index
      %18 = vector.load %arg5[%c0_14, %c0_15, %c0_16] : memref<1x32x64xbf16, #tpu.memory_space<vmem>>, vector<1x32x64xbf16>
      %19 = vector.shape_cast %18 : vector<1x32x64xbf16> to vector<32x64xbf16>
      %cst_17 = arith.constant dense<0.000000e+00> : vector<16x64xf32>
      %20 = tpu.matmul %17, %19, %cst_17 {dimension_numbers = #tpu.dot_dimension_numbers<[1], [0], [0], [1], [0, 0, 1, 1], [], []>} : vector<16x32xbf16>, vector<32x64xbf16>, vector<16x64xf32> -> vector<16x64xf32>
      %21 = math.tanh %20 : vector<16x64xf32>
      %22 = arith.truncf %21 : vector<16x64xf32> to vector<16x64xbf16>
      %c0_18 = arith.constant 0 : index
      %c0_19 = arith.constant 0 : index
      %c0_20 = arith.constant 0 : index
      %23 = vector.load %arg6[%c0_18, %c0_19, %c0_20] : memref<1x64x32xbf16, #tpu.memory_space<vmem>>, vector<1x64x32xbf16>
      %24 = vector.shape_cast %23 : vector<1x64x32xbf16> to vector<64x32xbf16>
      %cst_21 = arith.constant dense<0.000000e+00> : vector<16x32xf32>
      %25 = tpu.matmul %22, %24, %cst_21 {dimension_numbers = #tpu.dot_dimension_numbers<[1], [0], [0], [1], [0, 0, 1, 1], [], []>} : vector<16x64xbf16>, vector<64x32xbf16>, vector<16x32xf32> -> vector<16x32xf32>
      %c0_22 = arith.constant 0 : index
      %c0_23 = arith.constant 0 : index
      %c0_24 = arith.constant 0 : index
      %26 = vector.load %arg7[%c0_22, %c0_23, %c0_24] : memref<1x1x32xf32, #tpu.memory_space<vmem>>, vector<1x1x32xf32>
      %27 = vector.shape_cast %26 : vector<1x1x32xf32> to vector<1x32xf32>
      %28 = vector.broadcast %27 : vector<1x32xf32> to vector<16x32xf32>
      %29 = arith.addf %25, %28 : vector<16x32xf32>
      %30 = arith.mulf %16, %29 : vector<16x32xf32>
      %31 = arith.addf %14, %30 : vector<16x32xf32>
      %32 = arith.truncf %31 : vector<16x32xf32> to vector<16x32xbf16>
      %c0_25 = arith.constant 0 : index
      %c0_26 = arith.constant 0 : index
      %33 = vector.load %arg12[%c0_25, %c0_26] : memref<16x32xbf16, #tpu.memory_space<vmem>>, vector<16x32xbf16>
      tpu.vector_store %arg12[%c0_25, %c0_26], %32 {strides = array<i32>} : memref<16x32xbf16, #tpu.memory_space<vmem>>, vector<16x32xbf16>,
    } else {
    }
    %c0 = arith.constant 0 : index
    %c0_1 = arith.constant 0 : index
    %3 = vector.load %arg12[%c0, %c0_1] : memref<16x32xbf16, #tpu.memory_space<vmem>>, vector<16x32xbf16>
    %c0_2 = arith.constant 0 : index
    %c0_3 = arith.constant 0 : index
    %c0_4 = arith.constant 0 : index
    %4 = vector.load %arg8[%c0_2, %c0_3, %c0_4] : memref<1x32x32xbf16, #tpu.memory_space<vmem>>, vector<1x32x32xbf16>
    %5 = vector.shape_cast %4 : vector<1x32x32xbf16> to vector<32x32xbf16>
    %cst = arith.constant dense<0.000000e+00> : vector<16x32xf32>
    %6 = tpu.matmul %3, %5, %cst {dimension_numbers = #tpu.dot_dimension_numbers<[1], [0], [0], [1], [0, 0, 1, 1], [], []>} : vector<16x32xbf16>, vector<32x32xbf16>, vector<16x32xf32> -> vector<16x32xf32>
    %c2_i32 = arith.constant 2 : i32
    %7 = arith.cmpi slt, %arg1, %c2_i32 : i32
    %8 = arith.extui %7 : i1 to i32
    %c0_i32_5 = arith.constant 0 : i32
    %9 = arith.cmpi ne, %8, %c0_i32_5 : i32
    scf.if %9 {
      %c0_8 = arith.constant 0 : index
      %c0_9 = arith.constant 0 : index
      %13 = vector.load %arg9[%c0_8, %c0_9] : memref<16x8xf32, #tpu.memory_space<vmem>>, vector<16x8xf32>
      %c0_10 = arith.constant 0 : index
      %c0_11 = arith.constant 0 : index
      %14 = vector.load %arg10[%c0_10, %c0_11] : memref<16x8xf32, #tpu.memory_space<vmem>>, vector<16x8xf32>
      %15 = tpu.concatenate %13, %13, %13, %13 in 1 : vector<16x8xf32>, vector<16x8xf32>, vector<16x8xf32>, vector<16x8xf32> -> vector<16x32xf32>
      %16 = tpu.concatenate %14, %14, %14, %14 in 1 : vector<16x8xf32>, vector<16x8xf32>, vector<16x8xf32>, vector<16x8xf32> -> vector<16x32xf32>
      %17 = vector.extract_strided_slice %6 {offsets = [0, 4], sizes = [16, 4], strides = [1, 1]} : vector<16x32xf32> to vector<16x4xf32>
      %18 = vector.extract_strided_slice %6 {offsets = [0, 0], sizes = [16, 4], strides = [1, 1]} : vector<16x32xf32> to vector<16x4xf32>
      %19 = vector.extract_strided_slice %6 {offsets = [0, 12], sizes = [16, 4], strides = [1, 1]} : vector<16x32xf32> to vector<16x4xf32>
      %20 = vector.extract_strided_slice %6 {offsets = [0, 8], sizes = [16, 4], strides = [1, 1]} : vector<16x32xf32> to vector<16x4xf32>
      %21 = vector.extract_strided_slice %6 {offsets = [0, 20], sizes = [16, 4], strides = [1, 1]} : vector<16x32xf32> to vector<16x4xf32>
      %22 = vector.extract_strided_slice %6 {offsets = [0, 16], sizes = [16, 4], strides = [1, 1]} : vector<16x32xf32> to vector<16x4xf32>
      %23 = vector.extract_strided_slice %6 {offsets = [0, 28], sizes = [16, 4], strides = [1, 1]} : vector<16x32xf32> to vector<16x4xf32>
      %24 = vector.extract_strided_slice %6 {offsets = [0, 24], sizes = [16, 4], strides = [1, 1]} : vector<16x32xf32> to vector<16x4xf32>
      %25 = tpu.concatenate %17, %18, %19, %20, %21, %22, %23, %24 in 1 : vector<16x4xf32>, vector<16x4xf32>, vector<16x4xf32>, vector<16x4xf32>, vector<16x4xf32>, vector<16x4xf32>, vector<16x4xf32>, vector<16x4xf32> -> vector<16x32xf32>
      %26 = arith.mulf %6, %15 : vector<16x32xf32>
      %27 = arith.mulf %25, %16 : vector<16x32xf32>
      %28 = arith.addf %26, %27 : vector<16x32xf32>
      %c0_i32_12 = arith.constant 0 : i32
      %29 = arith.cmpi eq, %arg1, %c0_i32_12 : i32
      %cst_13 = arith.constant 0.353553385 : f32
      %cst_14 = arith.constant 1.000000e+00 : f32
      %30 = arith.select %29, %cst_13, %cst_14 : f32
      %31 = vector.broadcast %30 : f32 to vector<16x32xf32>
      %32 = arith.mulf %28, %31 : vector<16x32xf32>
      %33 = arith.truncf %32 : vector<16x32xf32> to vector<16x32xbf16>
      %c0_15 = arith.constant 0 : index
      %c0_16 = arith.constant 0 : index
      %c0_17 = arith.constant 0 : index
      %34 = vector.load %arg11[%c0_15, %c0_16, %c0_17] : memref<1x16x32xbf16, #tpu.memory_space<vmem>>, vector<1x16x32xbf16>
      %35 = vector.shape_cast %34 : vector<1x16x32xbf16> to vector<16x32xbf16>
      %36 = vector.shape_cast %33 : vector<16x32xbf16> to vector<1x16x32xbf16>
      tpu.vector_store %arg11[%c0_15, %c0_16, %c0_17], %36 {strides = array<i32>} : memref<1x16x32xbf16, #tpu.memory_space<vmem>>, vector<1x16x32xbf16>,
    } else {
    }
    %c2_i32_6 = arith.constant 2 : i32
    %10 = arith.cmpi eq, %arg1, %c2_i32_6 : i32
    %11 = arith.extui %10 : i1 to i32
    %c0_i32_7 = arith.constant 0 : i32
    %12 = arith.cmpi ne, %11, %c0_i32_7 : i32
    scf.if %12 {
      %13 = arith.truncf %6 : vector<16x32xf32> to vector<16x32xbf16>
      %c0_8 = arith.constant 0 : index
      %c0_9 = arith.constant 0 : index
      %c0_10 = arith.constant 0 : index
      %14 = vector.load %arg11[%c0_8, %c0_9, %c0_10] : memref<1x16x32xbf16, #tpu.memory_space<vmem>>, vector<1x16x32xbf16>
      %15 = vector.shape_cast %14 : vector<1x16x32xbf16> to vector<16x32xbf16>
      %16 = vector.shape_cast %13 : vector<16x32xbf16> to vector<1x16x32xbf16>
      tpu.vector_store %arg11[%c0_8, %c0_9, %c0_10], %16 {strides = array<i32>} : memref<1x16x32xbf16, #tpu.memory_space<vmem>>, vector<1x16x32xbf16>,
    } else {
    }
    return
  }
  func.func @transform_0(%arg0: i32, %arg1: i32, %arg2: i32) -> (i32, i32) {
    %c0_i32 = arith.constant 0 : i32
    %c0_i32_0 = arith.constant 0 : i32
    return %arg0, %c0_i32 : i32, i32
  }
  func.func @transform_1(%arg0: i32, %arg1: i32, %arg2: i32) -> (i32, i32) {
    %c0_i32 = arith.constant 0 : i32
    %c0_i32_0 = arith.constant 0 : i32
    return %arg0, %c0_i32 : i32, i32
  }
  func.func @transform_2(%arg0: i32, %arg1: i32, %arg2: i32) -> (i32, i32, i32) {
    %c0_i32 = arith.constant 0 : i32
    %c0_i32_0 = arith.constant 0 : i32
    %c0_i32_1 = arith.constant 0 : i32
    return %arg1, %c0_i32, %c0_i32_0 : i32, i32, i32
  }
  func.func @transform_3(%arg0: i32, %arg1: i32, %arg2: i32) -> (i32, i32, i32) {
    %c0_i32 = arith.constant 0 : i32
    %c0_i32_0 = arith.constant 0 : i32
    %c0_i32_1 = arith.constant 0 : i32
    return %arg1, %c0_i32, %c0_i32_0 : i32, i32, i32
  }
  func.func @transform_4(%arg0: i32, %arg1: i32, %arg2: i32) -> (i32, i32, i32) {
    %c0_i32 = arith.constant 0 : i32
    %c0_i32_0 = arith.constant 0 : i32
    %c0_i32_1 = arith.constant 0 : i32
    return %arg1, %c0_i32, %c0_i32_0 : i32, i32, i32
  }
  func.func @transform_5(%arg0: i32, %arg1: i32, %arg2: i32) -> (i32, i32, i32) {
    %c0_i32 = arith.constant 0 : i32
    %c0_i32_0 = arith.constant 0 : i32
    return %arg1, %c0_i32, %arg2 : i32, i32, i32
  }
  func.func @transform_6(%arg0: i32, %arg1: i32, %arg2: i32) -> (i32, i32) {
    %c0_i32 = arith.constant 0 : i32
    %c0_i32_0 = arith.constant 0 : i32
    return %arg0, %c0_i32 : i32, i32
  }
  func.func @transform_7(%arg0: i32, %arg1: i32, %arg2: i32) -> (i32, i32) {
    %c0_i32 = arith.constant 0 : i32
    %c0_i32_0 = arith.constant 0 : i32
    return %arg0, %c0_i32 : i32, i32
  }
  func.func @transform_8(%arg0: i32, %arg1: i32, %arg2: i32) -> (i32, i32, i32) {
    %c0_i32 = arith.constant 0 : i32
    return %arg1, %arg0, %arg2 : i32, i32, i32
  }
}

module attributes {stable_mosaic.version = 11 : i64} {
  func.func @ln_shift_kernel(%arg0: i32, %arg1: memref<1x8x32xf32, #tpu.memory_space<vmem>>, %arg2: memref<1x32xf32, #tpu.memory_space<vmem>>, %arg3: memref<1x32xf32, #tpu.memory_space<vmem>>, %arg4: memref<1x8x32xbf16, #tpu.memory_space<vmem>>, %arg5: memref<1x8x32xbf16, #tpu.memory_space<vmem>>) attributes {dimension_semantics = [#tpu.dimension_semantics<parallel>], iteration_bounds = array<i64: 2>, scalar_prefetch = 0 : i64, scratch_operands = 0 : i64, tpu.core_type = #tpu.core_type<tc>, window_params = [{transform_indices = @transform_0, window_bounds = array<i64: 1, 8, 32>}, {pipeline_mode = #tpu.pipeline_mode<synchronous>, transform_indices = @transform_1, window_bounds = array<i64: 1, 32>}, {pipeline_mode = #tpu.pipeline_mode<synchronous>, transform_indices = @transform_2, window_bounds = array<i64: 1, 32>}, {transform_indices = @transform_3, window_bounds = array<i64: 1, 8, 32>}, {transform_indices = @transform_4, window_bounds = array<i64: 1, 8, 32>}]} {
    %c0 = arith.constant 0 : index
    %c0_0 = arith.constant 0 : index
    %c0_1 = arith.constant 0 : index
    %0 = vector.load %arg1[%c0, %c0_0, %c0_1] : memref<1x8x32xf32, #tpu.memory_space<vmem>>, vector<1x8x32xf32>
    %1 = vector.shape_cast %0 : vector<1x8x32xf32> to vector<8x32xf32>
    %cst = arith.constant dense<0.000000e+00> : vector<8xf32>
    %2 = vector.multi_reduction <add>, %1, %cst [1] : vector<8x32xf32> to vector<8xf32>
    %3 = vector.shape_cast %2 : vector<8xf32> to vector<8x1xf32>
    %cst_2 = arith.constant 3.200000e+01 : f32
    %4 = vector.broadcast %cst_2 : f32 to vector<8x1xf32>
    %5 = arith.divf %3, %4 : vector<8x1xf32>
    %6 = vector.broadcast %5 : vector<8x1xf32> to vector<8x32xf32>
    %7 = arith.subf %1, %6 : vector<8x32xf32>
    %8 = arith.mulf %7, %7 : vector<8x32xf32>
    %cst_3 = arith.constant dense<0.000000e+00> : vector<8xf32>
    %9 = vector.multi_reduction <add>, %8, %cst_3 [1] : vector<8x32xf32> to vector<8xf32>
    %10 = vector.shape_cast %9 : vector<8xf32> to vector<8x1xf32>
    %cst_4 = arith.constant 3.200000e+01 : f32
    %11 = vector.broadcast %cst_4 : f32 to vector<8x1xf32>
    %12 = arith.divf %10, %11 : vector<8x1xf32>
    %13 = vector.broadcast %5 : vector<8x1xf32> to vector<8x32xf32>
    %14 = arith.subf %1, %13 : vector<8x32xf32>
    %cst_5 = arith.constant 9.99999974E-6 : f32
    %15 = vector.broadcast %cst_5 : f32 to vector<8x1xf32>
    %16 = arith.addf %12, %15 : vector<8x1xf32>
    %17 = math.rsqrt %16 : vector<8x1xf32>
    %18 = vector.broadcast %17 : vector<8x1xf32> to vector<8x32xf32>
    %19 = arith.mulf %14, %18 : vector<8x32xf32>
    %c0_6 = arith.constant 0 : index
    %c0_7 = arith.constant 0 : index
    %20 = vector.load %arg2[%c0_6, %c0_7] : memref<1x32xf32, #tpu.memory_space<vmem>>, vector<1x32xf32>
    %21 = vector.broadcast %20 : vector<1x32xf32> to vector<8x32xf32>
    %22 = arith.mulf %19, %21 : vector<8x32xf32>
    %c0_8 = arith.constant 0 : index
    %c0_9 = arith.constant 0 : index
    %23 = vector.load %arg3[%c0_8, %c0_9] : memref<1x32xf32, #tpu.memory_space<vmem>>, vector<1x32xf32>
    %24 = vector.broadcast %23 : vector<1x32xf32> to vector<8x32xf32>
    %25 = arith.addf %22, %24 : vector<8x32xf32>
    %26 = arith.truncf %25 : vector<8x32xf32> to vector<8x32xbf16>
    %c0_10 = arith.constant 0 : index
    %c0_11 = arith.constant 0 : index
    %c0_12 = arith.constant 0 : index
    %27 = vector.load %arg4[%c0_10, %c0_11, %c0_12] : memref<1x8x32xbf16, #tpu.memory_space<vmem>>, vector<1x8x32xbf16>
    %28 = vector.shape_cast %27 : vector<1x8x32xbf16> to vector<8x32xbf16>
    %29 = vector.shape_cast %26 : vector<8x32xbf16> to vector<1x8x32xbf16>
    tpu.vector_store %arg4[%c0_10, %c0_11, %c0_12], %29 {strides = array<i32>} : memref<1x8x32xbf16, #tpu.memory_space<vmem>>, vector<1x8x32xbf16>,
    %cst_13 = arith.constant 0.000000e+00 : f32
    %30 = vector.broadcast %cst_13 : f32 to vector<1x32xf32>
    %31 = vector.extract_strided_slice %25 {offsets = [0, 0], sizes = [7, 32], strides = [1, 1]} : vector<8x32xf32> to vector<7x32xf32>
    %32 = tpu.concatenate %30, %31 in 0 : vector<1x32xf32>, vector<7x32xf32> -> vector<8x32xf32>
    %33 = arith.subf %32, %25 : vector<8x32xf32>
    %34 = arith.truncf %33 : vector<8x32xf32> to vector<8x32xbf16>
    %c0_14 = arith.constant 0 : index
    %c0_15 = arith.constant 0 : index
    %c0_16 = arith.constant 0 : index
    %35 = vector.load %arg5[%c0_14, %c0_15, %c0_16] : memref<1x8x32xbf16, #tpu.memory_space<vmem>>, vector<1x8x32xbf16>
    %36 = vector.shape_cast %35 : vector<1x8x32xbf16> to vector<8x32xbf16>
    %37 = vector.shape_cast %34 : vector<8x32xbf16> to vector<1x8x32xbf16>
    tpu.vector_store %arg5[%c0_14, %c0_15, %c0_16], %37 {strides = array<i32>} : memref<1x8x32xbf16, #tpu.memory_space<vmem>>, vector<1x8x32xbf16>,
    return
  }
  func.func @transform_0(%arg0: i32) -> (i32, i32, i32) {
    %c0_i32 = arith.constant 0 : i32
    %c0_i32_0 = arith.constant 0 : i32
    %c0_i32_1 = arith.constant 0 : i32
    return %arg0, %c0_i32, %c0_i32_0 : i32, i32, i32
  }
  func.func @transform_1(%arg0: i32) -> (i32, i32) {
    %c0_i32 = arith.constant 0 : i32
    %c0_i32_0 = arith.constant 0 : i32
    %c0_i32_1 = arith.constant 0 : i32
    return %c0_i32, %c0_i32_0 : i32, i32
  }
  func.func @transform_2(%arg0: i32) -> (i32, i32) {
    %c0_i32 = arith.constant 0 : i32
    %c0_i32_0 = arith.constant 0 : i32
    %c0_i32_1 = arith.constant 0 : i32
    return %c0_i32, %c0_i32_0 : i32, i32
  }
  func.func @transform_3(%arg0: i32) -> (i32, i32, i32) {
    %c0_i32 = arith.constant 0 : i32
    %c0_i32_0 = arith.constant 0 : i32
    %c0_i32_1 = arith.constant 0 : i32
    return %arg0, %c0_i32, %c0_i32_0 : i32, i32, i32
  }
  func.func @transform_4(%arg0: i32) -> (i32, i32, i32) {
    %c0_i32 = arith.constant 0 : i32
    %c0_i32_0 = arith.constant 0 : i32
    %c0_i32_1 = arith.constant 0 : i32
    return %arg0, %c0_i32, %c0_i32_0 : i32, i32, i32
  }
}

module attributes {stable_mosaic.version = 11 : i64} {
  func.func @flash_attn_kernel(%arg0: i32, %arg1: i32, %arg2: i32, %arg3: memref<1x8x8xbf16, #tpu.memory_space<vmem>>, %arg4: memref<1x8x8xbf16, #tpu.memory_space<vmem>>, %arg5: memref<1x8x8xbf16, #tpu.memory_space<vmem>>, %arg6: memref<1x8x8xbf16, #tpu.memory_space<vmem>>, %arg7: memref<8x1xf32, #tpu.memory_space<vmem>>, %arg8: memref<8x1xf32, #tpu.memory_space<vmem>>, %arg9: memref<8x8xf32, #tpu.memory_space<vmem>>) attributes {dimension_semantics = [#tpu.dimension_semantics<parallel>, #tpu.dimension_semantics<parallel>, #tpu.dimension_semantics<arbitrary>], iteration_bounds = array<i64: 8, 1, 1>, scalar_prefetch = 0 : i64, scratch_operands = 3 : i64, tpu.core_type = #tpu.core_type<tc>, window_params = [{transform_indices = @transform_0, window_bounds = array<i64: 1, 8, 8>}, {transform_indices = @transform_1, window_bounds = array<i64: 1, 8, 8>}, {transform_indices = @transform_2, window_bounds = array<i64: 1, 8, 8>}, {transform_indices = @transform_3, window_bounds = array<i64: 1, 8, 8>}]} {
    %c0_i32 = arith.constant 0 : i32
    %0 = arith.cmpi eq, %arg2, %c0_i32 : i32
    %1 = arith.extui %0 : i1 to i32
    %c0_i32_0 = arith.constant 0 : i32
    %2 = arith.cmpi ne, %1, %c0_i32_0 : i32
    scf.if %2 {
      %cst = arith.constant 0xFF800000 : f32
      %9 = vector.broadcast %cst : f32 to vector<8x1xf32>
      %c0 = arith.constant 0 : index
      %c0_4 = arith.constant 0 : index
      %10 = vector.load %arg7[%c0, %c0_4] : memref<8x1xf32, #tpu.memory_space<vmem>>, vector<8x1xf32>
      tpu.vector_store %arg7[%c0, %c0_4], %9 {strides = array<i32>} : memref<8x1xf32, #tpu.memory_space<vmem>>, vector<8x1xf32>,
      %cst_5 = arith.constant 0.000000e+00 : f32
      %11 = vector.broadcast %cst_5 : f32 to vector<8x1xf32>
      %c0_6 = arith.constant 0 : index
      %c0_7 = arith.constant 0 : index
      %12 = vector.load %arg8[%c0_6, %c0_7] : memref<8x1xf32, #tpu.memory_space<vmem>>, vector<8x1xf32>
      tpu.vector_store %arg8[%c0_6, %c0_7], %11 {strides = array<i32>} : memref<8x1xf32, #tpu.memory_space<vmem>>, vector<8x1xf32>,
      %cst_8 = arith.constant 0.000000e+00 : f32
      %13 = vector.broadcast %cst_8 : f32 to vector<8x8xf32>
      %c0_9 = arith.constant 0 : index
      %c0_10 = arith.constant 0 : index
      %14 = vector.load %arg9[%c0_9, %c0_10] : memref<8x8xf32, #tpu.memory_space<vmem>>, vector<8x8xf32>
      tpu.vector_store %arg9[%c0_9, %c0_10], %13 {strides = array<i32>} : memref<8x8xf32, #tpu.memory_space<vmem>>, vector<8x8xf32>,
    } else {
    }
    %3 = arith.cmpi sle, %arg2, %arg1 : i32
    %4 = arith.extui %3 : i1 to i32
    %c0_i32_1 = arith.constant 0 : i32
    %5 = arith.cmpi ne, %4, %c0_i32_1 : i32
    scf.if %5 {
      %c0 = arith.constant 0 : index
      %c0_4 = arith.constant 0 : index
      %c0_5 = arith.constant 0 : index
      %9 = vector.load %arg3[%c0, %c0_4, %c0_5] : memref<1x8x8xbf16, #tpu.memory_space<vmem>>, vector<1x8x8xbf16>
      %10 = vector.shape_cast %9 : vector<1x8x8xbf16> to vector<8x8xbf16>
      %c0_6 = arith.constant 0 : index
      %c0_7 = arith.constant 0 : index
      %c0_8 = arith.constant 0 : index
      %11 = vector.load %arg4[%c0_6, %c0_7, %c0_8] : memref<1x8x8xbf16, #tpu.memory_space<vmem>>, vector<1x8x8xbf16>
      %12 = vector.shape_cast %11 : vector<1x8x8xbf16> to vector<8x8xbf16>
      %cst = arith.constant dense<0.000000e+00> : vector<8x8xf32>
      %13 = tpu.matmul %10, %12, %cst {dimension_numbers = #tpu.dot_dimension_numbers<[1], [1], [0], [0], [0, 0, 1, 0], [], []>} : vector<8x8xbf16>, vector<8x8xbf16>, vector<8x8xf32> -> vector<8x8xf32>
      %c8_i32 = arith.constant 8 : i32
      %14 = arith.muli %arg1, %c8_i32 : i32
      %15 = tpu.iota {dimensions = array<i32: 0>} : vector<8x8xi32>
      %16 = vector.broadcast %14 : i32 to vector<8x8xi32>
      %17 = arith.addi %16, %15 : vector<8x8xi32>
      %c8_i32_9 = arith.constant 8 : i32
      %18 = arith.muli %arg2, %c8_i32_9 : i32
      %19 = tpu.iota {dimensions = array<i32: 1>} : vector<8x8xi32>
      %20 = vector.broadcast %18 : i32 to vector<8x8xi32>
      %21 = arith.addi %20, %19 : vector<8x8xi32>
      %22 = arith.cmpi sle, %21, %17 : vector<8x8xi32>
      %cst_10 = arith.constant 0xFF800000 : f32
      %23 = vector.broadcast %cst_10 : f32 to vector<8x8xf32>
      %24 = arith.select %22, %13, %23 : vector<8x8xi1>, vector<8x8xf32>
      %c0_11 = arith.constant 0 : index
      %c0_12 = arith.constant 0 : index
      %25 = vector.load %arg7[%c0_11, %c0_12] : memref<8x1xf32, #tpu.memory_space<vmem>>, vector<8x1xf32>
      %cst_13 = arith.constant dense<0xFF800000> : vector<8xf32>
      %26 = vector.multi_reduction <maximumf>, %24, %cst_13 [1] : vector<8x8xf32> to vector<8xf32>
      %27 = vector.shape_cast %26 : vector<8xf32> to vector<8x1xf32>
      %28 = arith.maximumf %25, %27 : vector<8x1xf32>
      %29 = arith.subf %25, %28 : vector<8x1xf32>
      %30 = math.exp %29 : vector<8x1xf32>
      %31 = vector.broadcast %28 : vector<8x1xf32> to vector<8x8xf32>
      %32 = arith.subf %24, %31 : vector<8x8xf32>
      %33 = math.exp %32 : vector<8x8xf32>
      %c0_14 = arith.constant 0 : index
      %c0_15 = arith.constant 0 : index
      %34 = vector.load %arg8[%c0_14, %c0_15] : memref<8x1xf32, #tpu.memory_space<vmem>>, vector<8x1xf32>
      %35 = arith.mulf %30, %34 : vector<8x1xf32>
      %cst_16 = arith.constant dense<0.000000e+00> : vector<8xf32>
      %36 = vector.multi_reduction <add>, %33, %cst_16 [1] : vector<8x8xf32> to vector<8xf32>
      %37 = vector.shape_cast %36 : vector<8xf32> to vector<8x1xf32>
      %38 = arith.addf %35, %37 : vector<8x1xf32>
      %c0_17 = arith.constant 0 : index
      %c0_18 = arith.constant 0 : index
      %39 = vector.load %arg8[%c0_17, %c0_18] : memref<8x1xf32, #tpu.memory_space<vmem>>, vector<8x1xf32>
      tpu.vector_store %arg8[%c0_17, %c0_18], %38 {strides = array<i32>} : memref<8x1xf32, #tpu.memory_space<vmem>>, vector<8x1xf32>,
      %c0_19 = arith.constant 0 : index
      %c0_20 = arith.constant 0 : index
      %40 = vector.load %arg9[%c0_19, %c0_20] : memref<8x8xf32, #tpu.memory_space<vmem>>, vector<8x8xf32>
      %41 = vector.broadcast %30 : vector<8x1xf32> to vector<8x8xf32>
      %42 = arith.mulf %41, %40 : vector<8x8xf32>
      %43 = arith.truncf %33 : vector<8x8xf32> to vector<8x8xbf16>
      %c0_21 = arith.constant 0 : index
      %c0_22 = arith.constant 0 : index
      %c0_23 = arith.constant 0 : index
      %44 = vector.load %arg5[%c0_21, %c0_22, %c0_23] : memref<1x8x8xbf16, #tpu.memory_space<vmem>>, vector<1x8x8xbf16>
      %45 = vector.shape_cast %44 : vector<1x8x8xbf16> to vector<8x8xbf16>
      %cst_24 = arith.constant dense<0.000000e+00> : vector<8x8xf32>
      %46 = tpu.matmul %43, %45, %cst_24 {dimension_numbers = #tpu.dot_dimension_numbers<[1], [0], [0], [1], [0, 0, 1, 1], [], []>} : vector<8x8xbf16>, vector<8x8xbf16>, vector<8x8xf32> -> vector<8x8xf32>
      %47 = arith.addf %42, %46 : vector<8x8xf32>
      %c0_25 = arith.constant 0 : index
      %c0_26 = arith.constant 0 : index
      %48 = vector.load %arg9[%c0_25, %c0_26] : memref<8x8xf32, #tpu.memory_space<vmem>>, vector<8x8xf32>
      tpu.vector_store %arg9[%c0_25, %c0_26], %47 {strides = array<i32>} : memref<8x8xf32, #tpu.memory_space<vmem>>, vector<8x8xf32>,
      %c0_27 = arith.constant 0 : index
      %c0_28 = arith.constant 0 : index
      %49 = vector.load %arg7[%c0_27, %c0_28] : memref<8x1xf32, #tpu.memory_space<vmem>>, vector<8x1xf32>
      tpu.vector_store %arg7[%c0_27, %c0_28], %28 {strides = array<i32>} : memref<8x1xf32, #tpu.memory_space<vmem>>, vector<8x1xf32>,
    } else {
    }
    %c0_i32_2 = arith.constant 0 : i32
    %6 = arith.cmpi eq, %arg2, %c0_i32_2 : i32
    %7 = arith.extui %6 : i1 to i32
    %c0_i32_3 = arith.constant 0 : i32
    %8 = arith.cmpi ne, %7, %c0_i32_3 : i32
    scf.if %8 {
      %c0 = arith.constant 0 : index
      %c0_4 = arith.constant 0 : index
      %9 = vector.load %arg9[%c0, %c0_4] : memref<8x8xf32, #tpu.memory_space<vmem>>, vector<8x8xf32>
      %c0_5 = arith.constant 0 : index
      %c0_6 = arith.constant 0 : index
      %10 = vector.load %arg8[%c0_5, %c0_6] : memref<8x1xf32, #tpu.memory_space<vmem>>, vector<8x1xf32>
      %11 = vector.broadcast %10 : vector<8x1xf32> to vector<8x8xf32>
      %12 = arith.divf %9, %11 : vector<8x8xf32>
      %13 = arith.truncf %12 : vector<8x8xf32> to vector<8x8xbf16>
      %c0_7 = arith.constant 0 : index
      %c0_8 = arith.constant 0 : index
      %c0_9 = arith.constant 0 : index
      %14 = vector.load %arg6[%c0_7, %c0_8, %c0_9] : memref<1x8x8xbf16, #tpu.memory_space<vmem>>, vector<1x8x8xbf16>
      %15 = vector.shape_cast %14 : vector<1x8x8xbf16> to vector<8x8xbf16>
      %16 = vector.shape_cast %13 : vector<8x8xbf16> to vector<1x8x8xbf16>
      tpu.vector_store %arg6[%c0_7, %c0_8, %c0_9], %16 {strides = array<i32>} : memref<1x8x8xbf16, #tpu.memory_space<vmem>>, vector<1x8x8xbf16>,
    } else {
    }
    return
  }
  func.func @transform_0(%arg0: i32, %arg1: i32, %arg2: i32) -> (i32, i32, i32) {
    %c0_i32 = arith.constant 0 : i32
    %c0_i32_0 = arith.constant 0 : i32
    return %arg0, %arg1, %c0_i32 : i32, i32, i32
  }
  func.func @transform_1(%arg0: i32, %arg1: i32, %arg2: i32) -> (i32, i32, i32) {
    %0 = arith.minsi %arg2, %arg1 : i32
    %c0_i32 = arith.constant 0 : i32
    %c0_i32_0 = arith.constant 0 : i32
    return %arg0, %0, %c0_i32 : i32, i32, i32
  }
  func.func @transform_2(%arg0: i32, %arg1: i32, %arg2: i32) -> (i32, i32, i32) {
    %0 = arith.minsi %arg2, %arg1 : i32
    %c0_i32 = arith.constant 0 : i32
    %c0_i32_0 = arith.constant 0 : i32
    return %arg0, %0, %c0_i32 : i32, i32, i32
  }
  func.func @transform_3(%arg0: i32, %arg1: i32, %arg2: i32) -> (i32, i32, i32) {
    %c0_i32 = arith.constant 0 : i32
    %c0_i32_0 = arith.constant 0 : i32
    return %arg0, %arg1, %c0_i32 : i32, i32, i32
  }
}

module attributes {stable_mosaic.version = 11 : i64} {
  func.func @proj_residual_kernel(%arg0: i32, %arg1: i32, %arg2: memref<16x32xbf16, #tpu.memory_space<vmem>>, %arg3: memref<32x32xbf16, #tpu.memory_space<vmem>>, %arg4: memref<1x32xf32, #tpu.memory_space<vmem>>, %arg5: memref<16x32xf32, #tpu.memory_space<vmem>>, %arg6: memref<16x32xf32, #tpu.memory_space<vmem>>) attributes {dimension_semantics = [#tpu.dimension_semantics<parallel>, #tpu.dimension_semantics<parallel>], iteration_bounds = array<i64: 1, 1>, scalar_prefetch = 0 : i64, scratch_operands = 0 : i64, tpu.core_type = #tpu.core_type<tc>, window_params = [{transform_indices = @transform_0, window_bounds = array<i64: 16, 32>}, {transform_indices = @transform_1, window_bounds = array<i64: 32, 32>}, {transform_indices = @transform_2, window_bounds = array<i64: 1, 32>}, {transform_indices = @transform_3, window_bounds = array<i64: 16, 32>}, {transform_indices = @transform_4, window_bounds = array<i64: 16, 32>}]} {
    %c0 = arith.constant 0 : index
    %c0_0 = arith.constant 0 : index
    %0 = vector.load %arg2[%c0, %c0_0] : memref<16x32xbf16, #tpu.memory_space<vmem>>, vector<16x32xbf16>
    %c0_1 = arith.constant 0 : index
    %c0_2 = arith.constant 0 : index
    %1 = vector.load %arg3[%c0_1, %c0_2] : memref<32x32xbf16, #tpu.memory_space<vmem>>, vector<32x32xbf16>
    %cst = arith.constant dense<0.000000e+00> : vector<16x32xf32>
    %2 = tpu.matmul %0, %1, %cst {dimension_numbers = #tpu.dot_dimension_numbers<[1], [0], [0], [1], [0, 0, 1, 1], [], []>} : vector<16x32xbf16>, vector<32x32xbf16>, vector<16x32xf32> -> vector<16x32xf32>
    %c0_3 = arith.constant 0 : index
    %c0_4 = arith.constant 0 : index
    %3 = vector.load %arg5[%c0_3, %c0_4] : memref<16x32xf32, #tpu.memory_space<vmem>>, vector<16x32xf32>
    %4 = arith.addf %3, %2 : vector<16x32xf32>
    %c0_5 = arith.constant 0 : index
    %c0_6 = arith.constant 0 : index
    %5 = vector.load %arg4[%c0_5, %c0_6] : memref<1x32xf32, #tpu.memory_space<vmem>>, vector<1x32xf32>
    %6 = vector.broadcast %5 : vector<1x32xf32> to vector<16x32xf32>
    %7 = arith.addf %4, %6 : vector<16x32xf32>
    %c0_7 = arith.constant 0 : index
    %c0_8 = arith.constant 0 : index
    %8 = vector.load %arg6[%c0_7, %c0_8] : memref<16x32xf32, #tpu.memory_space<vmem>>, vector<16x32xf32>
    tpu.vector_store %arg6[%c0_7, %c0_8], %7 {strides = array<i32>} : memref<16x32xf32, #tpu.memory_space<vmem>>, vector<16x32xf32>,
    return
  }
  func.func @transform_0(%arg0: i32, %arg1: i32) -> (i32, i32) {
    %c0_i32 = arith.constant 0 : i32
    %c0_i32_0 = arith.constant 0 : i32
    return %arg0, %c0_i32 : i32, i32
  }
  func.func @transform_1(%arg0: i32, %arg1: i32) -> (i32, i32) {
    %c0_i32 = arith.constant 0 : i32
    %c0_i32_0 = arith.constant 0 : i32
    return %c0_i32, %arg1 : i32, i32
  }
  func.func @transform_2(%arg0: i32, %arg1: i32) -> (i32, i32) {
    %c0_i32 = arith.constant 0 : i32
    %c0_i32_0 = arith.constant 0 : i32
    return %c0_i32, %arg1 : i32, i32
  }
  func.func @transform_3(%arg0: i32, %arg1: i32) -> (i32, i32) {
    %c0_i32 = arith.constant 0 : i32
    return %arg0, %arg1 : i32, i32
  }
  func.func @transform_4(%arg0: i32, %arg1: i32) -> (i32, i32) {
    %c0_i32 = arith.constant 0 : i32
    return %arg0, %arg1 : i32, i32
  }
}

module attributes {stable_mosaic.version = 11 : i64} {
  func.func @cmix_kernel(%arg0: i32, %arg1: i32, %arg2: memref<16x32xbf16, #tpu.memory_space<vmem>>, %arg3: memref<16x32xbf16, #tpu.memory_space<vmem>>, %arg4: memref<1x32xf32, #tpu.memory_space<vmem>>, %arg5: memref<1x32xf32, #tpu.memory_space<vmem>>, %arg6: memref<32x32xbf16, #tpu.memory_space<vmem>>, %arg7: memref<32x128xbf16, #tpu.memory_space<vmem>>, %arg8: memref<128x32xbf16, #tpu.memory_space<vmem>>, %arg9: memref<16x32xf32, #tpu.memory_space<vmem>>, %arg10: memref<16x32xf32, #tpu.memory_space<vmem>>, %arg11: memref<16x32xf32, #tpu.memory_space<vmem>>, %arg12: memref<16x32xf32, #tpu.memory_space<vmem>>) attributes {dimension_semantics = [#tpu.dimension_semantics<parallel>, #tpu.dimension_semantics<arbitrary>], iteration_bounds = array<i64: 1, 1>, scalar_prefetch = 0 : i64, scratch_operands = 2 : i64, tpu.core_type = #tpu.core_type<tc>, window_params = [{transform_indices = @transform_0, window_bounds = array<i64: 16, 32>}, {transform_indices = @transform_1, window_bounds = array<i64: 16, 32>}, {pipeline_mode = #tpu.pipeline_mode<synchronous>, transform_indices = @transform_2, window_bounds = array<i64: 1, 32>}, {pipeline_mode = #tpu.pipeline_mode<synchronous>, transform_indices = @transform_3, window_bounds = array<i64: 1, 32>}, {pipeline_mode = #tpu.pipeline_mode<synchronous>, transform_indices = @transform_4, window_bounds = array<i64: 32, 32>}, {transform_indices = @transform_5, window_bounds = array<i64: 32, 128>}, {transform_indices = @transform_6, window_bounds = array<i64: 128, 32>}, {transform_indices = @transform_7, window_bounds = array<i64: 16, 32>}, {transform_indices = @transform_8, window_bounds = array<i64: 16, 32>}]} {
    %c0 = arith.constant 0 : index
    %c0_0 = arith.constant 0 : index
    %0 = vector.load %arg2[%c0, %c0_0] : memref<16x32xbf16, #tpu.memory_space<vmem>>, vector<16x32xbf16>
    %1 = arith.extf %0 : vector<16x32xbf16> to vector<16x32xf32>
    %c0_1 = arith.constant 0 : index
    %c0_2 = arith.constant 0 : index
    %2 = vector.load %arg3[%c0_1, %c0_2] : memref<16x32xbf16, #tpu.memory_space<vmem>>, vector<16x32xbf16>
    %3 = arith.extf %2 : vector<16x32xbf16> to vector<16x32xf32>
    %c0_i32 = arith.constant 0 : i32
    %4 = arith.cmpi eq, %arg1, %c0_i32 : i32
    %5 = arith.extui %4 : i1 to i32
    %c0_i32_3 = arith.constant 0 : i32
    %6 = arith.cmpi ne, %5, %c0_i32_3 : i32
    scf.if %6 {
      %cst_22 = arith.constant 0.000000e+00 : f32
      %34 = vector.broadcast %cst_22 : f32 to vector<16x32xf32>
      %c0_23 = arith.constant 0 : index
      %c0_24 = arith.constant 0 : index
      %35 = vector.load %arg12[%c0_23, %c0_24] : memref<16x32xf32, #tpu.memory_space<vmem>>, vector<16x32xf32>
      tpu.vector_store %arg12[%c0_23, %c0_24], %34 {strides = array<i32>} : memref<16x32xf32, #tpu.memory_space<vmem>>, vector<16x32xf32>,
    } else {
    }
    %c0_4 = arith.constant 0 : index
    %c0_5 = arith.constant 0 : index
    %7 = vector.load %arg4[%c0_4, %c0_5] : memref<1x32xf32, #tpu.memory_space<vmem>>, vector<1x32xf32>
    %8 = vector.broadcast %7 : vector<1x32xf32> to vector<16x32xf32>
    %9 = arith.mulf %3, %8 : vector<16x32xf32>
    %10 = arith.addf %1, %9 : vector<16x32xf32>
    %11 = arith.truncf %10 : vector<16x32xf32> to vector<16x32xbf16>
    %c0_i32_6 = arith.constant 0 : i32
    %12 = arith.cmpi eq, %arg1, %c0_i32_6 : i32
    %13 = arith.extui %12 : i1 to i32
    %c0_i32_7 = arith.constant 0 : i32
    %14 = arith.cmpi ne, %13, %c0_i32_7 : i32
    scf.if %14 {
      %c0_22 = arith.constant 0 : index
      %c0_23 = arith.constant 0 : index
      %34 = vector.load %arg6[%c0_22, %c0_23] : memref<32x32xbf16, #tpu.memory_space<vmem>>, vector<32x32xbf16>
      %cst_24 = arith.constant dense<0.000000e+00> : vector<16x32xf32>
      %35 = tpu.matmul %11, %34, %cst_24 {dimension_numbers = #tpu.dot_dimension_numbers<[1], [0], [0], [1], [0, 0, 1, 1], [], []>} : vector<16x32xbf16>, vector<32x32xbf16>, vector<16x32xf32> -> vector<16x32xf32>
      %c0_25 = arith.constant 0 : index
      %c0_26 = arith.constant 0 : index
      %36 = vector.load %arg11[%c0_25, %c0_26] : memref<16x32xf32, #tpu.memory_space<vmem>>, vector<16x32xf32>
      tpu.vector_store %arg11[%c0_25, %c0_26], %35 {strides = array<i32>} : memref<16x32xf32, #tpu.memory_space<vmem>>, vector<16x32xf32>,
    } else {
    }
    %c0_8 = arith.constant 0 : index
    %c0_9 = arith.constant 0 : index
    %15 = vector.load %arg5[%c0_8, %c0_9] : memref<1x32xf32, #tpu.memory_space<vmem>>, vector<1x32xf32>
    %16 = vector.broadcast %15 : vector<1x32xf32> to vector<16x32xf32>
    %17 = arith.mulf %3, %16 : vector<16x32xf32>
    %18 = arith.addf %1, %17 : vector<16x32xf32>
    %19 = arith.truncf %18 : vector<16x32xf32> to vector<16x32xbf16>
    %c0_10 = arith.constant 0 : index
    %c0_11 = arith.constant 0 : index
    %20 = vector.load %arg7[%c0_10, %c0_11] : memref<32x128xbf16, #tpu.memory_space<vmem>>, vector<32x128xbf16>
    %cst = arith.constant dense<0.000000e+00> : vector<16x128xf32>
    %21 = tpu.matmul %19, %20, %cst {dimension_numbers = #tpu.dot_dimension_numbers<[1], [0], [0], [1], [0, 0, 1, 1], [], []>} : vector<16x32xbf16>, vector<32x128xbf16>, vector<16x128xf32> -> vector<16x128xf32>
    %cst_12 = arith.constant 0.000000e+00 : f32
    %22 = vector.broadcast %cst_12 : f32 to vector<16x128xf32>
    %23 = arith.maximumf %21, %22 : vector<16x128xf32>
    %24 = arith.mulf %23, %23 : vector<16x128xf32>
    %25 = arith.truncf %24 : vector<16x128xf32> to vector<16x128xbf16>
    %c0_13 = arith.constant 0 : index
    %c0_14 = arith.constant 0 : index
    %26 = vector.load %arg12[%c0_13, %c0_14] : memref<16x32xf32, #tpu.memory_space<vmem>>, vector<16x32xf32>
    %c0_15 = arith.constant 0 : index
    %c0_16 = arith.constant 0 : index
    %27 = vector.load %arg8[%c0_15, %c0_16] : memref<128x32xbf16, #tpu.memory_space<vmem>>, vector<128x32xbf16>
    %cst_17 = arith.constant dense<0.000000e+00> : vector<16x32xf32>
    %28 = tpu.matmul %25, %27, %cst_17 {dimension_numbers = #tpu.dot_dimension_numbers<[1], [0], [0], [1], [0, 0, 1, 1], [], []>} : vector<16x128xbf16>, vector<128x32xbf16>, vector<16x32xf32> -> vector<16x32xf32>
    %29 = arith.addf %26, %28 : vector<16x32xf32>
    %c0_18 = arith.constant 0 : index
    %c0_19 = arith.constant 0 : index
    %30 = vector.load %arg12[%c0_18, %c0_19] : memref<16x32xf32, #tpu.memory_space<vmem>>, vector<16x32xf32>
    tpu.vector_store %arg12[%c0_18, %c0_19], %29 {strides = array<i32>} : memref<16x32xf32, #tpu.memory_space<vmem>>, vector<16x32xf32>,
    %c0_i32_20 = arith.constant 0 : i32
    %31 = arith.cmpi eq, %arg1, %c0_i32_20 : i32
    %32 = arith.extui %31 : i1 to i32
    %c0_i32_21 = arith.constant 0 : i32
    %33 = arith.cmpi ne, %32, %c0_i32_21 : i32
    scf.if %33 {
      %c0_22 = arith.constant 0 : index
      %c0_23 = arith.constant 0 : index
      %34 = vector.load %arg9[%c0_22, %c0_23] : memref<16x32xf32, #tpu.memory_space<vmem>>, vector<16x32xf32>
      %c0_24 = arith.constant 0 : index
      %c0_25 = arith.constant 0 : index
      %35 = vector.load %arg11[%c0_24, %c0_25] : memref<16x32xf32, #tpu.memory_space<vmem>>, vector<16x32xf32>
      %36 = arith.negf %35 : vector<16x32xf32>
      %37 = math.exp %36 : vector<16x32xf32>
      %cst_26 = arith.constant 1.000000e+00 : f32
      %38 = vector.broadcast %cst_26 : f32 to vector<16x32xf32>
      %39 = arith.addf %38, %37 : vector<16x32xf32>
      %40 = arith.divf %38, %39 : vector<16x32xf32>
      %c0_27 = arith.constant 0 : index
      %c0_28 = arith.constant 0 : index
      %41 = vector.load %arg12[%c0_27, %c0_28] : memref<16x32xf32, #tpu.memory_space<vmem>>, vector<16x32xf32>
      %42 = arith.mulf %40, %41 : vector<16x32xf32>
      %43 = arith.addf %34, %42 : vector<16x32xf32>
      %c0_29 = arith.constant 0 : index
      %c0_30 = arith.constant 0 : index
      %44 = vector.load %arg10[%c0_29, %c0_30] : memref<16x32xf32, #tpu.memory_space<vmem>>, vector<16x32xf32>
      tpu.vector_store %arg10[%c0_29, %c0_30], %43 {strides = array<i32>} : memref<16x32xf32, #tpu.memory_space<vmem>>, vector<16x32xf32>,
    } else {
    }
    return
  }
  func.func @transform_0(%arg0: i32, %arg1: i32) -> (i32, i32) {
    %c0_i32 = arith.constant 0 : i32
    %c0_i32_0 = arith.constant 0 : i32
    return %arg0, %c0_i32 : i32, i32
  }
  func.func @transform_1(%arg0: i32, %arg1: i32) -> (i32, i32) {
    %c0_i32 = arith.constant 0 : i32
    %c0_i32_0 = arith.constant 0 : i32
    return %arg0, %c0_i32 : i32, i32
  }
  func.func @transform_2(%arg0: i32, %arg1: i32) -> (i32, i32) {
    %c0_i32 = arith.constant 0 : i32
    %c0_i32_0 = arith.constant 0 : i32
    %c0_i32_1 = arith.constant 0 : i32
    return %c0_i32, %c0_i32_0 : i32, i32
  }
  func.func @transform_3(%arg0: i32, %arg1: i32) -> (i32, i32) {
    %c0_i32 = arith.constant 0 : i32
    %c0_i32_0 = arith.constant 0 : i32
    %c0_i32_1 = arith.constant 0 : i32
    return %c0_i32, %c0_i32_0 : i32, i32
  }
  func.func @transform_4(%arg0: i32, %arg1: i32) -> (i32, i32) {
    %c0_i32 = arith.constant 0 : i32
    %c0_i32_0 = arith.constant 0 : i32
    %c0_i32_1 = arith.constant 0 : i32
    return %c0_i32, %c0_i32_0 : i32, i32
  }
  func.func @transform_5(%arg0: i32, %arg1: i32) -> (i32, i32) {
    %c0_i32 = arith.constant 0 : i32
    %c0_i32_0 = arith.constant 0 : i32
    return %c0_i32, %arg1 : i32, i32
  }
  func.func @transform_6(%arg0: i32, %arg1: i32) -> (i32, i32) {
    %c0_i32 = arith.constant 0 : i32
    %c0_i32_0 = arith.constant 0 : i32
    return %arg1, %c0_i32 : i32, i32
  }
  func.func @transform_7(%arg0: i32, %arg1: i32) -> (i32, i32) {
    %c0_i32 = arith.constant 0 : i32
    %c0_i32_0 = arith.constant 0 : i32
    return %arg0, %c0_i32 : i32, i32
  }
  func.func @transform_8(%arg0: i32, %arg1: i32) -> (i32, i32) {
    %c0_i32 = arith.constant 0 : i32
    %c0_i32_0 = arith.constant 0 : i32
    return %arg0, %c0_i32 : i32, i32
  }
}

module attributes {stable_mosaic.version = 11 : i64} {
  func.func @qkv_kernel(%arg0: i32, %arg1: i32, %arg2: i32, %arg3: memref<16x32xbf16, #tpu.memory_space<vmem>>, %arg4: memref<16x32xbf16, #tpu.memory_space<vmem>>, %arg5: memref<1x32x64xbf16, #tpu.memory_space<vmem>>, %arg6: memref<1x64x32xbf16, #tpu.memory_space<vmem>>, %arg7: memref<1x1x32xf32, #tpu.memory_space<vmem>>, %arg8: memref<1x32x32xbf16, #tpu.memory_space<vmem>>, %arg9: memref<16x8xf32, #tpu.memory_space<vmem>>, %arg10: memref<16x8xf32, #tpu.memory_space<vmem>>, %arg11: memref<1x16x32xbf16, #tpu.memory_space<vmem>>, %arg12: memref<16x32xbf16, #tpu.memory_space<vmem>>) attributes {dimension_semantics = [#tpu.dimension_semantics<parallel>, #tpu.dimension_semantics<parallel>, #tpu.dimension_semantics<arbitrary>], iteration_bounds = array<i64: 1, 3, 1>, scalar_prefetch = 0 : i64, scratch_operands = 1 : i64, tpu.core_type = #tpu.core_type<tc>, window_params = [{transform_indices = @transform_0, window_bounds = array<i64: 16, 32>}, {transform_indices = @transform_1, window_bounds = array<i64: 16, 32>}, {transform_indices = @transform_2, window_bounds = array<i64: 1, 32, 64>}, {transform_indices = @transform_3, window_bounds = array<i64: 1, 64, 32>}, {transform_indices = @transform_4, window_bounds = array<i64: 1, 1, 32>}, {transform_indices = @transform_5, window_bounds = array<i64: 1, 32, 32>}, {transform_indices = @transform_6, window_bounds = array<i64: 16, 8>}, {transform_indices = @transform_7, window_bounds = array<i64: 16, 8>}, {transform_indices = @transform_8, window_bounds = array<i64: 1, 16, 32>}]} {
    %c0_i32 = arith.constant 0 : i32
    %0 = arith.cmpi eq, %arg2, %c0_i32 : i32
    %1 = arith.extui %0 : i1 to i32
    %c0_i32_0 = arith.constant 0 : i32
    %2 = arith.cmpi ne, %1, %c0_i32_0 : i32
    scf.if %2 {
      %c0_8 = arith.constant 0 : index
      %c0_9 = arith.constant 0 : index
      %13 = vector.load %arg3[%c0_8, %c0_9] : memref<16x32xbf16, #tpu.memory_space<vmem>>, vector<16x32xbf16>
      %14 = arith.extf %13 : vector<16x32xbf16> to vector<16x32xf32>
      %c0_10 = arith.constant 0 : index
      %c0_11 = arith.constant 0 : index
      %15 = vector.load %arg4[%c0_10, %c0_11] : memref<16x32xbf16, #tpu.memory_space<vmem>>, vector<16x32xbf16>
      %16 = arith.extf %15 : vector<16x32xbf16> to vector<16x32xf32>
      %c0_12 = arith.constant 0 : index
      %c0_13 = arith.constant 0 : index
      %17 = vector.load %arg3[%c0_12, %c0_13] : memref<16x32xbf16, #tpu.memory_space<vmem>>, vector<16x32xbf16>
      %c0_14 = arith.constant 0 : index
      %c0_15 = arith.constant 0 : index
      %c0_16 = arith.constant 0 : index
      %18 = vector.load %arg5[%c0_14, %c0_15, %c0_16] : memref<1x32x64xbf16, #tpu.memory_space<vmem>>, vector<1x32x64xbf16>
      %19 = vector.shape_cast %18 : vector<1x32x64xbf16> to vector<32x64xbf16>
      %cst_17 = arith.constant dense<0.000000e+00> : vector<16x64xf32>
      %20 = tpu.matmul %17, %19, %cst_17 {dimension_numbers = #tpu.dot_dimension_numbers<[1], [0], [0], [1], [0, 0, 1, 1], [], []>} : vector<16x32xbf16>, vector<32x64xbf16>, vector<16x64xf32> -> vector<16x64xf32>
      %21 = math.tanh %20 : vector<16x64xf32>
      %22 = arith.truncf %21 : vector<16x64xf32> to vector<16x64xbf16>
      %c0_18 = arith.constant 0 : index
      %c0_19 = arith.constant 0 : index
      %c0_20 = arith.constant 0 : index
      %23 = vector.load %arg6[%c0_18, %c0_19, %c0_20] : memref<1x64x32xbf16, #tpu.memory_space<vmem>>, vector<1x64x32xbf16>
      %24 = vector.shape_cast %23 : vector<1x64x32xbf16> to vector<64x32xbf16>
      %cst_21 = arith.constant dense<0.000000e+00> : vector<16x32xf32>
      %25 = tpu.matmul %22, %24, %cst_21 {dimension_numbers = #tpu.dot_dimension_numbers<[1], [0], [0], [1], [0, 0, 1, 1], [], []>} : vector<16x64xbf16>, vector<64x32xbf16>, vector<16x32xf32> -> vector<16x32xf32>
      %c0_22 = arith.constant 0 : index
      %c0_23 = arith.constant 0 : index
      %c0_24 = arith.constant 0 : index
      %26 = vector.load %arg7[%c0_22, %c0_23, %c0_24] : memref<1x1x32xf32, #tpu.memory_space<vmem>>, vector<1x1x32xf32>
      %27 = vector.shape_cast %26 : vector<1x1x32xf32> to vector<1x32xf32>
      %28 = vector.broadcast %27 : vector<1x32xf32> to vector<16x32xf32>
      %29 = arith.addf %25, %28 : vector<16x32xf32>
      %30 = arith.mulf %16, %29 : vector<16x32xf32>
      %31 = arith.addf %14, %30 : vector<16x32xf32>
      %32 = arith.truncf %31 : vector<16x32xf32> to vector<16x32xbf16>
      %c0_25 = arith.constant 0 : index
      %c0_26 = arith.constant 0 : index
      %33 = vector.load %arg12[%c0_25, %c0_26] : memref<16x32xbf16, #tpu.memory_space<vmem>>, vector<16x32xbf16>
      tpu.vector_store %arg12[%c0_25, %c0_26], %32 {strides = array<i32>} : memref<16x32xbf16, #tpu.memory_space<vmem>>, vector<16x32xbf16>,
    } else {
    }
    %c0 = arith.constant 0 : index
    %c0_1 = arith.constant 0 : index
    %3 = vector.load %arg12[%c0, %c0_1] : memref<16x32xbf16, #tpu.memory_space<vmem>>, vector<16x32xbf16>
    %c0_2 = arith.constant 0 : index
    %c0_3 = arith.constant 0 : index
    %c0_4 = arith.constant 0 : index
    %4 = vector.load %arg8[%c0_2, %c0_3, %c0_4] : memref<1x32x32xbf16, #tpu.memory_space<vmem>>, vector<1x32x32xbf16>
    %5 = vector.shape_cast %4 : vector<1x32x32xbf16> to vector<32x32xbf16>
    %cst = arith.constant dense<0.000000e+00> : vector<16x32xf32>
    %6 = tpu.matmul %3, %5, %cst {dimension_numbers = #tpu.dot_dimension_numbers<[1], [0], [0], [1], [0, 0, 1, 1], [], []>} : vector<16x32xbf16>, vector<32x32xbf16>, vector<16x32xf32> -> vector<16x32xf32>
    %c2_i32 = arith.constant 2 : i32
    %7 = arith.cmpi slt, %arg1, %c2_i32 : i32
    %8 = arith.extui %7 : i1 to i32
    %c0_i32_5 = arith.constant 0 : i32
    %9 = arith.cmpi ne, %8, %c0_i32_5 : i32
    scf.if %9 {
      %c0_8 = arith.constant 0 : index
      %c0_9 = arith.constant 0 : index
      %13 = vector.load %arg9[%c0_8, %c0_9] : memref<16x8xf32, #tpu.memory_space<vmem>>, vector<16x8xf32>
      %c0_10 = arith.constant 0 : index
      %c0_11 = arith.constant 0 : index
      %14 = vector.load %arg10[%c0_10, %c0_11] : memref<16x8xf32, #tpu.memory_space<vmem>>, vector<16x8xf32>
      %15 = tpu.concatenate %13, %13, %13, %13 in 1 : vector<16x8xf32>, vector<16x8xf32>, vector<16x8xf32>, vector<16x8xf32> -> vector<16x32xf32>
      %16 = tpu.concatenate %14, %14, %14, %14 in 1 : vector<16x8xf32>, vector<16x8xf32>, vector<16x8xf32>, vector<16x8xf32> -> vector<16x32xf32>
      %17 = vector.extract_strided_slice %6 {offsets = [0, 4], sizes = [16, 4], strides = [1, 1]} : vector<16x32xf32> to vector<16x4xf32>
      %18 = vector.extract_strided_slice %6 {offsets = [0, 0], sizes = [16, 4], strides = [1, 1]} : vector<16x32xf32> to vector<16x4xf32>
      %19 = vector.extract_strided_slice %6 {offsets = [0, 12], sizes = [16, 4], strides = [1, 1]} : vector<16x32xf32> to vector<16x4xf32>
      %20 = vector.extract_strided_slice %6 {offsets = [0, 8], sizes = [16, 4], strides = [1, 1]} : vector<16x32xf32> to vector<16x4xf32>
      %21 = vector.extract_strided_slice %6 {offsets = [0, 20], sizes = [16, 4], strides = [1, 1]} : vector<16x32xf32> to vector<16x4xf32>
      %22 = vector.extract_strided_slice %6 {offsets = [0, 16], sizes = [16, 4], strides = [1, 1]} : vector<16x32xf32> to vector<16x4xf32>
      %23 = vector.extract_strided_slice %6 {offsets = [0, 28], sizes = [16, 4], strides = [1, 1]} : vector<16x32xf32> to vector<16x4xf32>
      %24 = vector.extract_strided_slice %6 {offsets = [0, 24], sizes = [16, 4], strides = [1, 1]} : vector<16x32xf32> to vector<16x4xf32>
      %25 = tpu.concatenate %17, %18, %19, %20, %21, %22, %23, %24 in 1 : vector<16x4xf32>, vector<16x4xf32>, vector<16x4xf32>, vector<16x4xf32>, vector<16x4xf32>, vector<16x4xf32>, vector<16x4xf32>, vector<16x4xf32> -> vector<16x32xf32>
      %26 = arith.mulf %6, %15 : vector<16x32xf32>
      %27 = arith.mulf %25, %16 : vector<16x32xf32>
      %28 = arith.addf %26, %27 : vector<16x32xf32>
      %c0_i32_12 = arith.constant 0 : i32
      %29 = arith.cmpi eq, %arg1, %c0_i32_12 : i32
      %cst_13 = arith.constant 0.353553385 : f32
      %cst_14 = arith.constant 1.000000e+00 : f32
      %30 = arith.select %29, %cst_13, %cst_14 : f32
      %31 = vector.broadcast %30 : f32 to vector<16x32xf32>
      %32 = arith.mulf %28, %31 : vector<16x32xf32>
      %33 = arith.truncf %32 : vector<16x32xf32> to vector<16x32xbf16>
      %c0_15 = arith.constant 0 : index
      %c0_16 = arith.constant 0 : index
      %c0_17 = arith.constant 0 : index
      %34 = vector.load %arg11[%c0_15, %c0_16, %c0_17] : memref<1x16x32xbf16, #tpu.memory_space<vmem>>, vector<1x16x32xbf16>
      %35 = vector.shape_cast %34 : vector<1x16x32xbf16> to vector<16x32xbf16>
      %36 = vector.shape_cast %33 : vector<16x32xbf16> to vector<1x16x32xbf16>
      tpu.vector_store %arg11[%c0_15, %c0_16, %c0_17], %36 {strides = array<i32>} : memref<1x16x32xbf16, #tpu.memory_space<vmem>>, vector<1x16x32xbf16>,
    } else {
    }
    %c2_i32_6 = arith.constant 2 : i32
    %10 = arith.cmpi eq, %arg1, %c2_i32_6 : i32
    %11 = arith.extui %10 : i1 to i32
    %c0_i32_7 = arith.constant 0 : i32
    %12 = arith.cmpi ne, %11, %c0_i32_7 : i32
    scf.if %12 {
      %13 = arith.truncf %6 : vector<16x32xf32> to vector<16x32xbf16>
      %c0_8 = arith.constant 0 : index
      %c0_9 = arith.constant 0 : index
      %c0_10 = arith.constant 0 : index
      %14 = vector.load %arg11[%c0_8, %c0_9, %c0_10] : memref<1x16x32xbf16, #tpu.memory_space<vmem>>, vector<1x16x32xbf16>
      %15 = vector.shape_cast %14 : vector<1x16x32xbf16> to vector<16x32xbf16>
      %16 = vector.shape_cast %13 : vector<16x32xbf16> to vector<1x16x32xbf16>
      tpu.vector_store %arg11[%c0_8, %c0_9, %c0_10], %16 {strides = array<i32>} : memref<1x16x32xbf16, #tpu.memory_space<vmem>>, vector<1x16x32xbf16>,
    } else {
    }
    return
  }
  func.func @transform_0(%arg0: i32, %arg1: i32, %arg2: i32) -> (i32, i32) {
    %c0_i32 = arith.constant 0 : i32
    %c0_i32_0 = arith.constant 0 : i32
    return %arg0, %c0_i32 : i32, i32
  }
  func.func @transform_1(%arg0: i32, %arg1: i32, %arg2: i32) -> (i32, i32) {
    %c0_i32 = arith.constant 0 : i32
    %c0_i32_0 = arith.constant 0 : i32
    return %arg0, %c0_i32 : i32, i32
  }
  func.func @transform_2(%arg0: i32, %arg1: i32, %arg2: i32) -> (i32, i32, i32) {
    %c0_i32 = arith.constant 0 : i32
    %c0_i32_0 = arith.constant 0 : i32
    %c0_i32_1 = arith.constant 0 : i32
    return %arg1, %c0_i32, %c0_i32_0 : i32, i32, i32
  }
  func.func @transform_3(%arg0: i32, %arg1: i32, %arg2: i32) -> (i32, i32, i32) {
    %c0_i32 = arith.constant 0 : i32
    %c0_i32_0 = arith.constant 0 : i32
    %c0_i32_1 = arith.constant 0 : i32
    return %arg1, %c0_i32, %c0_i32_0 : i32, i32, i32
  }
  func.func @transform_4(%arg0: i32, %arg1: i32, %arg2: i32) -> (i32, i32, i32) {
    %c0_i32 = arith.constant 0 : i32
    %c0_i32_0 = arith.constant 0 : i32
    %c0_i32_1 = arith.constant 0 : i32
    return %arg1, %c0_i32, %c0_i32_0 : i32, i32, i32
  }
  func.func @transform_5(%arg0: i32, %arg1: i32, %arg2: i32) -> (i32, i32, i32) {
    %c0_i32 = arith.constant 0 : i32
    %c0_i32_0 = arith.constant 0 : i32
    return %arg1, %c0_i32, %arg2 : i32, i32, i32
  }
  func.func @transform_6(%arg0: i32, %arg1: i32, %arg2: i32) -> (i32, i32) {
    %c0_i32 = arith.constant 0 : i32
    %c0_i32_0 = arith.constant 0 : i32
    return %arg0, %c0_i32 : i32, i32
  }
  func.func @transform_7(%arg0: i32, %arg1: i32, %arg2: i32) -> (i32, i32) {
    %c0_i32 = arith.constant 0 : i32
    %c0_i32_0 = arith.constant 0 : i32
    return %arg0, %c0_i32 : i32, i32
  }
  func.func @transform_8(%arg0: i32, %arg1: i32, %arg2: i32) -> (i32, i32, i32) {
    %c0_i32 = arith.constant 0 : i32
    return %arg1, %arg0, %arg2 : i32, i32, i32
  }
}

module attributes {stable_mosaic.version = 11 : i64} {
  func.func @lmhead_kernel(%arg0: i32, %arg1: i32, %arg2: memref<16x32xf32, #tpu.memory_space<vmem>>, %arg3: memref<1x32xf32, #tpu.memory_space<vmem>>, %arg4: memref<1x32xf32, #tpu.memory_space<vmem>>, %arg5: memref<64x32xbf16, #tpu.memory_space<vmem>>, %arg6: memref<1x64xf32, #tpu.memory_space<vmem>>, %arg7: memref<16x64xf32, #tpu.memory_space<vmem>>, %arg8: memref<16x32xbf16, #tpu.memory_space<vmem>>) attributes {dimension_semantics = [#tpu.dimension_semantics<parallel>, #tpu.dimension_semantics<arbitrary>], iteration_bounds = array<i64: 1, 1>, scalar_prefetch = 0 : i64, scratch_operands = 1 : i64, tpu.core_type = #tpu.core_type<tc>, window_params = [{transform_indices = @transform_0, window_bounds = array<i64: 16, 32>}, {pipeline_mode = #tpu.pipeline_mode<synchronous>, transform_indices = @transform_1, window_bounds = array<i64: 1, 32>}, {pipeline_mode = #tpu.pipeline_mode<synchronous>, transform_indices = @transform_2, window_bounds = array<i64: 1, 32>}, {transform_indices = @transform_3, window_bounds = array<i64: 64, 32>}, {transform_indices = @transform_4, window_bounds = array<i64: 1, 64>}, {transform_indices = @transform_5, window_bounds = array<i64: 16, 64>}]} {
    %c0_i32 = arith.constant 0 : i32
    %0 = arith.cmpi eq, %arg1, %c0_i32 : i32
    %1 = arith.extui %0 : i1 to i32
    %c0_i32_0 = arith.constant 0 : i32
    %2 = arith.cmpi ne, %1, %c0_i32_0 : i32
    scf.if %2 {
      %c0_8 = arith.constant 0 : index
      %c0_9 = arith.constant 0 : index
      %10 = vector.load %arg2[%c0_8, %c0_9] : memref<16x32xf32, #tpu.memory_space<vmem>>, vector<16x32xf32>
      %cst_10 = arith.constant dense<0.000000e+00> : vector<16xf32>
      %11 = vector.multi_reduction <add>, %10, %cst_10 [1] : vector<16x32xf32> to vector<16xf32>
      %12 = vector.shape_cast %11 : vector<16xf32> to vector<16x1xf32>
      %cst_11 = arith.constant 3.200000e+01 : f32
      %13 = vector.broadcast %cst_11 : f32 to vector<16x1xf32>
      %14 = arith.divf %12, %13 : vector<16x1xf32>
      %15 = vector.broadcast %14 : vector<16x1xf32> to vector<16x32xf32>
      %16 = arith.subf %10, %15 : vector<16x32xf32>
      %17 = arith.mulf %16, %16 : vector<16x32xf32>
      %cst_12 = arith.constant dense<0.000000e+00> : vector<16xf32>
      %18 = vector.multi_reduction <add>, %17, %cst_12 [1] : vector<16x32xf32> to vector<16xf32>
      %19 = vector.shape_cast %18 : vector<16xf32> to vector<16x1xf32>
      %cst_13 = arith.constant 3.200000e+01 : f32
      %20 = vector.broadcast %cst_13 : f32 to vector<16x1xf32>
      %21 = arith.divf %19, %20 : vector<16x1xf32>
      %22 = vector.broadcast %14 : vector<16x1xf32> to vector<16x32xf32>
      %23 = arith.subf %10, %22 : vector<16x32xf32>
      %cst_14 = arith.constant 9.99999974E-6 : f32
      %24 = vector.broadcast %cst_14 : f32 to vector<16x1xf32>
      %25 = arith.addf %21, %24 : vector<16x1xf32>
      %26 = math.rsqrt %25 : vector<16x1xf32>
      %27 = vector.broadcast %26 : vector<16x1xf32> to vector<16x32xf32>
      %28 = arith.mulf %23, %27 : vector<16x32xf32>
      %c0_15 = arith.constant 0 : index
      %c0_16 = arith.constant 0 : index
      %29 = vector.load %arg3[%c0_15, %c0_16] : memref<1x32xf32, #tpu.memory_space<vmem>>, vector<1x32xf32>
      %30 = vector.broadcast %29 : vector<1x32xf32> to vector<16x32xf32>
      %31 = arith.mulf %28, %30 : vector<16x32xf32>
      %c0_17 = arith.constant 0 : index
      %c0_18 = arith.constant 0 : index
      %32 = vector.load %arg4[%c0_17, %c0_18] : memref<1x32xf32, #tpu.memory_space<vmem>>, vector<1x32xf32>
      %33 = vector.broadcast %32 : vector<1x32xf32> to vector<16x32xf32>
      %34 = arith.addf %31, %33 : vector<16x32xf32>
      %35 = arith.truncf %34 : vector<16x32xf32> to vector<16x32xbf16>
      %c0_19 = arith.constant 0 : index
      %c0_20 = arith.constant 0 : index
      %36 = vector.load %arg8[%c0_19, %c0_20] : memref<16x32xbf16, #tpu.memory_space<vmem>>, vector<16x32xbf16>
      tpu.vector_store %arg8[%c0_19, %c0_20], %35 {strides = array<i32>} : memref<16x32xbf16, #tpu.memory_space<vmem>>, vector<16x32xbf16>,
    } else {
    }
    %c0 = arith.constant 0 : index
    %c0_1 = arith.constant 0 : index
    %3 = vector.load %arg8[%c0, %c0_1] : memref<16x32xbf16, #tpu.memory_space<vmem>>, vector<16x32xbf16>
    %c0_2 = arith.constant 0 : index
    %c0_3 = arith.constant 0 : index
    %4 = vector.load %arg5[%c0_2, %c0_3] : memref<64x32xbf16, #tpu.memory_space<vmem>>, vector<64x32xbf16>
    %cst = arith.constant dense<0.000000e+00> : vector<16x64xf32>
    %5 = tpu.matmul %3, %4, %cst {dimension_numbers = #tpu.dot_dimension_numbers<[1], [1], [0], [0], [0, 0, 1, 0], [], []>} : vector<16x32xbf16>, vector<64x32xbf16>, vector<16x64xf32> -> vector<16x64xf32>
    %c0_4 = arith.constant 0 : index
    %c0_5 = arith.constant 0 : index
    %6 = vector.load %arg6[%c0_4, %c0_5] : memref<1x64xf32, #tpu.memory_space<vmem>>, vector<1x64xf32>
    %7 = vector.broadcast %6 : vector<1x64xf32> to vector<16x64xf32>
    %8 = arith.addf %5, %7 : vector<16x64xf32>
    %c0_6 = arith.constant 0 : index
    %c0_7 = arith.constant 0 : index
    %9 = vector.load %arg7[%c0_6, %c0_7] : memref<16x64xf32, #tpu.memory_space<vmem>>, vector<16x64xf32>
    tpu.vector_store %arg7[%c0_6, %c0_7], %8 {strides = array<i32>} : memref<16x64xf32, #tpu.memory_space<vmem>>, vector<16x64xf32>,
    return
  }
  func.func @transform_0(%arg0: i32, %arg1: i32) -> (i32, i32) {
    %c0_i32 = arith.constant 0 : i32
    %c0_i32_0 = arith.constant 0 : i32
    return %arg0, %c0_i32 : i32, i32
  }
  func.func @transform_1(%arg0: i32, %arg1: i32) -> (i32, i32) {
    %c0_i32 = arith.constant 0 : i32
    %c0_i32_0 = arith.constant 0 : i32
    %c0_i32_1 = arith.constant 0 : i32
    return %c0_i32, %c0_i32_0 : i32, i32
  }
  func.func @transform_2(%arg0: i32, %arg1: i32) -> (i32, i32) {
    %c0_i32 = arith.constant 0 : i32
    %c0_i32_0 = arith.constant 0 : i32
    %c0_i32_1 = arith.constant 0 : i32
    return %c0_i32, %c0_i32_0 : i32, i32
  }
  func.func @transform_3(%arg0: i32, %arg1: i32) -> (i32, i32) {
    %c0_i32 = arith.constant 0 : i32
    %c0_i32_0 = arith.constant 0 : i32
    return %arg1, %c0_i32 : i32, i32
  }
  func.func @transform_4(%arg0: i32, %arg1: i32) -> (i32, i32) {
    %c0_i32 = arith.constant 0 : i32
    %c0_i32_0 = arith.constant 0 : i32
    return %c0_i32, %arg1 : i32, i32
  }
  func.func @transform_5(%arg0: i32, %arg1: i32) -> (i32, i32) {
    %c0_i32 = arith.constant 0 : i32
    return %arg0, %arg1 : i32, i32
  }
}

</mosaic_0001>

<llo_original>
// kernel: squeeze.8
$region0: #{squeeze.8}
  %s0 = inlined_call_operand.vmem [shape: bf16[1,16,32], index: 0, kind: input, shape index: {}]
  %s1 = inlined_call_operand.vmem [shape: bf16[2,8,4,8], index: 1, kind: output, shape index: {}]
  $region1: #{squeeze.8} parent=0
    #allocation0 [shape = 'u8[65536]{0}', space=vmem, size = 0x10000, scoped, tag = 'scoped mem for output reshape']
    #allocation1 [shape = 'u8[8192]{0}', space=vmem, size = 0x2000, scoped, tag = 'scoped mem for input reshape']
    %s3 = ssub.s32 256, 1
    %s4 = scalar_lea.vmem %s0, 4
    %s5 = sshrl.u32 %s3, 1
    %s6 = sor.u32 %s3, %s5
    %s7 = sand.u32 %s6, 85
    %s8 = sshrl.u32 %s7, 1
    %s9 = sor.u32 %s7, %s8
    %s10 = sand.u32 51, %s9
    %s11 = sshrl.u32 %s10, 2
    %s12 = sor.u32 %s10, %s11
    %s13 = sand.u32 15, %s12
    %v14 = vld [vmem:[%s4] sm:%s13]
    %v15 = vunpack.c.l.bf16 %v14
    %v16 = vunpack.c.h.bf16 %v14
    %s17 = scalar_lea.vmem [#allocation1], 8
    %18 = vst [vmem:[%s17] sm:%s3] %v15
    %s19 = sshrl.u32 %s3, 1
    %s20 = sor.u32 %s3, %s19
    %s21 = sand.u32 %s20, 85
    %s22 = sshrl.u32 %s21, 1
    %s23 = sor.u32 %s21, %s22
    %s24 = sand.u32 51, %s23
    %s25 = sshrl.u32 %s24, 2
    %s26 = sor.u32 %s24, %s25
    %s27 = sand.u32 15, %s26
    %v28 = vld [vmem:[%s0] sm:%s27]
    %v29 = vunpack.c.l.bf16 %v28
    %v30 = vunpack.c.h.bf16 %v28
    %31 = vst [vmem:[#allocation1] sm:%s3] %v29
    %v32 = vld [vmem:[#allocation1] sm:$0xff]
    %vm33 = vcmask 64512
    %34 = vst.msk [vmem:[#allocation0] ss:$8 sm:$0xf] %vm33, %v32
    %35 = vst.msk [vmem:[#allocation0] ss:$8 sm:$0xf0] %vm33, %v32
    %s36 = scalar_lea.vmem [#allocation1], 8
    %v37 = vld [vmem:[%s36] sm:$0xff]
    %vm38 = vcmask 64512
    %s39 = scalar_lea.vmem [#allocation0], 64
    %40 = vst.msk [vmem:[%s39] ss:$8 sm:$0xf] %vm38, %v37
    %s41 = scalar_lea.vmem [#allocation0], 64
    %42 = vst.msk [vmem:[%s41] ss:$8 sm:$0xf0] %vm38, %v37
    %v43 = vld [vmem:[#allocation1] sm:$0xff]
    %44 = vrot.lane.b32.xlu0 %v43, 120
    %v45 = vpop.permute.xlu0 %44
    %vm46 = vcmask 64512
    %s47 = scalar_lea.vmem [#allocation0], 1
    %48 = vst.msk [vmem:[%s47] ss:$8 sm:$0xf] %vm46, %v45
    %s49 = scalar_lea.vmem [#allocation0], 1
    %50 = vst.msk [vmem:[%s49] ss:$8 sm:$0xf0] %vm46, %v45
    %s51 = scalar_lea.vmem [#allocation1], 8
    %v52 = vld [vmem:[%s51] sm:$0xff]
    %53 = vrot.lane.b32.xlu0 %v52, 120
    %v54 = vpop.permute.xlu0 %53
    %vm55 = vcmask 64512
    %s56 = scalar_lea.vmem [#allocation0], 65
    %57 = vst.msk [vmem:[%s56] ss:$8 sm:$0xf] %vm55, %v54
    %s58 = scalar_lea.vmem [#allocation0], 65
    %59 = vst.msk [vmem:[%s58] ss:$8 sm:$0xf0] %vm55, %v54
    %v60 = vld [vmem:[#allocation1] sm:$0xff]
    %61 = vrot.lane.b32.xlu0 %v60, 112
    %v62 = vpop.permute.xlu0 %61
    %vm63 = vcmask 64512
    %s64 = scalar_lea.vmem [#allocation0], 2
    %65 = vst.msk [vmem:[%s64] ss:$8 sm:$0xf] %vm63, %v62
    %s66 = scalar_lea.vmem [#allocation0], 2
    %67 = vst.msk [vmem:[%s66] ss:$8 sm:$0xf0] %vm63, %v62
    %s68 = scalar_lea.vmem [#allocation1], 8
    %v69 = vld [vmem:[%s68] sm:$0xff]
    %70 = vrot.lane.b32.xlu0 %v69, 112
    %v71 = vpop.permute.xlu0 %70
    %vm72 = vcmask 64512
    %s73 = scalar_lea.vmem [#allocation0], 66
    %74 = vst.msk [vmem:[%s73] ss:$8 sm:$0xf] %vm72, %v71
    %s75 = scalar_lea.vmem [#allocation0], 66
    %76 = vst.msk [vmem:[%s75] ss:$8 sm:$0xf0] %vm72, %v71
    %v77 = vld [vmem:[#allocation1] sm:$0xff]
    %78 = vrot.lane.b32.xlu0 %v77, 104
    %v79 = vpop.permute.xlu0 %78
    %vm80 = vcmask 64512
    %s81 = scalar_lea.vmem [#allocation0], 3
    %82 = vst.msk [vmem:[%s81] ss:$8 sm:$0xf] %vm80, %v79
    %s83 = scalar_lea.vmem [#allocation0], 3
    %84 = vst.msk [vmem:[%s83] ss:$8 sm:$0xf0] %vm80, %v79
    %s85 = scalar_lea.vmem [#allocation1], 8
    %v86 = vld [vmem:[%s85] sm:$0xff]
    %87 = vrot.lane.b32.xlu0 %v86, 104
    %v88 = vpop.permute.xlu0 %87
    %vm89 = vcmask 64512
    %s90 = scalar_lea.vmem [#allocation0], 67
    %91 = vst.msk [vmem:[%s90] ss:$8 sm:$0xf] %vm89, %v88
    %s92 = scalar_lea.vmem [#allocation0], 67
    %93 = vst.msk [vmem:[%s92] ss:$8 sm:$0xf0] %vm89, %v88
    %s95 = ssub.s32 16, 1
    %v96 = vld [vmem:[#allocation0] sm:%s95]
    %v97 = vpack.c.bf16 0.0, %v96
    %s99 = ssub.s32 4, 1
    %100 = vst [vmem:[%s1] sm:%s99] %v97
    %s101 = scalar_lea.vmem [#allocation0], 8
    %v102 = vld [vmem:[%s101] sm:%s95]
    %v103 = vpack.c.bf16 0.0, %v102
    %s105 = ssub.s32 4, 1
    %s106 = scalar_lea.vmem %s1, 2
    %107 = vst [vmem:[%s106] sm:%s105] %v103
    %s108 = scalar_lea.vmem [#allocation0], 16
    %v109 = vld [vmem:[%s108] sm:%s95]
    %v110 = vpack.c.bf16 0.0, %v109
    %s112 = ssub.s32 4, 1
    %s113 = scalar_lea.vmem %s1, 4
    %114 = vst [vmem:[%s113] sm:%s112] %v110
    %s115 = scalar_lea.vmem [#allocation0], 24
    %v116 = vld [vmem:[%s115] sm:%s95]
    %v117 = vpack.c.bf16 0.0, %v116
    %s119 = ssub.s32 4, 1
    %s120 = scalar_lea.vmem %s1, 6
    %121 = vst [vmem:[%s120] sm:%s119] %v117
    %s122 = scalar_lea.vmem [#allocation0], 32
    %v123 = vld [vmem:[%s122] sm:%s95]
    %v124 = vpack.c.bf16 0.0, %v123
    %s126 = ssub.s32 4, 1
    %s127 = scalar_lea.vmem %s1, 8
    %128 = vst [vmem:[%s127] sm:%s126] %v124
    %s129 = scalar_lea.vmem [#allocation0], 40
    %v130 = vld [vmem:[%s129] sm:%s95]
    %v131 = vpack.c.bf16 0.0, %v130
    %s133 = ssub.s32 4, 1
    %s134 = scalar_lea.vmem %s1, 10
    %135 = vst [vmem:[%s134] sm:%s133] %v131
    %s136 = scalar_lea.vmem [#allocation0], 48
    %v137 = vld [vmem:[%s136] sm:%s95]
    %v138 = vpack.c.bf16 0.0, %v137
    %s140 = ssub.s32 4, 1
    %s141 = scalar_lea.vmem %s1, 12
    %142 = vst [vmem:[%s141] sm:%s140] %v138
    %s143 = scalar_lea.vmem [#allocation0], 56
    %v144 = vld [vmem:[%s143] sm:%s95]
    %v145 = vpack.c.bf16 0.0, %v144
    %s147 = ssub.s32 4, 1
    %s148 = scalar_lea.vmem %s1, 14
    %149 = vst [vmem:[%s148] sm:%s147] %v145
    %s150 = scalar_lea.vmem [#allocation0], 64
    %v151 = vld [vmem:[%s150] sm:%s95]
    %v152 = vpack.c.bf16 0.0, %v151
    %s154 = ssub.s32 4, 1
    %s155 = scalar_lea.vmem %s1, 16
    %156 = vst [vmem:[%s155] sm:%s154] %v152
    %s157 = scalar_lea.vmem [#allocation0], 72
    %v158 = vld [vmem:[%s157] sm:%s95]
    %v159 = vpack.c.bf16 0.0, %v158
    %s161 = ssub.s32 4, 1
    %s162 = scalar_lea.vmem %s1, 18
    %163 = vst [vmem:[%s162] sm:%s161] %v159
    %s164 = scalar_lea.vmem [#allocation0], 80
    %v165 = vld [vmem:[%s164] sm:%s95]
    %v166 = vpack.c.bf16 0.0, %v165
    %s168 = ssub.s32 4, 1
    %s169 = scalar_lea.vmem %s1, 20
    %170 = vst [vmem:[%s169] sm:%s168] %v166
    %s171 = scalar_lea.vmem [#allocation0], 88
    %v172 = vld [vmem:[%s171] sm:%s95]
    %v173 = vpack.c.bf16 0.0, %v172
    %s175 = ssub.s32 4, 1
    %s176 = scalar_lea.vmem %s1, 22
    %177 = vst [vmem:[%s176] sm:%s175] %v173
    %s178 = scalar_lea.vmem [#allocation0], 96
    %v179 = vld [vmem:[%s178] sm:%s95]
    %v180 = vpack.c.bf16 0.0, %v179
    %s182 = ssub.s32 4, 1
    %s183 = scalar_lea.vmem %s1, 24
    %184 = vst [vmem:[%s183] sm:%s182] %v180
    %s185 = scalar_lea.vmem [#allocation0], 104
    %v186 = vld [vmem:[%s185] sm:%s95]
    %v187 = vpack.c.bf16 0.0, %v186
    %s189 = ssub.s32 4, 1
    %s190 = scalar_lea.vmem %s1, 26
    %191 = vst [vmem:[%s190] sm:%s189] %v187
    %s192 = scalar_lea.vmem [#allocation0], 112
    %v193 = vld [vmem:[%s192] sm:%s95]
    %v194 = vpack.c.bf16 0.0, %v193
    %s196 = ssub.s32 4, 1
    %s197 = scalar_lea.vmem %s1, 28
    %198 = vst [vmem:[%s197] sm:%s196] %v194
    %s199 = scalar_lea.vmem [#allocation0], 120
    %v200 = vld [vmem:[%s199] sm:%s95]
    %v201 = vpack.c.bf16 0.0, %v200
    %s203 = ssub.s32 4, 1
    %s204 = scalar_lea.vmem %s1, 30
    %205 = vst [vmem:[%s204] sm:%s203] %v201

// kernel: _lambda_.13
$region0: #{_lambda_.13}
  #allocation0 [shape = 'u32[]', space=smem, size = 0x4, offset = 0x4, fixed_abs, tag = 'smem constant byte address 0x4 - core index']
  #allocation1 [shape = 'u32[72,128]{1,0:T(1,128)}', space=vmem, size = 0x9000, scoped, tag = 'internal scratch']
  %s0 = inlined_call_operand.vmem [shape: f32[2,8,32], index: 0, kind: input, shape index: {}]
  %s1 = inlined_call_operand.vmem [shape: f32[1,32], index: 1, kind: input, shape index: {}]
  %s2 = inlined_call_operand.vmem [shape: f32[1,32], index: 2, kind: input, shape index: {}]
  %s3 = inlined_call_operand.vmem [shape: bf16[2,8,32], index: 3, kind: output, shape index: {0}]
  %s4 = inlined_call_operand.vmem [shape: bf16[2,8,32], index: 4, kind: output, shape index: {1}]
  %5 = xla_tuple %s3, %s4
  %s6 = sld [smem:[#allocation0]]
  $region53: #{_lambda_.13} parent=0
    _
  %s8 = ssub.s32 1, %s6
  %s9 = scalar_select 0, %s8, %s6
  loop: start=0, step=1, limit=4
  $region2: #{_lambda_.13} parent=0 // loop_pre_header
    _
  $region3: #{_lambda_.13} parent=0 // loop_header
    %s11 = sphi 0, %s15
    %p12 = scmp.ge.s32.totalorder %s11, 4
    %s21 = sphi 0, %s23
    %s24 = sphi 0, %s21
    %s25 = sphi 0, %s24
    %s41 = sphi 0, %s25
    %s45 = sphi 0, %s45
    %s47 = sphi 0, %s45
    %s48 = sphi 0, %s47
    %s62 = sphi 0, %s48
    %s66 = sphi 0, %s66
    %s68 = sphi 0, %s66
    %s69 = sphi 0, %s68
    %s83 = sphi 0, %s69
    %s89 = sphi 0, %s91
    %s92 = sphi 0, %s89
    %s93 = sphi 0, %s92
    %s109 = sphi 0, %s93
    %s115 = sphi 0, %s117
    %s118 = sphi 0, %s115
    %s119 = sphi 0, %s118
    %s135 = sphi 0, %s119
  $region4: #{_lambda_.13} parent=0 // loop_header_branch
    %14 = sbr.rel (%p12) target = $region8
  $region5: #{_lambda_.13} parent=0 // loop_body
    %s16 = ssub.s32 %s11, 1
    %s17 = ssub.s32 %s11, 2
    %s18 = sadd.s32 %s11, 1
    %s19 = ssub.s32 %s11, %s18
    %p20 = scmp.eq.s32.totalorder %s19, 0
    %s22 = sadd.s32 %s21, 1
    %s23 = scalar_select %p20, %s21, %s22
    %p26 = pneg %p20
    %p27 = scmp.eq.s32.totalorder %s11, 1
    %p28 = por %p26, %p27
    %p29 = scmp.ne.s32.totalorder %s21, %s24
    %p30 = scmp.eq.s32.totalorder %s11, 0
    %p31 = por %p29, %p30
    %p32 = scmp.ne.s32.totalorder %s21, %s24
    %p33 = scmp.eq.s32.totalorder %s16, 1
    %p34 = por %p32, %p33
    %p35 = scmp.ne.s32.totalorder %s24, %s25
    %p36 = scmp.eq.s32.totalorder %s16, 0
    %p37 = por %p35, %p36
    %p38 = scmp.ne.s32.totalorder %s24, %s25
    %p39 = scmp.eq.s32.totalorder %s17, 1
    %p40 = por %p38, %p39
    %p42 = scmp.ne.s32.totalorder %s25, %s41
    %p43 = scmp.eq.s32.totalorder %s17, 0
    %p44 = por %p42, %p43
    %s46 = sadd.s32 %s45, 1
    %p49 = scmp.eq.s32.totalorder %s11, 1
    %p50 = scmp.ne.s32.totalorder %s45, %s47
    %p51 = scmp.eq.s32.totalorder %s11, 0
    %p52 = por %p50, %p51
    %p53 = scmp.ne.s32.totalorder %s45, %s47
    %p54 = scmp.eq.s32.totalorder %s16, 1
    %p55 = por %p53, %p54
    %p56 = scmp.ne.s32.totalorder %s47, %s48
    %p57 = scmp.eq.s32.totalorder %s16, 0
    %p58 = por %p56, %p57
    %p59 = scmp.ne.s32.totalorder %s47, %s48
    %p60 = scmp.eq.s32.totalorder %s17, 1
    %p61 = por %p59, %p60
    %p63 = scmp.ne.s32.totalorder %s48, %s62
    %p64 = scmp.eq.s32.totalorder %s17, 0
    %p65 = por %p63, %p64
    %s67 = sadd.s32 %s66, 1
    %p70 = scmp.eq.s32.totalorder %s11, 1
    %p71 = scmp.ne.s32.totalorder %s66, %s68
    %p72 = scmp.eq.s32.totalorder %s11, 0
    %p73 = por %p71, %p72
    %p74 = scmp.ne.s32.totalorder %s66, %s68
    %p75 = scmp.eq.s32.totalorder %s16, 1
    %p76 = por %p74, %p75
    %p77 = scmp.ne.s32.totalorder %s68, %s69
    %p78 = scmp.eq.s32.totalorder %s16, 0
    %p79 = por %p77, %p78
    %p80 = scmp.ne.s32.totalorder %s68, %s69
    %p81 = scmp.eq.s32.totalorder %s17, 1
    %p82 = por %p80, %p81
    %p84 = scmp.ne.s32.totalorder %s69, %s83
    %p85 = scmp.eq.s32.totalorder %s17, 0
    %p86 = por %p84, %p85
    %s87 = ssub.s32 %s11, %s18
    %p88 = scmp.eq.s32.totalorder %s87, 0
    %s90 = sadd.s32 %s89, 1
    %s91 = scalar_select %p88, %s89, %s90
    %p94 = pneg %p88
    %p95 = scmp.eq.s32.totalorder %s11, 1
    %p96 = por %p94, %p95
    %p97 = scmp.ne.s32.totalorder %s89, %s92
    %p98 = scmp.eq.s32.totalorder %s11, 0
    %p99 = por %p97, %p98
    %p100 = scmp.ne.s32.totalorder %s89, %s92
    %p101 = scmp.eq.s32.totalorder %s16, 1
    %p102 = por %p100, %p101
    %p103 = scmp.ne.s32.totalorder %s92, %s93
    %p104 = scmp.eq.s32.totalorder %s16, 0
    %p105 = por %p103, %p104
    %p106 = scmp.ne.s32.totalorder %s92, %s93
    %p107 = scmp.eq.s32.totalorder %s17, 1
    %p108 = por %p106, %p107
    %p110 = scmp.ne.s32.totalorder %s93, %s109
    %p111 = scmp.eq.s32.totalorder %s17, 0
    %p112 = por %p110, %p111
    %s113 = ssub.s32 %s11, %s18
    %p114 = scmp.eq.s32.totalorder %s113, 0
    %s116 = sadd.s32 %s115, 1
    %s117 = scalar_select %p114, %s115, %s116
    %p120 = pneg %p114
    %p121 = scmp.eq.s32.totalorder %s11, 1
    %p122 = por %p120, %p121
    %p123 = scmp.ne.s32.totalorder %s115, %s118
    %p124 = scmp.eq.s32.totalorder %s11, 0
    %p125 = por %p123, %p124
    %p126 = scmp.ne.s32.totalorder %s115, %s118
    %p127 = scmp.eq.s32.totalorder %s16, 1
    %p128 = por %p126, %p127
    %p129 = scmp.ne.s32.totalorder %s118, %s119
    %p130 = scmp.eq.s32.totalorder %s16, 0
    %p131 = por %p129, %p130
    %p132 = scmp.ne.s32.totalorder %s118, %s119
    %p133 = scmp.eq.s32.totalorder %s17, 1
    %p134 = por %p132, %p133
    %p136 = scmp.ne.s32.totalorder %s119, %s135
    %p137 = scmp.eq.s32.totalorder %s17, 0
    %p138 = por %p136, %p137
    %p139 = scmp.le.s32.totalorder 1, %s11
    %p140 = scmp.lt.s32.totalorder %s11, 3
    %p141 = pnand %p139, %p140
    %p142 = pneg %p141
    // Predicated region
    $region9: #{_lambda_.13} parent=5 // pred_check
      _
    $region10: #{_lambda_.13} parent=5 // pred_check_branch
      %144 = sbr.rel (%p141) target = $region12
    $region11: #{_lambda_.13} parent=5 // pred_region
      %s145 = ssub.s32 %s11, 1
      // Predicated region
      $region13: #{_lambda_.13} parent=11 // pred_check
        %p146 = pneg %p58
      $region14: #{_lambda_.13} parent=11 // pred_check_branch
        %148 = sbr.rel (%p146) target = $region16
      $region15: #{_lambda_.13} parent=11 // pred_region
        _
      $region16: #{_lambda_.13} parent=11 // pred_fallthru
        _
      // Predicated region
      $region17: #{_lambda_.13} parent=11 // pred_check
        %p149 = pneg %p79
      $region18: #{_lambda_.13} parent=11 // pred_check_branch
        %151 = sbr.rel (%p149) target = $region20
      $region19: #{_lambda_.13} parent=11 // pred_region
        _
      $region20: #{_lambda_.13} parent=11 // pred_fallthru
        _
    $region12: #{_lambda_.13} parent=5 // pred_fallthru
      _
    %p152 = scmp.lt.s32.totalorder %s11, 2
    // Predicated region
    $region21: #{_lambda_.13} parent=5 // pred_check
      %p153 = pneg %p152
    $region22: #{_lambda_.13} parent=5 // pred_check_branch
      %155 = sbr.rel (%p153) target = $region24
    $region23: #{_lambda_.13} parent=5 // pred_region
      // Predicated region
      $region25: #{_lambda_.13} parent=23 // pred_check
        %p156 = pneg %p31
      $region26: #{_lambda_.13} parent=23 // pred_check_branch
        %158 = sbr.rel (%p156) target = $region28
      $region27: #{_lambda_.13} parent=23 // pred_region
        %p159 = scmp.lt.s32.totalorder %s11, 1
        %s160 = scalar_select %p159, %s11, 1
        %s161 = smul.addr %s160, 8
        %s162 = scalar_lea.vmem %s0, %s161
      $region28: #{_lambda_.13} parent=23 // pred_fallthru
        _
    $region24: #{_lambda_.13} parent=5 // pred_fallthru
      _
    %p163 = scmp.le.s32.totalorder 1, %s11
    %p164 = scmp.lt.s32.totalorder %s11, 3
    %p165 = pnand %p163, %p164
    %p166 = pneg %p165
    // Predicated region
    $region29: #{_lambda_.13} parent=5 // pred_check
      _
    $region30: #{_lambda_.13} parent=5 // pred_check_branch
      %168 = sbr.rel (%p165) target = $region32
    $region31: #{_lambda_.13} parent=5 // pred_region
      %s169 = ssub.s32 %s11, 1
      %p170 = scmp.lt.s32.totalorder %s16, 1
      %s171 = scalar_select %p170, %s16, 1
      %s172 = smul.addr %s171, 8
      %s173 = scalar_lea.vmem %s0, %s172
      %p174 = pneg %p37
      %p175 = pneg %p34
      %p176 = pneg %p58
      %p177 = pneg %p55
      %p178 = pneg %p79
      %p179 = pneg %p76
      %p180 = pneg %p105
      %p181 = pneg %p102
      %p182 = scmp.lt.s32.totalorder %s16, 1
      %s183 = scalar_select %p182, %s16, 1
      %s184 = smul.addr %s183, 4
      %s185 = scalar_lea.vmem %s3, %s184
      %p186 = pneg %p131
      %p187 = pneg %p128
      %p188 = scmp.lt.s32.totalorder %s16, 1
      %s189 = scalar_select %p188, %s16, 1
      %s190 = smul.addr %s189, 4
      %s191 = scalar_lea.vmem %s4, %s190
      %p192 = scmp.lt.s32.totalorder %s16, 1
      %s193 = scalar_select %p192, %s16, 1
      %s194 = smul.addr %s193, 8
      %s195 = scalar_lea.vmem %s0, %s194
      %p196 = scmp.lt.s32.totalorder %s16, 1
      %s197 = scalar_select %p196, %s16, 1
      %s198 = smul.addr %s197, 4
      %s199 = scalar_lea.vmem %s3, %s198
      %p200 = scmp.lt.s32.totalorder %s16, 1
      %s201 = scalar_select %p200, %s16, 1
      %s202 = smul.addr %s201, 4
      %s203 = scalar_lea.vmem %s4, %s202
      %v204 = vld [vmem:[%s195] sm:$0xff]
      %vm205 = vcmask 261120
      %v206 = vsel %vm205, %v204, 0.0
      %207 = vadd.xlane.f32.xlu0 %v206
      %v208 = vpop.xlane.xlu0 %207
      %v209 = vrcp.pop 32.0
      %v210 = vmul.f32 32.0, %v209
      %v211 = vsub.f32 1.0, %v210
      %v212 = vmul.f32 %v209, %v211
      %v213 = vadd.f32 %v209, %v212
      %vm214 = vweird.f32 %v209
      %v215 = vsel %vm214, %v209, %v213
      %v216 = vmul.f32 %v208, %v215
      %v217 = vsub.f32 %v204, %v216
      %v218 = vmul.f32 %v217, %v217
      %v219 = vsel %vm205, %v218, 0.0
      %220 = vadd.xlane.f32.xlu0 %v219
      %v221 = vpop.xlane.xlu0 %220
      %v222 = vmul.f32 %v221, %v215
      %v223 = vadd.f32 %v222, 1e-05
      %v224 = vrsqrt.pop %v223
      %v225 = vmul.f32 %v224, %v223
      %v226 = vmul.f32 %v225, %v224
      %v227 = vmul.f32 0.5, %v226
      %v228 = vsub.f32 1.5, %v227
      %v229 = vmul.f32 %v224, %v228
      %vm230 = vweird.f32 %v223
      %vm231 = vweird.f32 %v224
      %vm232 = vmor %vm230, %vm231
      %v233 = vsel %vm232, %v224, %v229
      %v234 = vmul.f32 %v217, %v233
      %v235 = vld [vmem:[%s1] sm:$0x1]
      %v237 = vperm.slane %v235, 0
      %v239 = vmul.f32 %v234, %v237
      %v240 = vld [vmem:[%s2] sm:$0x1]
      %v242 = vperm.slane %v240, 0
      %v244 = vadd.f32 %v239, %v242
      %v245 = vpack.c.bf16 %v244, %v244
      %vm246 = vcmask 257024
      %247 = vst.msk [vmem:[%s199] sm:$0xf] %vm246, %v245
      %v249 = vrot.slane %v244, 7
      %vm251 = vcmask 1040384
      %v252 = vsel %vm251, 0.0, %v249
      %v253 = vsub.f32 %v252, %v244
      %v254 = vpack.c.bf16 %v253, %v253
      %255 = vst.msk [vmem:[%s203] sm:$0xf] %vm246, %v254
      %p256 = scmp.lt.s32.totalorder %s16, 1
      %s257 = scalar_select %p256, %s16, 1
      %s258 = smul.addr %s257, 4
      %s259 = scalar_lea.vmem %s3, %s258
      %p260 = scmp.lt.s32.totalorder %s16, 1
      %s261 = scalar_select %p260, %s16, 1
      %s262 = smul.addr %s261, 4
      %s263 = scalar_lea.vmem %s4, %s262
      // Predicated region
      $region33: #{_lambda_.13} parent=31 // pred_check
        %p264 = pneg %p102
      $region34: #{_lambda_.13} parent=31 // pred_check_branch
        %266 = sbr.rel (%p264) target = $region36
      $region35: #{_lambda_.13} parent=31 // pred_region
        _
      $region36: #{_lambda_.13} parent=31 // pred_fallthru
        _
      // Predicated region
      $region37: #{_lambda_.13} parent=31 // pred_check
        %p267 = pneg %p128
      $region38: #{_lambda_.13} parent=31 // pred_check_branch
        %269 = sbr.rel (%p267) target = $region40
      $region39: #{_lambda_.13} parent=31 // pred_region
        _
      $region40: #{_lambda_.13} parent=31 // pred_fallthru
        _
    $region32: #{_lambda_.13} parent=5 // pred_fallthru
      _
    %p270 = scmp.le.s32.totalorder 2, %s11
    // Predicated region
    $region41: #{_lambda_.13} parent=5 // pred_check
      %p271 = pneg %p270
    $region42: #{_lambda_.13} parent=5 // pred_check_branch
      %273 = sbr.rel (%p271) target = $region44
    $region43: #{_lambda_.13} parent=5 // pred_region
      %s274 = ssub.s32 %s11, 2
      // Predicated region
      $region45: #{_lambda_.13} parent=43 // pred_check
        %p275 = pneg %p108
      $region46: #{_lambda_.13} parent=43 // pred_check_branch
        %277 = sbr.rel (%p275) target = $region48
      $region47: #{_lambda_.13} parent=43 // pred_region
        %p278 = scmp.lt.s32.totalorder %s17, 1
        %s279 = scalar_select %p278, %s17, 1
        %s280 = smul.addr %s279, 4
        %s281 = scalar_lea.vmem %s3, %s280
      $region48: #{_lambda_.13} parent=43 // pred_fallthru
        _
      // Predicated region
      $region49: #{_lambda_.13} parent=43 // pred_check
        %p282 = pneg %p134
      $region50: #{_lambda_.13} parent=43 // pred_check_branch
        %284 = sbr.rel (%p282) target = $region52
      $region51: #{_lambda_.13} parent=43 // pred_region
        %p285 = scmp.lt.s32.totalorder %s17, 1
        %s286 = scalar_select %p285, %s17, 1
        %s287 = smul.addr %s286, 4
        %s288 = scalar_lea.vmem %s4, %s287
      $region52: #{_lambda_.13} parent=43 // pred_fallthru
        _
    $region44: #{_lambda_.13} parent=5 // pred_fallthru
      _
  $region6: #{_lambda_.13} parent=0 // loop_footer
    %s15 = sadd.s32 1, %s11
  $region7: #{_lambda_.13} parent=0 // loop_footer_branch
    %10 = sbr.rel target = $region3
  $region8: #{_lambda_.13} parent=0 // loop_exit
    _

// kernel: _lambda_.14
$region0: #{_lambda_.14}
  #allocation0 [shape = 'u32[]', space=smem, size = 0x4, offset = 0x4, fixed_abs, tag = 'smem constant byte address 0x4 - core index']
  #allocation1 [shape = 'u32[72,128]{1,0:T(1,128)}', space=vmem, size = 0x9000, scoped, tag = 'internal scratch']
  #allocation2 [shape = 'bf16[16,32]{1,0:T(8,128)(2,1)}', space=vmem, size = 0x1000, scoped, tag = 'scratch operand']
  %s0 = inlined_call_operand.vmem [shape: bf16[16,32], index: 0, kind: input, shape index: {}]
  %s1 = inlined_call_operand.vmem [shape: bf16[16,32], index: 1, kind: input, shape index: {}]
  %s2 = inlined_call_operand.hbm [shape: bf16[3,32,64], index: 2, kind: input, shape index: {}]
  %s3 = inlined_call_operand.vmem [shape: bf16[3,64,32], index: 3, kind: input, shape index: {}]
  %s4 = inlined_call_operand.vmem [shape: f32[3,1,32], index: 4, kind: input, shape index: {}]
  %s5 = inlined_call_operand.vmem [shape: bf16[3,32,32], index: 5, kind: input, shape index: {}]
  %s6 = inlined_call_operand.vmem [shape: f32[16,8], index: 6, kind: input, shape index: {}]
  %s7 = inlined_call_operand.vmem [shape: f32[16,8], index: 7, kind: input, shape index: {}]
  %s8 = inlined_call_operand.vmem [shape: bf16[3,16,32], index: 8, kind: output, shape index: {}]
  %s9 = sld [smem:[#allocation0]]
  $region81: #{_lambda_.14} parent=0
    _
  %s11 = ssub.s32 1, %s9
  %s12 = scalar_select 0, %s11, %s9
  $region1: #{_lambda_.14} parent=0
    #allocation3 [shape = 'u8[16384]{0}', space=vmem, size = 0x4000, scoped, tag = 'input window, operand 2']
    #allocation4 [shape = 's32[2]{0}', space=sflag, size = 0x8, scoped, tag = 'scoped memory for _lambda_.14']
    %13 = vsyncpa [#allocation4], 0
    %s14 = scalar_lea.sflag [#allocation4], 1
    %15 = vsyncpa %s14, 0
    loop: start=0, step=1, limit=5
    $region2: #{_lambda_.14} parent=1 // loop_pre_header
      _
    $region3: #{_lambda_.14} parent=1 // loop_header
      %s17 = sphi 0, %s21
      %p18 = scmp.ge.s32.totalorder %s17, 5
      %s24 = sphi 0, %s43
      %s25 = sphi 0, %s39
      %s26 = sphi 0, %s35
      %s27 = sphi 0, %s24
      %s28 = sphi 0, %s25
      %s29 = sphi 0, %s26
      %s30 = sphi 0, %s27
      %s31 = sphi 0, %s28
      %s32 = sphi 0, %s29
      %s46 = sphi 0, %s48
      %s49 = sphi 0, %s46
      %s50 = sphi 0, %s49
      %s66 = sphi 0, %s50
      %s72 = sphi 0, %s74
      %s75 = sphi 0, %s72
      %s76 = sphi 0, %s75
      %s92 = sphi 0, %s76
      %s98 = sphi 0, %s100
      %s101 = sphi 0, %s98
      %s102 = sphi 0, %s101
      %s118 = sphi 0, %s102
      %s124 = sphi 0, %s126
      %s127 = sphi 0, %s124
      %s128 = sphi 0, %s127
      %s144 = sphi 0, %s128
      %s150 = sphi 0, %s152
      %s153 = sphi 0, %s150
      %s154 = sphi 0, %s153
      %s170 = sphi 0, %s154
      %s178 = sphi 0, %s180
      %s181 = sphi 0, %s178
      %s182 = sphi 0, %s181
      %s198 = sphi 0, %s182
      %s204 = sphi 0, %s206
      %s207 = sphi 0, %s204
      %s208 = sphi 0, %s207
      %s224 = sphi 0, %s208
      %s230 = sphi 0, %s232
      %s233 = sphi 0, %s230
      %s234 = sphi 0, %s233
      %s250 = sphi 0, %s234
      %s260 = sphi 0, %s262
      %s263 = sphi 0, %s260
      %s264 = sphi 0, %s263
      %s280 = sphi 0, %s264
    $region4: #{_lambda_.14} parent=1 // loop_header_branch
      %20 = sbr.rel (%p18) target = $region8
    $region5: #{_lambda_.14} parent=1 // loop_body
      %s22 = ssub.s32 %s17, 1
      %s23 = ssub.s32 %s17, 2
      %s33 = sadd.s32 1, %s26
      %p34 = scmp.ge.s32.totalorder %s33, 1
      %s35 = scalar_select %p34, 0, %s33
      %s36 = sadd.s32 1, %s25
      %s37 = scalar_select %p34, %s36, %s25
      %p38 = scmp.ge.s32.totalorder %s37, 3
      %s39 = scalar_select %p38, 0, %s37
      %s40 = sadd.s32 1, %s24
      %s41 = scalar_select %p38, %s40, %s24
      %p42 = scmp.ge.s32.totalorder %s41, 1
      %s43 = scalar_select %p42, 0, %s41
      %s44 = ssub.s32 %s24, %s43
      %p45 = scmp.eq.s32.totalorder %s44, 0
      %s47 = sadd.s32 %s46, 1
      %s48 = scalar_select %p45, %s46, %s47
      %p51 = pneg %p45
      %p52 = scmp.eq.s32.totalorder %s17, 2
      %p53 = por %p51, %p52
      %p54 = scmp.ne.s32.totalorder %s46, %s49
      %p55 = scmp.eq.s32.totalorder %s17, 0
      %p56 = por %p54, %p55
      %p57 = scmp.ne.s32.totalorder %s46, %s49
      %p58 = scmp.eq.s32.totalorder %s22, 2
      %p59 = por %p57, %p58
      %p60 = scmp.ne.s32.totalorder %s49, %s50
      %p61 = scmp.eq.s32.totalorder %s22, 0
      %p62 = por %p60, %p61
      %p63 = scmp.ne.s32.totalorder %s49, %s50
      %p64 = scmp.eq.s32.totalorder %s23, 2
      %p65 = por %p63, %p64
      %p67 = scmp.ne.s32.totalorder %s50, %s66
      %p68 = scmp.eq.s32.totalorder %s23, 0
      %p69 = por %p67, %p68
      %s70 = ssub.s32 %s24, %s43
      %p71 = scmp.eq.s32.totalorder %s70, 0
      %s73 = sadd.s32 %s72, 1
      %s74 = scalar_select %p71, %s72, %s73
      %p77 = pneg %p71
      %p78 = scmp.eq.s32.totalorder %s17, 2
      %p79 = por %p77, %p78
      %p80 = scmp.ne.s32.totalorder %s72, %s75
      %p81 = scmp.eq.s32.totalorder %s17, 0
      %p82 = por %p80, %p81
      %p83 = scmp.ne.s32.totalorder %s72, %s75
      %p84 = scmp.eq.s32.totalorder %s22, 2
      %p85 = por %p83, %p84
      %p86 = scmp.ne.s32.totalorder %s75, %s76
      %p87 = scmp.eq.s32.totalorder %s22, 0
      %p88 = por %p86, %p87
      %p89 = scmp.ne.s32.totalorder %s75, %s76
      %p90 = scmp.eq.s32.totalorder %s23, 2
      %p91 = por %p89, %p90
      %p93 = scmp.ne.s32.totalorder %s76, %s92
      %p94 = scmp.eq.s32.totalorder %s23, 0
      %p95 = por %p93, %p94
      %s96 = ssub.s32 %s25, %s39
      %p97 = scmp.eq.s32.totalorder %s96, 0
      %s99 = sadd.s32 %s98, 1
      %s100 = scalar_select %p97, %s98, %s99
      %p103 = pneg %p97
      %p104 = scmp.eq.s32.totalorder %s17, 2
      %p105 = por %p103, %p104
      %p106 = scmp.ne.s32.totalorder %s98, %s101
      %p107 = scmp.eq.s32.totalorder %s17, 0
      %p108 = por %p106, %p107
      %p109 = scmp.ne.s32.totalorder %s98, %s101
      %p110 = scmp.eq.s32.totalorder %s22, 2
      %p111 = por %p109, %p110
      %p112 = scmp.ne.s32.totalorder %s101, %s102
      %p113 = scmp.eq.s32.totalorder %s22, 0
      %p114 = por %p112, %p113
      %p115 = scmp.ne.s32.totalorder %s101, %s102
      %p116 = scmp.eq.s32.totalorder %s23, 2
      %p117 = por %p115, %p116
      %p119 = scmp.ne.s32.totalorder %s102, %s118
      %p120 = scmp.eq.s32.totalorder %s23, 0
      %p121 = por %p119, %p120
      %s122 = ssub.s32 %s25, %s39
      %p123 = scmp.eq.s32.totalorder %s122, 0
      %s125 = sadd.s32 %s124, 1
      %s126 = scalar_select %p123, %s124, %s125
      %p129 = pneg %p123
      %p130 = scmp.eq.s32.totalorder %s17, 2
      %p131 = por %p129, %p130
      %p132 = scmp.ne.s32.totalorder %s124, %s127
      %p133 = scmp.eq.s32.totalorder %s17, 0
      %p134 = por %p132, %p133
      %p135 = scmp.ne.s32.totalorder %s124, %s127
      %p136 = scmp.eq.s32.totalorder %s22, 2
      %p137 = por %p135, %p136
      %p138 = scmp.ne.s32.totalorder %s127, %s128
      %p139 = scmp.eq.s32.totalorder %s22, 0
      %p140 = por %p138, %p139
      %p141 = scmp.ne.s32.totalorder %s127, %s128
      %p142 = scmp.eq.s32.totalorder %s23, 2
      %p143 = por %p141, %p142
      %p145 = scmp.ne.s32.totalorder %s128, %s144
      %p146 = scmp.eq.s32.totalorder %s23, 0
      %p147 = por %p145, %p146
      %s148 = ssub.s32 %s25, %s39
      %p149 = scmp.eq.s32.totalorder %s148, 0
      %s151 = sadd.s32 %s150, 1
      %s152 = scalar_select %p149, %s150, %s151
      %p155 = pneg %p149
      %p156 = scmp.eq.s32.totalorder %s17, 2
      %p157 = por %p155, %p156
      %p158 = scmp.ne.s32.totalorder %s150, %s153
      %p159 = scmp.eq.s32.totalorder %s17, 0
      %p160 = por %p158, %p159
      %p161 = scmp.ne.s32.totalorder %s150, %s153
      %p162 = scmp.eq.s32.totalorder %s22, 2
      %p163 = por %p161, %p162
      %p164 = scmp.ne.s32.totalorder %s153, %s154
      %p165 = scmp.eq.s32.totalorder %s22, 0
      %p166 = por %p164, %p165
      %p167 = scmp.ne.s32.totalorder %s153, %s154
      %p168 = scmp.eq.s32.totalorder %s23, 2
      %p169 = por %p167, %p168
      %p171 = scmp.ne.s32.totalorder %s154, %s170
      %p172 = scmp.eq.s32.totalorder %s23, 0
      %p173 = por %p171, %p172
      %s174 = ssub.s32 %s25, %s39
      %s175 = ssub.s32 %s26, %s35
      %s176 = sor.u32 %s174, %s175
      %p177 = scmp.eq.s32.totalorder %s176, 0
      %s179 = sadd.s32 %s178, 1
      %s180 = scalar_select %p177, %s178, %s179
      %p183 = pneg %p177
      %p184 = scmp.eq.s32.totalorder %s17, 2
      %p185 = por %p183, %p184
      %p186 = scmp.ne.s32.totalorder %s178, %s181
      %p187 = scmp.eq.s32.totalorder %s17, 0
      %p188 = por %p186, %p187
      %p189 = scmp.ne.s32.totalorder %s178, %s181
      %p190 = scmp.eq.s32.totalorder %s22, 2
      %p191 = por %p189, %p190
      %p192 = scmp.ne.s32.totalorder %s181, %s182
      %p193 = scmp.eq.s32.totalorder %s22, 0
      %p194 = por %p192, %p193
      %p195 = scmp.ne.s32.totalorder %s181, %s182
      %p196 = scmp.eq.s32.totalorder %s23, 2
      %p197 = por %p195, %p196
      %p199 = scmp.ne.s32.totalorder %s182, %s198
      %p200 = scmp.eq.s32.totalorder %s23, 0
      %p201 = por %p199, %p200
      %s202 = ssub.s32 %s24, %s43
      %p203 = scmp.eq.s32.totalorder %s202, 0
      %s205 = sadd.s32 %s204, 1
      %s206 = scalar_select %p203, %s204, %s205
      %p209 = pneg %p203
      %p210 = scmp.eq.s32.totalorder %s17, 2
      %p211 = por %p209, %p210
      %p212 = scmp.ne.s32.totalorder %s204, %s207
      %p213 = scmp.eq.s32.totalorder %s17, 0
      %p214 = por %p212, %p213
      %p215 = scmp.ne.s32.totalorder %s204, %s207
      %p216 = scmp.eq.s32.totalorder %s22, 2
      %p217 = por %p215, %p216
      %p218 = scmp.ne.s32.totalorder %s207, %s208
      %p219 = scmp.eq.s32.totalorder %s22, 0
      %p220 = por %p218, %p219
      %p221 = scmp.ne.s32.totalorder %s207, %s208
      %p222 = scmp.eq.s32.totalorder %s23, 2
      %p223 = por %p221, %p222
      %p225 = scmp.ne.s32.totalorder %s208, %s224
      %p226 = scmp.eq.s32.totalorder %s23, 0
      %p227 = por %p225, %p226
      %s228 = ssub.s32 %s24, %s43
      %p229 = scmp.eq.s32.totalorder %s228, 0
      %s231 = sadd.s32 %s230, 1
      %s232 = scalar_select %p229, %s230, %s231
      %p235 = pneg %p229
      %p236 = scmp.eq.s32.totalorder %s17, 2
      %p237 = por %p235, %p236
      %p238 = scmp.ne.s32.totalorder %s230, %s233
      %p239 = scmp.eq.s32.totalorder %s17, 0
      %p240 = por %p238, %p239
      %p241 = scmp.ne.s32.totalorder %s230, %s233
      %p242 = scmp.eq.s32.totalorder %s22, 2
      %p243 = por %p241, %p242
      %p244 = scmp.ne.s32.totalorder %s233, %s234
      %p245 = scmp.eq.s32.totalorder %s22, 0
      %p246 = por %p244, %p245
      %p247 = scmp.ne.s32.totalorder %s233, %s234
      %p248 = scmp.eq.s32.totalorder %s23, 2
      %p249 = por %p247, %p248
      %p251 = scmp.ne.s32.totalorder %s234, %s250
      %p252 = scmp.eq.s32.totalorder %s23, 0
      %p253 = por %p251, %p252
      %s254 = ssub.s32 %s25, %s39
      %s255 = ssub.s32 %s24, %s43
      %s256 = sor.u32 %s254, %s255
      %s257 = ssub.s32 %s26, %s35
      %s258 = sor.u32 %s256, %s257
      %p259 = scmp.eq.s32.totalorder %s258, 0
      %s261 = sadd.s32 %s260, 1
      %s262 = scalar_select %p259, %s260, %s261
      %p265 = pneg %p259
      %p266 = scmp.eq.s32.totalorder %s17, 2
      %p267 = por %p265, %p266
      %p268 = scmp.ne.s32.totalorder %s260, %s263
      %p269 = scmp.eq.s32.totalorder %s17, 0
      %p270 = por %p268, %p269
      %p271 = scmp.ne.s32.totalorder %s260, %s263
      %p272 = scmp.eq.s32.totalorder %s22, 2
      %p273 = por %p271, %p272
      %p274 = scmp.ne.s32.totalorder %s263, %s264
      %p275 = scmp.eq.s32.totalorder %s22, 0
      %p276 = por %p274, %p275
      %p277 = scmp.ne.s32.totalorder %s263, %s264
      %p278 = scmp.eq.s32.totalorder %s23, 2
      %p279 = por %p277, %p278
      %p281 = scmp.ne.s32.totalorder %s264, %s280
      %p282 = scmp.eq.s32.totalorder %s23, 0
      %p283 = por %p281, %p282
      %p284 = scmp.le.s32.totalorder 1, %s17
      %p285 = scmp.lt.s32.totalorder %s17, 4
      %p286 = pnand %p284, %p285
      %p287 = pneg %p286
      // Predicated region
      $region9: #{_lambda_.14} parent=5 // pred_check
        _
      $region10: #{_lambda_.14} parent=5 // pred_check_branch
        %289 = sbr.rel (%p286) target = $region12
      $region11: #{_lambda_.14} parent=5 // pred_region
        %s290 = ssub.s32 %s17, 1
        // Predicated region
        $region13: #{_lambda_.14} parent=11 // pred_check
          %p291 = pneg %p62
        $region14: #{_lambda_.14} parent=11 // pred_check_branch
          %293 = sbr.rel (%p291) target = $region16
        $region15: #{_lambda_.14} parent=11 // pred_region
          %s294 = smul.u32 2, %s27
          %p295 = scmp.lt.s32.totalorder %s294, 1
          %s296 = scalar_select %p295, %s294, 1
          %s297 = smul.addr %s296, 4
          %s298 = scalar_lea.vmem %s0, %s297
          %s299 = smul.u32 2, %s27
        $region16: #{_lambda_.14} parent=11 // pred_fallthru
          _
        // Predicated region
        $region17: #{_lambda_.14} parent=11 // pred_check
          %p300 = pneg %p88
        $region18: #{_lambda_.14} parent=11 // pred_check_branch
          %302 = sbr.rel (%p300) target = $region20
        $region19: #{_lambda_.14} parent=11 // pred_region
          %s303 = smul.u32 2, %s27
          %p304 = scmp.lt.s32.totalorder %s303, 1
          %s305 = scalar_select %p304, %s303, 1
          %s306 = smul.addr %s305, 4
          %s307 = scalar_lea.vmem %s1, %s306
          %s308 = smul.u32 2, %s27
        $region20: #{_lambda_.14} parent=11 // pred_fallthru
          _
        // Predicated region
        $region21: #{_lambda_.14} parent=11 // pred_check
          %p309 = pneg %p220
        $region22: #{_lambda_.14} parent=11 // pred_check_branch
          %311 = sbr.rel (%p309) target = $region24
        $region23: #{_lambda_.14} parent=11 // pred_region
          %s312 = smul.u32 2, %s27
          %p313 = scmp.lt.s32.totalorder %s312, 1
          %s314 = scalar_select %p313, %s312, 1
          %s315 = smul.addr %s314, 8
          %s316 = scalar_lea.vmem %s6, %s315
          %s317 = smul.u32 2, %s27
        $region24: #{_lambda_.14} parent=11 // pred_fallthru
          _
        // Predicated region
        $region25: #{_lambda_.14} parent=11 // pred_check
          %p318 = pneg %p246
        $region26: #{_lambda_.14} parent=11 // pred_check_branch
          %320 = sbr.rel (%p318) target = $region28
        $region27: #{_lambda_.14} parent=11 // pred_region
          %s321 = smul.u32 2, %s27
          %p322 = scmp.lt.s32.totalorder %s321, 1
          %s323 = scalar_select %p322, %s321, 1
          %s324 = smul.addr %s323, 8
          %s325 = scalar_lea.vmem %s7, %s324
          %s326 = smul.u32 2, %s27
        $region28: #{_lambda_.14} parent=11 // pred_fallthru
          _
      $region12: #{_lambda_.14} parent=5 // pred_fallthru
        _
      %p327 = scmp.lt.s32.totalorder %s17, 3
      // Predicated region
      $region29: #{_lambda_.14} parent=5 // pred_check
        %p328 = pneg %p327
      $region30: #{_lambda_.14} parent=5 // pred_check_branch
        %330 = sbr.rel (%p328) target = $region32
      $region31: #{_lambda_.14} parent=5 // pred_region
        // Predicated region
        $region33: #{_lambda_.14} parent=31 // pred_check
          %p331 = pneg %p108
        $region34: #{_lambda_.14} parent=31 // pred_check_branch
          %333 = sbr.rel (%p331) target = $region36
        $region35: #{_lambda_.14} parent=31 // pred_region
          %s334 = sand.u32 %s98, 1
          %s335 = scalar_lea.sflag [#allocation4], %s334
          %s336 = sand.u32 %s98, 1
          %s337 = smul.addr %s336, 16
          %s338 = scalar_lea.vmem [#allocation3], %s337
          %340 = vsyncadd %s335, 0
          %s341 = smul.addr %s25, 4
          %s342 = smul.addr %s341, 4
          %s343 = scalar_lea.hbm %s2, %s342
          %s344 = sshll.u32 %s343, 4
          %s345 = int_to_ptr.hbm [resolvable:$true] %s344
          %s346 = sshll.u32 %s338, 4
          %s347 = int_to_ptr.vmem [resolvable:$true] %s346
          %352 = dma.hbm_to_vmem [thread:$0]  %s345, 256, %s347, %s335, 64, 64, 4
        $region36: #{_lambda_.14} parent=31 // pred_fallthru
          _
        // Predicated region
        $region37: #{_lambda_.14} parent=31 // pred_check
          %p353 = pneg %p134
        $region38: #{_lambda_.14} parent=31 // pred_check_branch
          %355 = sbr.rel (%p353) target = $region40
        $region39: #{_lambda_.14} parent=31 // pred_region
          %p356 = scmp.lt.s32.totalorder %s25, 2
          %s357 = scalar_select %p356, %s25, 2
          %s358 = smul.addr %s357, 8
          %s359 = smul.addr %s358, 4
          %s360 = scalar_lea.vmem %s3, %s359
        $region40: #{_lambda_.14} parent=31 // pred_fallthru
          _
        // Predicated region
        $region41: #{_lambda_.14} parent=31 // pred_check
          %p361 = pneg %p160
        $region42: #{_lambda_.14} parent=31 // pred_check_branch
          %363 = sbr.rel (%p361) target = $region44
        $region43: #{_lambda_.14} parent=31 // pred_region
          %p364 = scmp.lt.s32.totalorder %s25, 2
          %s365 = scalar_select %p364, %s25, 2
          %s366 = scalar_lea.vmem %s4, %s365
        $region44: #{_lambda_.14} parent=31 // pred_fallthru
          _
        // Predicated region
        $region45: #{_lambda_.14} parent=31 // pred_check
          %p367 = pneg %p188
        $region46: #{_lambda_.14} parent=31 // pred_check_branch
          %369 = sbr.rel (%p367) target = $region48
        $region47: #{_lambda_.14} parent=31 // pred_region
          %p370 = scmp.lt.s32.totalorder %s25, 2
          %s371 = scalar_select %p370, %s25, 2
          %p372 = scmp.lt.s32.totalorder %s26, 0
          %s373 = scalar_select %p372, %s26, 0
          %s374 = smul.addr %s371, 4
          %s375 = sadd.s32 %s373, %s374
          %s376 = smul.addr %s375, 4
          %s377 = scalar_lea.vmem %s5, %s376
        $region48: #{_lambda_.14} parent=31 // pred_fallthru
          _
      $region32: #{_lambda_.14} parent=5 // pred_fallthru
        _
      %p378 = scmp.le.s32.totalorder 1, %s17
      %p379 = scmp.lt.s32.totalorder %s17, 4
      %p380 = pnand %p378, %p379
      %p381 = pneg %p380
      // Predicated region
      $region49: #{_lambda_.14} parent=5 // pred_check
        _
      $region50: #{_lambda_.14} parent=5 // pred_check_branch
        %383 = sbr.rel (%p380) target = $region52
      $region51: #{_lambda_.14} parent=5 // pred_region
        %s384 = ssub.s32 %s17, 1
        %s385 = sand.u32 %s101, 1
        %s386 = scalar_lea.sflag [#allocation4], %s385
        %s387 = sand.u32 %s101, 1
        %s388 = smul.addr %s387, 16
        %s389 = scalar_lea.vmem [#allocation3], %s388
        // Predicated region
        $region53: #{_lambda_.14} parent=51 // pred_check
          %p390 = pneg %p114
        $region54: #{_lambda_.14} parent=51 // pred_check_branch
          %392 = sbr.rel (%p390) target = $region56
        $region55: #{_lambda_.14} parent=51 // pred_region
          %394 = dma.done %s386, 256
        $region56: #{_lambda_.14} parent=51 // pred_fallthru
          _
        %s395 = smul.u32 2, %s27
        %p396 = scmp.lt.s32.totalorder %s395, 1
        %s397 = scalar_select %p396, %s395, 1
        %s398 = smul.addr %s397, 4
        %s399 = scalar_lea.vmem %s0, %s398
        %p400 = pneg %p62
        %p401 = pneg %p59
        %s402 = smul.u32 2, %s27
        %p403 = scmp.lt.s32.totalorder %s402, 1
        %s404 = scalar_select %p403, %s402, 1
        %s405 = smul.addr %s404, 4
        %s406 = scalar_lea.vmem %s1, %s405
        %p407 = pneg %p88
        %p408 = pneg %p85
        %s409 = sand.u32 %s101, 1
        %s410 = scalar_lea.sflag [#allocation4], %s409
        %s411 = sand.u32 %s101, 1
        %s412 = smul.addr %s411, 16
        %s413 = scalar_lea.vmem [#allocation3], %s412
        %p414 = pneg %p114
        %p415 = pneg %p111
        %p416 = scmp.lt.s32.totalorder %s28, 2
        %s417 = scalar_select %p416, %s28, 2
        %s418 = smul.addr %s417, 8
        %s419 = smul.addr %s418, 4
        %s420 = scalar_lea.vmem %s3, %s419
        %p421 = pneg %p140
        %p422 = pneg %p137
        %p423 = scmp.lt.s32.totalorder %s28, 2
        %s424 = scalar_select %p423, %s28, 2
        %s425 = scalar_lea.vmem %s4, %s424
        %p426 = pneg %p166
        %p427 = pneg %p163
        %p428 = scmp.lt.s32.totalorder %s28, 2
        %s429 = scalar_select %p428, %s28, 2
        %p430 = scmp.lt.s32.totalorder %s29, 0
        %s431 = scalar_select %p430, %s29, 0
        %s432 = smul.addr %s429, 4
        %s433 = sadd.s32 %s431, %s432
        %s434 = smul.addr %s433, 4
        %s435 = scalar_lea.vmem %s5, %s434
        %p436 = pneg %p194
        %p437 = pneg %p191
        %s438 = smul.u32 2, %s27
        %p439 = scmp.lt.s32.totalorder %s438, 1
        %s440 = scalar_select %p439, %s438, 1
        %s441 = smul.addr %s440, 8
        %s442 = scalar_lea.vmem %s6, %s441
        %p443 = pneg %p220
        %p444 = pneg %p217
        %s445 = smul.u32 2, %s27
        %p446 = scmp.lt.s32.totalorder %s445, 1
        %s447 = scalar_select %p446, %s445, 1
        %s448 = smul.addr %s447, 8
        %s449 = scalar_lea.vmem %s7, %s448
        %p450 = pneg %p246
        %p451 = pneg %p243
        %p452 = pneg %p276
        %p453 = pneg %p273
        %s454 = smul.u32 2, %s27
        %p455 = scmp.lt.s32.totalorder %s28, 2
        %s456 = scalar_select %p455, %s28, 2
        %p457 = scmp.lt.s32.totalorder %s454, 1
        %s458 = scalar_select %p457, %s454, 1
        %p459 = scmp.lt.s32.totalorder %s29, 0
        %s460 = scalar_select %p459, %s29, 0
        %s461 = sadd.s32 %s460, %s458
        %s462 = smul.addr %s456, 2
        %s463 = sadd.s32 %s461, %s462
        %s464 = smul.addr %s463, 4
        %s465 = scalar_lea.vmem %s8, %s464
        %s466 = smul.u32 2, %s27
        %p467 = scmp.lt.s32.totalorder %s466, 1
        %s468 = scalar_select %p467, %s466, 1
        %s469 = smul.addr %s468, 4
        %s470 = scalar_lea.vmem %s0, %s469
        %s471 = smul.u32 2, %s27
        %s472 = smul.u32 2, %s27
        %p473 = scmp.lt.s32.totalorder %s472, 1
        %s474 = scalar_select %p473, %s472, 1
        %s475 = smul.addr %s474, 4
        %s476 = scalar_lea.vmem %s1, %s475
        %s477 = smul.u32 2, %s27
        %p478 = scmp.lt.s32.totalorder %s28, 2
        %s479 = scalar_select %p478, %s28, 2
        %s480 = smul.addr %s479, 8
        %s481 = smul.addr %s480, 4
        %s482 = scalar_lea.vmem %s3, %s481
        %p483 = scmp.lt.s32.totalorder %s28, 2
        %s484 = scalar_select %p483, %s28, 2
        %s485 = scalar_lea.vmem %s4, %s484
        %p486 = scmp.lt.s32.totalorder %s28, 2
        %s487 = scalar_select %p486, %s28, 2
        %p488 = scmp.lt.s32.totalorder %s29, 0
        %s489 = scalar_select %p488, %s29, 0
        %s490 = smul.addr %s487, 4
        %s491 = sadd.s32 %s489, %s490
        %s492 = smul.addr %s491, 4
        %s493 = scalar_lea.vmem %s5, %s492
        %s494 = smul.u32 2, %s27
        %p495 = scmp.lt.s32.totalorder %s494, 1
        %s496 = scalar_select %p495, %s494, 1
        %s497 = smul.addr %s496, 8
        %s498 = scalar_lea.vmem %s6, %s497
        %s499 = smul.u32 2, %s27
        %s500 = smul.u32 2, %s27
        %p501 = scmp.lt.s32.totalorder %s500, 1
        %s502 = scalar_select %p501, %s500, 1
        %s503 = smul.addr %s502, 8
        %s504 = scalar_lea.vmem %s7, %s503
        %s505 = smul.u32 2, %s27
        %s506 = smul.u32 2, %s27
        %p507 = scmp.lt.s32.totalorder %s28, 2
        %s508 = scalar_select %p507, %s28, 2
        %p509 = scmp.lt.s32.totalorder %s506, 1
        %s510 = scalar_select %p509, %s506, 1
        %p511 = scmp.lt.s32.totalorder %s29, 0
        %s512 = scalar_select %p511, %s29, 0
        %s513 = sadd.s32 %s512, %s510
        %s514 = smul.addr %s508, 2
        %s515 = sadd.s32 %s513, %s514
        %s516 = smul.addr %s515, 4
        %s517 = scalar_lea.vmem %s8, %s516
        %s518 = smul.u32 2, %s27
        %p520 = scmp.eq.s32.totalorder %s29, 0
        // Predicated region
        $region57: #{_lambda_.14} parent=51 // pred_check
          %p521 = pneg %p520
        $region58: #{_lambda_.14} parent=51 // pred_check_branch
          %523 = sbr.rel (%p521) target = $region60
        $region59: #{_lambda_.14} parent=51 // pred_region
          %v524 = vld [vmem:[%s470] sm:$0xf]
          %v525 = vld [vmem:[%s470 + $0x4] sm:$0xf]
          %v526 = vunpack.c.l.bf16 %v524
          %v527 = vunpack.c.l.bf16 %v525
          %v528 = vld [vmem:[%s476] sm:$0xf]
          %v529 = vld [vmem:[%s476 + $0x4] sm:$0xf]
          %v530 = vunpack.c.l.bf16 %v528
          %v531 = vunpack.c.l.bf16 %v529
          %v532 = vld [vmem:[%s389] sm:$0xf]
          %v533 = vld [vmem:[%s389 + $0x4] sm:$0xf]
          %v534 = vld [vmem:[%s389 + $0x8] sm:$0xf]
          %v535 = vld [vmem:[%s389 + $0xc] sm:$0xf]
          %v538 = vunpack.c.l.b16 %v524
          %v539 = vunpack.c.l.b16 %v525
          %v540 = vpack.c.b16 %v539, %v538
          %v545 = vunpack.c.l.b16 %v532
          %v546 = vunpack.c.l.b16 %v533
          %v547 = vunpack.c.l.b16 %v534
          %v548 = vunpack.c.l.b16 %v535
          %v549 = vpack.c.b16 %v546, %v545
          %v550 = vpack.c.b16 %v548, %v547
          %vm553 = vcmask 261120
          %v555 = vsel %vm553, %v540, 0
          %557 = vmatpush.bf16.msra.mxu0 0
          %558 = vmatpush.bf16.msra.mxu0 0
          %559 = vmatpush.bf16.msra.mxu0 0
          %560 = vmatpush.bf16.msra.mxu0 0
          %561 = vmatpush.bf16.msra.mxu0 0
          %562 = vmatpush.bf16.msra.mxu0 0
          %563 = vmatpush.bf16.msra.mxu0 %v550
          %564 = vmatpush.bf16.msra.mxu0 %v549
          %565 = vmatmul.bf16.gmra.mxu0 %v555
          %v566 = vpop.f32.mrf.mxu0
          %v567 = vadd.f32 0.0, %v566
          %v568 = vpop.f32.mrf.mxu0
          %v569 = vadd.f32 0.0, %v568
          %570 = vdwg.mxu0
          %v571 = vtanh.pop %v567
          %v572 = vtanh.pop %v569
          %v573 = vpack.c.bf16 %v572, %v571
          %v574 = vld [vmem:[%s482] sm:$0xf]
          %v575 = vld [vmem:[%s482 + $0x4] sm:$0xf]
          %v576 = vld [vmem:[%s482 + $0x8] sm:$0xf]
          %v577 = vld [vmem:[%s482 + $0xc] sm:$0xf]
          %v578 = vld [vmem:[%s482 + $0x10] sm:$0xf]
          %v579 = vld [vmem:[%s482 + $0x14] sm:$0xf]
          %v580 = vld [vmem:[%s482 + $0x18] sm:$0xf]
          %v581 = vld [vmem:[%s482 + $0x1c] sm:$0xf]
          %v582 = vld [vmem:[%s485] sm:$0x1]
          %v584 = vperm.slane %v582, 0
          %v594 = vunpack.c.l.b16 %v574
          %v595 = vunpack.c.l.b16 %v575
          %v596 = vunpack.c.l.b16 %v576
          %v597 = vunpack.c.l.b16 %v577
          %v598 = vunpack.c.l.b16 %v578
          %v599 = vunpack.c.l.b16 %v579
          %v600 = vunpack.c.l.b16 %v580
          %v601 = vunpack.c.l.b16 %v581
          %v602 = vpack.c.b16 %v595, %v594
          %v603 = vpack.c.b16 %v597, %v596
          %v604 = vpack.c.b16 %v599, %v598
          %v605 = vpack.c.b16 %v601, %v600
          %vm610 = vcmask 523264
          %v612 = vsel %vm610, %v573, 0
          %614 = vmatpush.bf16.msra.mxu0 0
          %615 = vmatpush.bf16.msra.mxu0 0
          %616 = vmatpush.bf16.msra.mxu0 0
          %617 = vmatpush.bf16.msra.mxu0 0
          %618 = vmatpush.bf16.msra.mxu0 %v605
          %619 = vmatpush.bf16.msra.mxu0 %v604
          %620 = vmatpush.bf16.msra.mxu0 %v603
          %621 = vmatpush.bf16.msra.mxu0 %v602
          %622 = vmatmul.bf16.gmra.mxu0 %v612
          %v623 = vpop.f32.mrf.mxu0
          %v624 = vadd.f32 %v584, %v623
          %v625 = vpop.f32.mrf.mxu0
          %v626 = vadd.f32 %v584, %v625
          %627 = vdwg.mxu0
          %v628 = vmul.f32 %v530, %v624
          %v629 = vmul.f32 %v531, %v626
          %v630 = vadd.f32 %v526, %v628
          %v631 = vadd.f32 %v527, %v629
          %v632 = vpack.c.bf16 %v630, %v630
          %v633 = vpack.c.bf16 %v631, %v631
          %vm634 = vcmask 257024
          %635 = vst.msk [vmem:[#allocation2] sm:$0xf] %vm634, %v632
          %636 = vst.msk [vmem:[#allocation2 + $0x4] sm:$0xf] %vm634, %v633
        $region60: #{_lambda_.14} parent=51 // pred_fallthru
          _
        %v637 = vld [vmem:[#allocation2] sm:$0xf]
        %v638 = vld [vmem:[#allocation2 + $0x4] sm:$0xf]
        %v639 = vld [vmem:[%s493] sm:$0xf]
        %v640 = vld [vmem:[%s493 + $0x4] sm:$0xf]
        %v641 = vld [vmem:[%s493 + $0x8] sm:$0xf]
        %v642 = vld [vmem:[%s493 + $0xc] sm:$0xf]
        %v645 = vunpack.c.l.b16 %v637
        %v646 = vunpack.c.l.b16 %v638
        %v647 = vpack.c.b16 %v646, %v645
        %v652 = vunpack.c.l.b16 %v639
        %v653 = vunpack.c.l.b16 %v640
        %v654 = vunpack.c.l.b16 %v641
        %v655 = vunpack.c.l.b16 %v642
        %v656 = vpack.c.b16 %v653, %v652
        %v657 = vpack.c.b16 %v655, %v654
        %vm660 = vcmask 261120
        %v662 = vsel %vm660, %v647, 0
        %664 = vmatpush.bf16.msra.mxu0 0
        %665 = vmatpush.bf16.msra.mxu0 0
        %666 = vmatpush.bf16.msra.mxu0 0
        %667 = vmatpush.bf16.msra.mxu0 0
        %668 = vmatpush.bf16.msra.mxu0 0
        %669 = vmatpush.bf16.msra.mxu0 0
        %670 = vmatpush.bf16.msra.mxu0 %v657
        %671 = vmatpush.bf16.msra.mxu0 %v656
        %672 = vmatmul.bf16.gmra.mxu0 %v662
        %v673 = vpop.f32.mrf.mxu0
        %v674 = vadd.f32 0.0, %v673
        %v675 = vpop.f32.mrf.mxu0
        %v676 = vadd.f32 0.0, %v675
        %677 = vdwg.mxu0
        %p678 = scmp.lt.s32.totalorder %s28, 2
        // Predicated region
        $region61: #{_lambda_.14} parent=51 // pred_check
          %p679 = pneg %p678
        $region62: #{_lambda_.14} parent=51 // pred_check_branch
          %681 = sbr.rel (%p679) target = $region64
        $region63: #{_lambda_.14} parent=51 // pred_region
          %v682 = vld [vmem:[%s498] sm:$0xff]
          %v683 = vld [vmem:[%s498 + $0x8] sm:$0xff]
          %v684 = vld [vmem:[%s504] sm:$0xff]
          %v685 = vld [vmem:[%s504 + $0x8] sm:$0xff]
          %688 = vrot.lane.b32.xlu0 %v682, 8
          %v689 = vpop.permute.xlu0 %688
          %690 = vrot.lane.b32.xlu0 %v683, 8
          %v691 = vpop.permute.xlu0 %690
          %694 = vrot.lane.b32.xlu0 %v682, 16
          %v695 = vpop.permute.xlu0 %694
          %696 = vrot.lane.b32.xlu0 %v683, 16
          %v697 = vpop.permute.xlu0 %696
          %700 = vrot.lane.b32.xlu0 %v682, 24
          %v701 = vpop.permute.xlu0 %700
          %702 = vrot.lane.b32.xlu0 %v683, 24
          %v703 = vpop.permute.xlu0 %702
          %vm706 = vcmask 64512
          %v707 = vsel %vm706, %v682, %v689
          %v708 = vsel %vm706, %v683, %v691
          %vm709 = vcmask 130048
          %v710 = vsel %vm709, %v707, %v695
          %v711 = vsel %vm709, %v708, %v697
          %vm712 = vcmask 195584
          %v713 = vsel %vm712, %v710, %v701
          %v714 = vsel %vm712, %v711, %v703
          %717 = vrot.lane.b32.xlu0 %v684, 8
          %v718 = vpop.permute.xlu0 %717
          %719 = vrot.lane.b32.xlu0 %v685, 8
          %v720 = vpop.permute.xlu0 %719
          %723 = vrot.lane.b32.xlu0 %v684, 16
          %v724 = vpop.permute.xlu0 %723
          %725 = vrot.lane.b32.xlu0 %v685, 16
          %v726 = vpop.permute.xlu0 %725
          %729 = vrot.lane.b32.xlu0 %v684, 24
          %v730 = vpop.permute.xlu0 %729
          %731 = vrot.lane.b32.xlu0 %v685, 24
          %v732 = vpop.permute.xlu0 %731
          %v735 = vsel %vm706, %v684, %v718
          %v736 = vsel %vm706, %v685, %v720
          %v737 = vsel %vm709, %v735, %v724
          %v738 = vsel %vm709, %v736, %v726
          %v739 = vsel %vm712, %v737, %v730
          %v740 = vsel %vm712, %v738, %v732
          %743 = vrot.lane.b32.xlu0 %v674, 124
          %v744 = vpop.permute.xlu0 %743
          %745 = vrot.lane.b32.xlu0 %v676, 124
          %v746 = vpop.permute.xlu0 %745
          %749 = vrot.lane.b32.xlu0 %v674, 4
          %v750 = vpop.permute.xlu0 %749
          %751 = vrot.lane.b32.xlu0 %v676, 4
          %v752 = vpop.permute.xlu0 %751
          %vm755 = vcmask 31744
          %v756 = vsel %vm755, %v744, %v750
          %v757 = vsel %vm755, %v746, %v752
          %v758 = vsel %vm706, %v756, %v744
          %v759 = vsel %vm706, %v757, %v746
          %vm760 = vcmask 97280
          %v761 = vsel %vm760, %v758, %v750
          %v762 = vsel %vm760, %v759, %v752
          %v763 = vsel %vm709, %v761, %v744
          %v764 = vsel %vm709, %v762, %v746
          %vm765 = vcmask 162816
          %v766 = vsel %vm765, %v763, %v750
          %v767 = vsel %vm765, %v764, %v752
          %v768 = vsel %vm712, %v766, %v744
          %v769 = vsel %vm712, %v767, %v746
          %vm770 = vcmask 228352
          %v771 = vsel %vm770, %v768, %v750
          %v772 = vsel %vm770, %v769, %v752
          %v773 = vmul.f32 %v674, %v713
          %v774 = vmul.f32 %v676, %v714
          %v775 = vmul.f32 %v771, %v739
          %v776 = vmul.f32 %v772, %v740
          %v777 = vadd.f32 %v773, %v775
          %v778 = vadd.f32 %v774, %v776
          %p779 = scmp.eq.s32.totalorder %s28, 0
          %s780 = scalar_select %p779, 0.35355338, 1.0
          %v781 = vstv %s780
          %v782 = vmul.f32 %v777, %v781
          %v783 = vmul.f32 %v778, %v781
          %v784 = vpack.c.bf16 %v782, %v782
          %v785 = vpack.c.bf16 %v783, %v783
          %vm786 = vcmask 257024
          %787 = vst.msk [vmem:[%s517] sm:$0xf] %vm786, %v784
          %788 = vst.msk [vmem:[%s517 + $0x4] sm:$0xf] %vm786, %v785
        $region64: #{_lambda_.14} parent=51 // pred_fallthru
          _
        %p789 = scmp.eq.s32.totalorder %s28, 2
        // Predicated region
        $region65: #{_lambda_.14} parent=51 // pred_check
          %p790 = pneg %p789
        $region66: #{_lambda_.14} parent=51 // pred_check_branch
          %792 = sbr.rel (%p790) target = $region68
        $region67: #{_lambda_.14} parent=51 // pred_region
          %v793 = vpack.c.bf16 %v674, %v674
          %v794 = vpack.c.bf16 %v676, %v676
          %vm795 = vcmask 257024
          %796 = vst.msk [vmem:[%s517] sm:$0xf] %vm795, %v793
          %797 = vst.msk [vmem:[%s517 + $0x4] sm:$0xf] %vm795, %v794
        $region68: #{_lambda_.14} parent=51 // pred_fallthru
          _
        %s798 = smul.u32 2, %s27
        %p799 = scmp.lt.s32.totalorder %s28, 2
        %s800 = scalar_select %p799, %s28, 2
        %p801 = scmp.lt.s32.totalorder %s798, 1
        %s802 = scalar_select %p801, %s798, 1
        %p803 = scmp.lt.s32.totalorder %s29, 0
        %s804 = scalar_select %p803, %s29, 0
        %s805 = sadd.s32 %s804, %s802
        %s806 = smul.addr %s800, 2
        %s807 = sadd.s32 %s805, %s806
        %s808 = smul.addr %s807, 4
        %s809 = scalar_lea.vmem %s8, %s808
        // Predicated region
        $region69: #{_lambda_.14} parent=51 // pred_check
          %p810 = pneg %p273
        $region70: #{_lambda_.14} parent=51 // pred_check_branch
          %812 = sbr.rel (%p810) target = $region72
        $region71: #{_lambda_.14} parent=51 // pred_region
          %s813 = smul.u32 2, %s27
        $region72: #{_lambda_.14} parent=51 // pred_fallthru
          _
      $region52: #{_lambda_.14} parent=5 // pred_fallthru
        _
      %p814 = scmp.le.s32.totalorder 2, %s17
      // Predicated region
      $region73: #{_lambda_.14} parent=5 // pred_check
        %p815 = pneg %p814
      $region74: #{_lambda_.14} parent=5 // pred_check_branch
        %817 = sbr.rel (%p815) target = $region76
      $region75: #{_lambda_.14} parent=5 // pred_region
        %s818 = ssub.s32 %s17, 2
        // Predicated region
        $region77: #{_lambda_.14} parent=75 // pred_check
          %p819 = pneg %p279
        $region78: #{_lambda_.14} parent=75 // pred_check_branch
          %821 = sbr.rel (%p819) target = $region80
        $region79: #{_lambda_.14} parent=75 // pred_region
          %s822 = smul.u32 2, %s30
          %p823 = scmp.lt.s32.totalorder %s31, 2
          %s824 = scalar_select %p823, %s31, 2
          %p825 = scmp.lt.s32.totalorder %s822, 1
          %s826 = scalar_select %p825, %s822, 1
          %p827 = scmp.lt.s32.totalorder %s32, 0
          %s828 = scalar_select %p827, %s32, 0
          %s829 = sadd.s32 %s828, %s826
          %s830 = smul.addr %s824, 2
          %s831 = sadd.s32 %s829, %s830
          %s832 = smul.addr %s831, 4
          %s833 = scalar_lea.vmem %s8, %s832
        $region80: #{_lambda_.14} parent=75 // pred_fallthru
          _
      $region76: #{_lambda_.14} parent=5 // pred_fallthru
        _
    $region6: #{_lambda_.14} parent=1 // loop_footer
      %s21 = sadd.s32 1, %s17
    $region7: #{_lambda_.14} parent=1 // loop_footer_branch
      %16 = sbr.rel target = $region3
    $region8: #{_lambda_.14} parent=1 // loop_exit
      _
    %834 = vsyncpa [#allocation4], 1
    %s835 = scalar_lea.sflag [#allocation4], 1
    %836 = vsyncpa %s835, 1

// kernel: _lambda_.15
$region0: #{_lambda_.15}
  #allocation0 [shape = 'u32[]', space=smem, size = 0x4, offset = 0x4, fixed_abs, tag = 'smem constant byte address 0x4 - core index']
  #allocation1 [shape = 'u32[72,128]{1,0:T(1,128)}', space=vmem, size = 0x9000, scoped, tag = 'internal scratch']
  #allocation2 [shape = 'f32[8,1]{1,0:T(8,128)}', space=vmem, size = 0x1000, scoped, tag = 'scratch operand']
  #allocation3 [shape = 'f32[8,1]{1,0:T(8,128)}', space=vmem, size = 0x1000, scoped, tag = 'scratch operand']
  #allocation4 [shape = 'f32[8,8]{1,0:T(8,128)}', space=vmem, size = 0x1000, scoped, tag = 'scratch operand']
  %s0 = inlined_call_operand.vmem [shape: bf16[8,8,8], index: 0, kind: input, shape index: {}]
  %s1 = inlined_call_operand.vmem [shape: bf16[8,8,8], index: 1, kind: input, shape index: {}]
  %s2 = inlined_call_operand.vmem [shape: bf16[8,8,8], index: 2, kind: input, shape index: {}]
  %s3 = inlined_call_operand.vmem [shape: bf16[8,8,8], index: 3, kind: output, shape index: {}]
  %s4 = sld [smem:[#allocation0]]
  $region57: #{_lambda_.15} parent=0
    _
  %s6 = ssub.s32 1, %s4
  %s7 = scalar_select 0, %s6, %s4
  loop: start=0, step=1, limit=10
  $region2: #{_lambda_.15} parent=0 // loop_pre_header
    _
  $region3: #{_lambda_.15} parent=0 // loop_header
    %s9 = sphi 0, %s13
    %p10 = scmp.ge.s32.totalorder %s9, 10
    %s16 = sphi 0, %s35
    %s17 = sphi 0, %s31
    %s18 = sphi 0, %s27
    %s19 = sphi 0, %s16
    %s20 = sphi 0, %s17
    %s21 = sphi 0, %s18
    %s22 = sphi 0, %s19
    %s23 = sphi 0, %s20
    %s24 = sphi 0, %s21
    %s40 = sphi 0, %s42
    %s43 = sphi 0, %s40
    %s44 = sphi 0, %s43
    %s60 = sphi 0, %s44
    %s72 = sphi 0, %s74
    %s75 = sphi 0, %s72
    %s76 = sphi 0, %s75
    %s92 = sphi 0, %s76
    %s104 = sphi 0, %s106
    %s107 = sphi 0, %s104
    %s108 = sphi 0, %s107
    %s124 = sphi 0, %s108
    %s132 = sphi 0, %s134
    %s135 = sphi 0, %s132
    %s136 = sphi 0, %s135
    %s152 = sphi 0, %s136
  $region4: #{_lambda_.15} parent=0 // loop_header_branch
    %12 = sbr.rel (%p10) target = $region8
  $region5: #{_lambda_.15} parent=0 // loop_body
    %s14 = ssub.s32 %s9, 1
    %s15 = ssub.s32 %s9, 2
    %s25 = sadd.s32 1, %s18
    %p26 = scmp.ge.s32.totalorder %s25, 1
    %s27 = scalar_select %p26, 0, %s25
    %s28 = sadd.s32 1, %s17
    %s29 = scalar_select %p26, %s28, %s17
    %p30 = scmp.ge.s32.totalorder %s29, 1
    %s31 = scalar_select %p30, 0, %s29
    %s32 = sadd.s32 1, %s16
    %s33 = scalar_select %p30, %s32, %s16
    %p34 = scmp.ge.s32.totalorder %s33, 8
    %s35 = scalar_select %p34, 0, %s33
    %s36 = ssub.s32 %s16, %s35
    %s37 = ssub.s32 %s17, %s31
    %s38 = sor.u32 %s36, %s37
    %p39 = scmp.eq.s32.totalorder %s38, 0
    %s41 = sadd.s32 %s40, 1
    %s42 = scalar_select %p39, %s40, %s41
    %p45 = pneg %p39
    %p46 = scmp.eq.s32.totalorder %s9, 7
    %p47 = por %p45, %p46
    %p48 = scmp.ne.s32.totalorder %s40, %s43
    %p49 = scmp.eq.s32.totalorder %s9, 0
    %p50 = por %p48, %p49
    %p51 = scmp.ne.s32.totalorder %s40, %s43
    %p52 = scmp.eq.s32.totalorder %s14, 7
    %p53 = por %p51, %p52
    %p54 = scmp.ne.s32.totalorder %s43, %s44
    %p55 = scmp.eq.s32.totalorder %s14, 0
    %p56 = por %p54, %p55
    %p57 = scmp.ne.s32.totalorder %s43, %s44
    %p58 = scmp.eq.s32.totalorder %s15, 7
    %p59 = por %p57, %p58
    %p61 = scmp.ne.s32.totalorder %s44, %s60
    %p62 = scmp.eq.s32.totalorder %s15, 0
    %p63 = por %p61, %p62
    %p64 = scmp.lt.s32.totalorder %s18, %s17
    %s65 = scalar_select %p64, %s18, %s17
    %p66 = scmp.lt.s32.totalorder %s27, %s31
    %s67 = scalar_select %p66, %s27, %s31
    %s68 = ssub.s32 %s16, %s35
    %s69 = ssub.s32 %s65, %s67
    %s70 = sor.u32 %s68, %s69
    %p71 = scmp.eq.s32.totalorder %s70, 0
    %s73 = sadd.s32 %s72, 1
    %s74 = scalar_select %p71, %s72, %s73
    %p77 = pneg %p71
    %p78 = scmp.eq.s32.totalorder %s9, 7
    %p79 = por %p77, %p78
    %p80 = scmp.ne.s32.totalorder %s72, %s75
    %p81 = scmp.eq.s32.totalorder %s9, 0
    %p82 = por %p80, %p81
    %p83 = scmp.ne.s32.totalorder %s72, %s75
    %p84 = scmp.eq.s32.totalorder %s14, 7
    %p85 = por %p83, %p84
    %p86 = scmp.ne.s32.totalorder %s75, %s76
    %p87 = scmp.eq.s32.totalorder %s14, 0
    %p88 = por %p86, %p87
    %p89 = scmp.ne.s32.totalorder %s75, %s76
    %p90 = scmp.eq.s32.totalorder %s15, 7
    %p91 = por %p89, %p90
    %p93 = scmp.ne.s32.totalorder %s76, %s92
    %p94 = scmp.eq.s32.totalorder %s15, 0
    %p95 = por %p93, %p94
    %p96 = scmp.lt.s32.totalorder %s18, %s17
    %s97 = scalar_select %p96, %s18, %s17
    %p98 = scmp.lt.s32.totalorder %s27, %s31
    %s99 = scalar_select %p98, %s27, %s31
    %s100 = ssub.s32 %s16, %s35
    %s101 = ssub.s32 %s97, %s99
    %s102 = sor.u32 %s100, %s101
    %p103 = scmp.eq.s32.totalorder %s102, 0
    %s105 = sadd.s32 %s104, 1
    %s106 = scalar_select %p103, %s104, %s105
    %p109 = pneg %p103
    %p110 = scmp.eq.s32.totalorder %s9, 7
    %p111 = por %p109, %p110
    %p112 = scmp.ne.s32.totalorder %s104, %s107
    %p113 = scmp.eq.s32.totalorder %s9, 0
    %p114 = por %p112, %p113
    %p115 = scmp.ne.s32.totalorder %s104, %s107
    %p116 = scmp.eq.s32.totalorder %s14, 7
    %p117 = por %p115, %p116
    %p118 = scmp.ne.s32.totalorder %s107, %s108
    %p119 = scmp.eq.s32.totalorder %s14, 0
    %p120 = por %p118, %p119
    %p121 = scmp.ne.s32.totalorder %s107, %s108
    %p122 = scmp.eq.s32.totalorder %s15, 7
    %p123 = por %p121, %p122
    %p125 = scmp.ne.s32.totalorder %s108, %s124
    %p126 = scmp.eq.s32.totalorder %s15, 0
    %p127 = por %p125, %p126
    %s128 = ssub.s32 %s16, %s35
    %s129 = ssub.s32 %s17, %s31
    %s130 = sor.u32 %s128, %s129
    %p131 = scmp.eq.s32.totalorder %s130, 0
    %s133 = sadd.s32 %s132, 1
    %s134 = scalar_select %p131, %s132, %s133
    %p137 = pneg %p131
    %p138 = scmp.eq.s32.totalorder %s9, 7
    %p139 = por %p137, %p138
    %p140 = scmp.ne.s32.totalorder %s132, %s135
    %p141 = scmp.eq.s32.totalorder %s9, 0
    %p142 = por %p140, %p141
    %p143 = scmp.ne.s32.totalorder %s132, %s135
    %p144 = scmp.eq.s32.totalorder %s14, 7
    %p145 = por %p143, %p144
    %p146 = scmp.ne.s32.totalorder %s135, %s136
    %p147 = scmp.eq.s32.totalorder %s14, 0
    %p148 = por %p146, %p147
    %p149 = scmp.ne.s32.totalorder %s135, %s136
    %p150 = scmp.eq.s32.totalorder %s15, 7
    %p151 = por %p149, %p150
    %p153 = scmp.ne.s32.totalorder %s136, %s152
    %p154 = scmp.eq.s32.totalorder %s15, 0
    %p155 = por %p153, %p154
    %p156 = scmp.le.s32.totalorder 1, %s9
    %p157 = scmp.lt.s32.totalorder %s9, 9
    %p158 = pnand %p156, %p157
    %p159 = pneg %p158
    // Predicated region
    $region9: #{_lambda_.15} parent=5 // pred_check
      _
    $region10: #{_lambda_.15} parent=5 // pred_check_branch
      %161 = sbr.rel (%p158) target = $region12
    $region11: #{_lambda_.15} parent=5 // pred_region
      %s162 = ssub.s32 %s9, 1
    $region12: #{_lambda_.15} parent=5 // pred_fallthru
      _
    %p163 = scmp.lt.s32.totalorder %s9, 8
    // Predicated region
    $region13: #{_lambda_.15} parent=5 // pred_check
      %p164 = pneg %p163
    $region14: #{_lambda_.15} parent=5 // pred_check_branch
      %166 = sbr.rel (%p164) target = $region16
    $region15: #{_lambda_.15} parent=5 // pred_region
      // Predicated region
      $region17: #{_lambda_.15} parent=15 // pred_check
        %p167 = pneg %p50
      $region18: #{_lambda_.15} parent=15 // pred_check_branch
        %169 = sbr.rel (%p167) target = $region20
      $region19: #{_lambda_.15} parent=15 // pred_region
        %p170 = scmp.lt.s32.totalorder %s16, 7
        %s171 = scalar_select %p170, %s16, 7
        %p172 = scmp.lt.s32.totalorder %s17, 0
        %s173 = scalar_select %p172, %s17, 0
        %s174 = sadd.s32 %s173, %s171
        %s175 = smul.addr %s174, 4
        %s176 = scalar_lea.vmem %s0, %s175
      $region20: #{_lambda_.15} parent=15 // pred_fallthru
        _
      // Predicated region
      $region21: #{_lambda_.15} parent=15 // pred_check
        %p177 = pneg %p82
      $region22: #{_lambda_.15} parent=15 // pred_check_branch
        %179 = sbr.rel (%p177) target = $region24
      $region23: #{_lambda_.15} parent=15 // pred_region
        %p180 = scmp.lt.s32.totalorder %s18, %s17
        %s181 = scalar_select %p180, %s18, %s17
        %p182 = scmp.lt.s32.totalorder %s16, 7
        %s183 = scalar_select %p182, %s16, 7
        %p184 = scmp.lt.s32.totalorder %s181, 0
        %s185 = scalar_select %p184, %s181, 0
        %s186 = sadd.s32 %s185, %s183
        %s187 = smul.addr %s186, 4
        %s188 = scalar_lea.vmem %s1, %s187
        %p189 = scmp.lt.s32.totalorder %s18, %s17
        %s190 = scalar_select %p189, %s18, %s17
      $region24: #{_lambda_.15} parent=15 // pred_fallthru
        _
      // Predicated region
      $region25: #{_lambda_.15} parent=15 // pred_check
        %p191 = pneg %p114
      $region26: #{_lambda_.15} parent=15 // pred_check_branch
        %193 = sbr.rel (%p191) target = $region28
      $region27: #{_lambda_.15} parent=15 // pred_region
        %p194 = scmp.lt.s32.totalorder %s18, %s17
        %s195 = scalar_select %p194, %s18, %s17
        %p196 = scmp.lt.s32.totalorder %s16, 7
        %s197 = scalar_select %p196, %s16, 7
        %p198 = scmp.lt.s32.totalorder %s195, 0
        %s199 = scalar_select %p198, %s195, 0
        %s200 = sadd.s32 %s199, %s197
        %s201 = smul.addr %s200, 4
        %s202 = scalar_lea.vmem %s2, %s201
        %p203 = scmp.lt.s32.totalorder %s18, %s17
        %s204 = scalar_select %p203, %s18, %s17
      $region28: #{_lambda_.15} parent=15 // pred_fallthru
        _
    $region16: #{_lambda_.15} parent=5 // pred_fallthru
      _
    %p205 = scmp.le.s32.totalorder 1, %s9
    %p206 = scmp.lt.s32.totalorder %s9, 9
    %p207 = pnand %p205, %p206
    %p208 = pneg %p207
    // Predicated region
    $region29: #{_lambda_.15} parent=5 // pred_check
      _
    $region30: #{_lambda_.15} parent=5 // pred_check_branch
      %210 = sbr.rel (%p207) target = $region32
    $region31: #{_lambda_.15} parent=5 // pred_region
      %s211 = ssub.s32 %s9, 1
      %p212 = scmp.lt.s32.totalorder %s19, 7
      %s213 = scalar_select %p212, %s19, 7
      %p214 = scmp.lt.s32.totalorder %s20, 0
      %s215 = scalar_select %p214, %s20, 0
      %s216 = sadd.s32 %s215, %s213
      %s217 = smul.addr %s216, 4
      %s218 = scalar_lea.vmem %s0, %s217
      %p219 = pneg %p56
      %p220 = pneg %p53
      %p221 = scmp.lt.s32.totalorder %s21, %s20
      %s222 = scalar_select %p221, %s21, %s20
      %p223 = scmp.lt.s32.totalorder %s19, 7
      %s224 = scalar_select %p223, %s19, 7
      %p225 = scmp.lt.s32.totalorder %s222, 0
      %s226 = scalar_select %p225, %s222, 0
      %s227 = sadd.s32 %s226, %s224
      %s228 = smul.addr %s227, 4
      %s229 = scalar_lea.vmem %s1, %s228
      %p230 = pneg %p88
      %p231 = pneg %p85
      %p232 = scmp.lt.s32.totalorder %s21, %s20
      %s233 = scalar_select %p232, %s21, %s20
      %p234 = scmp.lt.s32.totalorder %s19, 7
      %s235 = scalar_select %p234, %s19, 7
      %p236 = scmp.lt.s32.totalorder %s233, 0
      %s237 = scalar_select %p236, %s233, 0
      %s238 = sadd.s32 %s237, %s235
      %s239 = smul.addr %s238, 4
      %s240 = scalar_lea.vmem %s2, %s239
      %p241 = pneg %p120
      %p242 = pneg %p117
      %p243 = pneg %p148
      %p244 = pneg %p145
      %p245 = scmp.lt.s32.totalorder %s19, 7
      %s246 = scalar_select %p245, %s19, 7
      %p247 = scmp.lt.s32.totalorder %s20, 0
      %s248 = scalar_select %p247, %s20, 0
      %s249 = sadd.s32 %s248, %s246
      %s250 = smul.addr %s249, 4
      %s251 = scalar_lea.vmem %s3, %s250
      %p252 = scmp.lt.s32.totalorder %s19, 7
      %s253 = scalar_select %p252, %s19, 7
      %p254 = scmp.lt.s32.totalorder %s20, 0
      %s255 = scalar_select %p254, %s20, 0
      %s256 = sadd.s32 %s255, %s253
      %s257 = smul.addr %s256, 4
      %s258 = scalar_lea.vmem %s0, %s257
      %p259 = scmp.lt.s32.totalorder %s21, %s20
      %s260 = scalar_select %p259, %s21, %s20
      %p261 = scmp.lt.s32.totalorder %s19, 7
      %s262 = scalar_select %p261, %s19, 7
      %p263 = scmp.lt.s32.totalorder %s260, 0
      %s264 = scalar_select %p263, %s260, 0
      %s265 = sadd.s32 %s264, %s262
      %s266 = smul.addr %s265, 4
      %s267 = scalar_lea.vmem %s1, %s266
      %p268 = scmp.lt.s32.totalorder %s21, %s20
      %s269 = scalar_select %p268, %s21, %s20
      %p270 = scmp.lt.s32.totalorder %s21, %s20
      %s271 = scalar_select %p270, %s21, %s20
      %p272 = scmp.lt.s32.totalorder %s19, 7
      %s273 = scalar_select %p272, %s19, 7
      %p274 = scmp.lt.s32.totalorder %s271, 0
      %s275 = scalar_select %p274, %s271, 0
      %s276 = sadd.s32 %s275, %s273
      %s277 = smul.addr %s276, 4
      %s278 = scalar_lea.vmem %s2, %s277
      %p279 = scmp.lt.s32.totalorder %s21, %s20
      %s280 = scalar_select %p279, %s21, %s20
      %p281 = scmp.lt.s32.totalorder %s19, 7
      %s282 = scalar_select %p281, %s19, 7
      %p283 = scmp.lt.s32.totalorder %s20, 0
      %s284 = scalar_select %p283, %s20, 0
      %s285 = sadd.s32 %s284, %s282
      %s286 = smul.addr %s285, 4
      %s287 = scalar_lea.vmem %s3, %s286
      %p289 = scmp.eq.s32.totalorder %s21, 0
      // Predicated region
      $region33: #{_lambda_.15} parent=31 // pred_check
        %p290 = pneg %p289
      $region34: #{_lambda_.15} parent=31 // pred_check_branch
        %292 = sbr.rel (%p290) target = $region36
      $region35: #{_lambda_.15} parent=31 // pred_region
        %vm293 = vcmask 7168
        %294 = vst.msk [vmem:[#allocation2] sm:$0xff] %vm293, -inf
        %295 = vst.msk [vmem:[#allocation3] sm:$0xff] %vm293, 0.0
        %vm296 = vcmask 64512
        %297 = vst.msk [vmem:[#allocation4] sm:$0xff] %vm296, 0.0
      $region36: #{_lambda_.15} parent=31 // pred_fallthru
        _
      %p298 = scmp.le.s32.totalorder %s21, %s20
      // Predicated region
      $region37: #{_lambda_.15} parent=31 // pred_check
        %p299 = pneg %p298
      $region38: #{_lambda_.15} parent=31 // pred_check_branch
        %301 = sbr.rel (%p299) target = $region40
      $region39: #{_lambda_.15} parent=31 // pred_region
        %v302 = vld [vmem:[%s258] sm:$0xf]
        %v303 = vld [vmem:[%s267] sm:$0xf]
        %vm304 = vcmask 64512
        %v306 = vsel %vm304, %v302, 0
        %v309 = vsel %vm304, %v303, 0
        %311 = vmatpush.bf16.xpose.msra.mxu0 0
        %312 = vmatpush.bf16.xpose.msra.mxu0 0
        %313 = vmatpush.bf16.xpose.msra.mxu0 0
        %314 = vmatpush.bf16.xpose.msra.mxu0 0
        %315 = vmatpush.bf16.xpose.msra.mxu0 0
        %316 = vmatpush.bf16.xpose.msra.mxu0 0
        %317 = vmatpush.bf16.xpose.msra.mxu0 0
        %318 = vmatpush.bf16.xpose.msra.mxu0 %v309
        %319 = vmatmul.bf16.gmra.mxu0 %v306
        %v320 = vpop.f32.mrf.mxu0
        %v321 = vadd.f32 0.0, %v320
        %v322 = vpop.f32.mrf.mxu0
        %323 = vdwg.mxu0
        %s324 = smul.u32 %s20, 8
        %v325 = vlaneseq
        %v326 = vshrl.u32 %v325, 7
        %v327 = vstv %s324
        %v328 = vadd.s32 %v327, %v326
        %s329 = smul.u32 %s21, 8
        %v330 = vlaneseq
        %v331 = vand.u32 %v330, 127
        %v332 = vstv %s329
        %v333 = vadd.s32 %v332, %v331
        %vm334 = vcmp.le.s32.totalorder %v333, %v328
        %v335 = vsel %vm334, %v321, -inf
        %v336 = vld [vmem:[#allocation2] sm:$0xff]
        %v337 = vsel %vm304, %v335, -inf
        %338 = vmax.xlane.f32.xlu0 %v337
        %v339 = vpop.xlane.xlu0 %338
        %v340 = vmax.f32 %v336, %v339
        %v341 = vsub.f32 %v336, %v340
        %v342 = vmul.f32 %v341, 1.442695
        %v343 = vpow.pop %v342
        %345 = vset.pattern.permute.xlu0 0
        %346 = vperm.xlu0 %345, %v340
        %v347 = vpop.permute.xlu0 %346
        %v349 = vsub.f32 %v335, %v347
        %v350 = vmul.f32 %v349, 1.442695
        %v351 = vpow.pop %v350
        %v352 = vld [vmem:[#allocation3] sm:$0xff]
        %v353 = vmul.f32 %v343, %v352
        %v354 = vsel %vm304, %v351, 0.0
        %355 = vadd.xlane.f32.xlu0 %v354
        %v356 = vpop.xlane.xlu0 %355
        %v357 = vadd.f32 %v353, %v356
        %vm358 = vcmask 7168
        %359 = vst.msk [vmem:[#allocation3] sm:$0xff] %vm358, %v357
        %v360 = vld [vmem:[#allocation4] sm:$0xff]
        %362 = vset.pattern.permute.xlu0 0
        %363 = vperm.xlu0 %362, %v343
        %v364 = vpop.permute.xlu0 %363
        %v366 = vmul.f32 %v364, %v360
        %v367 = vpack.c.bf16 %v351, %v351
        %v368 = vld [vmem:[%s278] sm:$0xf]
        %v370 = vsel %vm304, %v367, 0
        %vm372 = vcmask 1043456
        %v374 = vsel %vm372, %v368, 0
        %376 = vmatpush.bf16.msra.mxu0 0
        %377 = vmatpush.bf16.msra.mxu0 0
        %378 = vmatpush.bf16.msra.mxu0 0
        %379 = vmatpush.bf16.msra.mxu0 0
        %380 = vmatpush.bf16.msra.mxu0 0
        %381 = vmatpush.bf16.msra.mxu0 0
        %382 = vmatpush.bf16.msra.mxu0 0
        %383 = vmatpush.bf16.msra.mxu0 %v374
        %384 = vmatmul.bf16.gmra.mxu0 %v370
        %v385 = vpop.f32.mrf.mxu0
        %v386 = vadd.f32 0.0, %v385
        %v387 = vpop.f32.mrf.mxu0
        %388 = vdwg.mxu0
        %v389 = vadd.f32 %v366, %v386
        %390 = vst.msk [vmem:[#allocation4] sm:$0xff] %vm304, %v389
        %391 = vst.msk [vmem:[#allocation2] sm:$0xff] %vm358, %v340
      $region40: #{_lambda_.15} parent=31 // pred_fallthru
        _
      // Predicated region
      $region41: #{_lambda_.15} parent=31 // pred_check
        %p392 = pneg %p289
      $region42: #{_lambda_.15} parent=31 // pred_check_branch
        %394 = sbr.rel (%p392) target = $region44
      $region43: #{_lambda_.15} parent=31 // pred_region
        %v395 = vld [vmem:[#allocation4] sm:$0xff]
        %v396 = vld [vmem:[#allocation3] sm:$0xff]
        %398 = vset.pattern.permute.xlu0 0
        %399 = vperm.xlu0 %398, %v396
        %v400 = vpop.permute.xlu0 %399
        %v402 = vrcp.pop %v400
        %v403 = vmul.f32 %v400, %v402
        %v404 = vsub.f32 1.0, %v403
        %v405 = vmul.f32 %v402, %v404
        %v406 = vadd.f32 %v402, %v405
        %vm407 = vweird.f32 %v400
        %vm408 = vweird.f32 %v402
        %vm409 = vmor %vm407, %vm408
        %v410 = vsel %vm409, %v402, %v406
        %v411 = vand.u32 2147483647, %v400
        %vm412 = vcmp.eq.f32.partialorder %v411, 8.507059e+37
        %v413 = vand.u32 %v400, 2147483648
        %v414 = vor.u32 1.1754944e-38, %v413
        %v415 = vsel %vm412, %v414, %v410
        %v416 = vmul.f32 %v395, %v415
        %v417 = vpack.c.bf16 %v416, %v416
        %vm418 = vcmask 60416
        %419 = vst.msk [vmem:[%s287] sm:$0xf] %vm418, %v417
      $region44: #{_lambda_.15} parent=31 // pred_fallthru
        _
      %p420 = scmp.lt.s32.totalorder %s19, 7
      %s421 = scalar_select %p420, %s19, 7
      %p422 = scmp.lt.s32.totalorder %s20, 0
      %s423 = scalar_select %p422, %s20, 0
      %s424 = sadd.s32 %s423, %s421
      %s425 = smul.addr %s424, 4
      %s426 = scalar_lea.vmem %s3, %s425
      // Predicated region
      $region45: #{_lambda_.15} parent=31 // pred_check
        %p427 = pneg %p145
      $region46: #{_lambda_.15} parent=31 // pred_check_branch
        %429 = sbr.rel (%p427) target = $region48
      $region47: #{_lambda_.15} parent=31 // pred_region
        _
      $region48: #{_lambda_.15} parent=31 // pred_fallthru
        _
    $region32: #{_lambda_.15} parent=5 // pred_fallthru
      _
    %p430 = scmp.le.s32.totalorder 2, %s9
    // Predicated region
    $region49: #{_lambda_.15} parent=5 // pred_check
      %p431 = pneg %p430
    $region50: #{_lambda_.15} parent=5 // pred_check_branch
      %433 = sbr.rel (%p431) target = $region52
    $region51: #{_lambda_.15} parent=5 // pred_region
      %s434 = ssub.s32 %s9, 2
      // Predicated region
      $region53: #{_lambda_.15} parent=51 // pred_check
        %p435 = pneg %p151
      $region54: #{_lambda_.15} parent=51 // pred_check_branch
        %437 = sbr.rel (%p435) target = $region56
      $region55: #{_lambda_.15} parent=51 // pred_region
        %p438 = scmp.lt.s32.totalorder %s22, 7
        %s439 = scalar_select %p438, %s22, 7
        %p440 = scmp.lt.s32.totalorder %s23, 0
        %s441 = scalar_select %p440, %s23, 0
        %s442 = sadd.s32 %s441, %s439
        %s443 = smul.addr %s442, 4
        %s444 = scalar_lea.vmem %s3, %s443
      $region56: #{_lambda_.15} parent=51 // pred_fallthru
        _
    $region52: #{_lambda_.15} parent=5 // pred_fallthru
      _
  $region6: #{_lambda_.15} parent=0 // loop_footer
    %s13 = sadd.s32 1, %s9
  $region7: #{_lambda_.15} parent=0 // loop_footer_branch
    %8 = sbr.rel target = $region3
  $region8: #{_lambda_.15} parent=0 // loop_exit
    _

// kernel: _lambda_.16
$region0: #{_lambda_.16}
  #allocation0 [shape = 'u32[]', space=smem, size = 0x4, offset = 0x4, fixed_abs, tag = 'smem constant byte address 0x4 - core index']
  #allocation1 [shape = 'u32[72,128]{1,0:T(1,128)}', space=vmem, size = 0x9000, scoped, tag = 'internal scratch']
  %s0 = inlined_call_operand.vmem [shape: bf16[16,32], index: 0, kind: input, shape index: {}]
  %s1 = inlined_call_operand.vmem [shape: bf16[32,32], index: 1, kind: input, shape index: {}]
  %s2 = inlined_call_operand.vmem [shape: f32[1,32], index: 2, kind: input, shape index: {}]
  %s3 = inlined_call_operand.vmem [shape: f32[16,32], index: 3, kind: input, shape index: {}]
  %s4 = inlined_call_operand.vmem [shape: f32[16,32], index: 4, kind: output, shape index: {}]
  %s5 = sld [smem:[#allocation0]]
  $region26: #{_lambda_.16} parent=0
    _
  %s7 = ssub.s32 1, %s5
  %s8 = scalar_select 0, %s7, %s5
  // Predicated region
  $region2: #{_lambda_.16} parent=0 // pred_check
    _
  $region3: #{_lambda_.16} parent=0 // pred_check_branch
    %10 = sbr.rel (0) target = $region5
  $region4: #{_lambda_.16} parent=0 // pred_region
    _
  $region5: #{_lambda_.16} parent=0 // pred_fallthru
    _
  // Predicated region
  $region6: #{_lambda_.16} parent=0 // pred_check
    _
  $region7: #{_lambda_.16} parent=0 // pred_check_branch
    %12 = sbr.rel (0) target = $region9
  $region8: #{_lambda_.16} parent=0 // pred_region
    _
  $region9: #{_lambda_.16} parent=0 // pred_fallthru
    _
  // Predicated region
  $region10: #{_lambda_.16} parent=0 // pred_check
    _
  $region11: #{_lambda_.16} parent=0 // pred_check_branch
    %14 = sbr.rel (0) target = $region13
  $region12: #{_lambda_.16} parent=0 // pred_region
    _
  $region13: #{_lambda_.16} parent=0 // pred_fallthru
    _
  // Predicated region
  $region14: #{_lambda_.16} parent=0 // pred_check
    _
  $region15: #{_lambda_.16} parent=0 // pred_check_branch
    %16 = sbr.rel (0) target = $region17
  $region16: #{_lambda_.16} parent=0 // pred_region
    _
  $region17: #{_lambda_.16} parent=0 // pred_fallthru
    _
  %v18 = vld [vmem:[%s0] sm:$0xf]
  %v19 = vld [vmem:[%s0 + $0x4] sm:$0xf]
  %v20 = vld [vmem:[%s1] sm:$0xf]
  %v21 = vld [vmem:[%s1 + $0x4] sm:$0xf]
  %v22 = vld [vmem:[%s1 + $0x8] sm:$0xf]
  %v23 = vld [vmem:[%s1 + $0xc] sm:$0xf]
  %v26 = vunpack.c.l.b16 %v18
  %v27 = vunpack.c.l.b16 %v19
  %v28 = vpack.c.b16 %v27, %v26
  %v33 = vunpack.c.l.b16 %v20
  %v34 = vunpack.c.l.b16 %v21
  %v35 = vunpack.c.l.b16 %v22
  %v36 = vunpack.c.l.b16 %v23
  %v37 = vpack.c.b16 %v34, %v33
  %v38 = vpack.c.b16 %v36, %v35
  %vm41 = vcmask 261120
  %v43 = vsel %vm41, %v28, 0
  %45 = vmatpush.bf16.msra.mxu0 0
  %46 = vmatpush.bf16.msra.mxu0 0
  %47 = vmatpush.bf16.msra.mxu0 0
  %48 = vmatpush.bf16.msra.mxu0 0
  %49 = vmatpush.bf16.msra.mxu0 0
  %50 = vmatpush.bf16.msra.mxu0 0
  %51 = vmatpush.bf16.msra.mxu0 %v38
  %52 = vmatpush.bf16.msra.mxu0 %v37
  %53 = vmatmul.bf16.gmra.mxu0 %v43
  %v54 = vpop.f32.mrf.mxu0
  %v55 = vadd.f32 0.0, %v54
  %v56 = vpop.f32.mrf.mxu0
  %v57 = vadd.f32 0.0, %v56
  %58 = vdwg.mxu0
  %v59 = vld [vmem:[%s3] sm:$0xff]
  %v60 = vld [vmem:[%s3 + $0x8] sm:$0xff]
  %v61 = vadd.f32 %v59, %v55
  %v62 = vadd.f32 %v60, %v57
  %v63 = vld [vmem:[%s2] sm:$0x1]
  %v65 = vperm.slane %v63, 0
  %v67 = vadd.f32 %v61, %v65
  %v68 = vadd.f32 %v62, %v65
  %69 = vst.msk [vmem:[%s4] sm:$0xff] %vm41, %v67
  %70 = vst.msk [vmem:[%s4 + $0x8] sm:$0xff] %vm41, %v68
  // Predicated region
  $region18: #{_lambda_.16} parent=0 // pred_check
    _
  $region19: #{_lambda_.16} parent=0 // pred_check_branch
    %72 = sbr.rel (0) target = $region21
  $region20: #{_lambda_.16} parent=0 // pred_region
    _
  $region21: #{_lambda_.16} parent=0 // pred_fallthru
    _
  // Predicated region
  $region22: #{_lambda_.16} parent=0 // pred_check
    _
  $region23: #{_lambda_.16} parent=0 // pred_check_branch
    %74 = sbr.rel (0) target = $region25
  $region24: #{_lambda_.16} parent=0 // pred_region
    _
  $region25: #{_lambda_.16} parent=0 // pred_fallthru
    _

// kernel: _lambda_.25
$region0: #{_lambda_.25}
  #allocation0 [shape = 'u32[]', space=smem, size = 0x4, offset = 0x4, fixed_abs, tag = 'smem constant byte address 0x4 - core index']
  #allocation1 [shape = 'u32[72,128]{1,0:T(1,128)}', space=vmem, size = 0x9000, scoped, tag = 'internal scratch']
  #allocation2 [shape = 'bf16[16,32]{1,0:T(8,128)(2,1)}', space=vmem, size = 0x1000, scoped, tag = 'scratch operand']
  %s0 = inlined_call_operand.vmem [shape: f32[16,32], index: 0, kind: input, shape index: {}]
  %s1 = inlined_call_operand.vmem [shape: f32[1,32], index: 1, kind: input, shape index: {}]
  %s2 = inlined_call_operand.vmem [shape: f32[1,32], index: 2, kind: input, shape index: {}]
  %s3 = inlined_call_operand.vmem [shape: bf16[64,32], index: 3, kind: input, shape index: {}]
  %s4 = inlined_call_operand.vmem [shape: f32[1,64], index: 4, kind: input, shape index: {}]
  %s5 = inlined_call_operand.hbm [shape: f32[16,64], index: 5, kind: output, shape index: {}]
  %s6 = sld [smem:[#allocation0]]
  $region34: #{_lambda_.25} parent=0
    _
  %s8 = ssub.s32 1, %s6
  %s9 = scalar_select 0, %s8, %s6
  $region1: #{_lambda_.25} parent=0
    #allocation3 [shape = 'u8[8192]{0}', space=vmem, size = 0x2000, scoped, tag = 'output window, operand 0, single buffered']
    #allocation4 [shape = 's32[1]{0}', space=sflag, size = 0x4, scoped, tag = 'scoped memory for _lambda_.25']
    %10 = vsyncpa [#allocation4], 0
    // Predicated region
    $region2: #{_lambda_.25} parent=1 // pred_check
      _
    $region3: #{_lambda_.25} parent=1 // pred_check_branch
      %12 = sbr.rel (0) target = $region5
    $region4: #{_lambda_.25} parent=1 // pred_region
      _
    $region5: #{_lambda_.25} parent=1 // pred_fallthru
      _
    // Predicated region
    $region6: #{_lambda_.25} parent=1 // pred_check
      _
    $region7: #{_lambda_.25} parent=1 // pred_check_branch
      %14 = sbr.rel (0) target = $region9
    $region8: #{_lambda_.25} parent=1 // pred_region
      _
    $region9: #{_lambda_.25} parent=1 // pred_fallthru
      _
    // Predicated region
    $region10: #{_lambda_.25} parent=1 // pred_check
      _
    $region11: #{_lambda_.25} parent=1 // pred_check_branch
      %16 = sbr.rel (0) target = $region13
    $region12: #{_lambda_.25} parent=1 // pred_region
      _
    $region13: #{_lambda_.25} parent=1 // pred_fallthru
      _
    // Predicated region
    $region14: #{_lambda_.25} parent=1 // pred_check
      _
    $region15: #{_lambda_.25} parent=1 // pred_check_branch
      %18 = sbr.rel (0) target = $region17
    $region16: #{_lambda_.25} parent=1 // pred_region
      _
    $region17: #{_lambda_.25} parent=1 // pred_fallthru
      _
    // Predicated region
    $region18: #{_lambda_.25} parent=1 // pred_check
      _
    $region19: #{_lambda_.25} parent=1 // pred_check_branch
      %20 = sbr.rel (0) target = $region21
    $region20: #{_lambda_.25} parent=1 // pred_region
      _
    $region21: #{_lambda_.25} parent=1 // pred_fallthru
      _
    %p22 = scmp.eq.s32.totalorder 0, 0
    // Predicated region
    $region22: #{_lambda_.25} parent=1 // pred_check
      %p23 = pneg %p22
    $region23: #{_lambda_.25} parent=1 // pred_check_branch
      %25 = sbr.rel (%p23) target = $region25
    $region24: #{_lambda_.25} parent=1 // pred_region
      %v26 = vld [vmem:[%s0] sm:$0xff]
      %v27 = vld [vmem:[%s0 + $0x8] sm:$0xff]
      %vm28 = vcmask 261120
      %v29 = vsel %vm28, %v26, 0.0
      %30 = vadd.xlane.f32.xlu0 %v29
      %v31 = vpop.xlane.xlu0 %30
      %v32 = vsel %vm28, %v27, 0.0
      %33 = vadd.xlane.f32.xlu0 %v32
      %v34 = vpop.xlane.xlu0 %33
      %v35 = vrcp.pop 32.0
      %v36 = vmul.f32 32.0, %v35
      %v37 = vsub.f32 1.0, %v36
      %v38 = vmul.f32 %v35, %v37
      %v39 = vadd.f32 %v35, %v38
      %vm40 = vweird.f32 %v35
      %v41 = vsel %vm40, %v35, %v39
      %v42 = vmul.f32 %v31, %v41
      %v43 = vmul.f32 %v34, %v41
      %v44 = vsub.f32 %v26, %v42
      %v45 = vsub.f32 %v27, %v43
      %v46 = vmul.f32 %v44, %v44
      %v47 = vmul.f32 %v45, %v45
      %v48 = vsel %vm28, %v46, 0.0
      %49 = vadd.xlane.f32.xlu0 %v48
      %v50 = vpop.xlane.xlu0 %49
      %v51 = vsel %vm28, %v47, 0.0
      %52 = vadd.xlane.f32.xlu0 %v51
      %v53 = vpop.xlane.xlu0 %52
      %v54 = vmul.f32 %v50, %v41
      %v55 = vmul.f32 %v53, %v41
      %v56 = vadd.f32 %v54, 1e-05
      %v57 = vadd.f32 %v55, 1e-05
      %v58 = vrsqrt.pop %v56
      %v59 = vmul.f32 %v58, %v56
      %v60 = vmul.f32 %v59, %v58
      %v61 = vmul.f32 0.5, %v60
      %v62 = vsub.f32 1.5, %v61
      %v63 = vmul.f32 %v58, %v62
      %vm64 = vweird.f32 %v56
      %vm65 = vweird.f32 %v58
      %vm66 = vmor %vm64, %vm65
      %v67 = vsel %vm66, %v58, %v63
      %v68 = vrsqrt.pop %v57
      %v69 = vmul.f32 %v68, %v57
      %v70 = vmul.f32 %v69, %v68
      %v71 = vmul.f32 0.5, %v70
      %v72 = vsub.f32 1.5, %v71
      %v73 = vmul.f32 %v68, %v72
      %vm74 = vweird.f32 %v57
      %vm75 = vweird.f32 %v68
      %vm76 = vmor %vm74, %vm75
      %v77 = vsel %vm76, %v68, %v73
      %v78 = vmul.f32 %v44, %v67
      %v79 = vmul.f32 %v45, %v77
      %v80 = vld [vmem:[%s1] sm:$0x1]
      %v82 = vperm.slane %v80, 0
      %v84 = vmul.f32 %v78, %v82
      %v85 = vmul.f32 %v79, %v82
      %v86 = vld [vmem:[%s2] sm:$0x1]
      %v88 = vperm.slane %v86, 0
      %v90 = vadd.f32 %v84, %v88
      %v91 = vadd.f32 %v85, %v88
      %v92 = vpack.c.bf16 %v90, %v90
      %v93 = vpack.c.bf16 %v91, %v91
      %vm94 = vcmask 257024
      %95 = vst.msk [vmem:[#allocation2] sm:$0xf] %vm94, %v92
      %96 = vst.msk [vmem:[#allocation2 + $0x4] sm:$0xf] %vm94, %v93
    $region25: #{_lambda_.25} parent=1 // pred_fallthru
      _
    %v97 = vld [vmem:[#allocation2] sm:$0xf]
    %v98 = vld [vmem:[#allocation2 + $0x4] sm:$0xf]
    %v99 = vld [vmem:[%s3] sm:$0xf]
    %v100 = vld [vmem:[%s3 + $0x4] sm:$0xf]
    %v101 = vld [vmem:[%s3 + $0x8] sm:$0xf]
    %v102 = vld [vmem:[%s3 + $0xc] sm:$0xf]
    %v103 = vld [vmem:[%s3 + $0x10] sm:$0xf]
    %v104 = vld [vmem:[%s3 + $0x14] sm:$0xf]
    %v105 = vld [vmem:[%s3 + $0x18] sm:$0xf]
    %v106 = vld [vmem:[%s3 + $0x1c] sm:$0xf]
    %v107 = vld [vmem:[%s4] sm:$0x1]
    %v109 = vperm.slane %v107, 0
    %v113 = vunpack.c.l.b16 %v97
    %v114 = vunpack.c.l.b16 %v98
    %v115 = vpack.c.b16 %v114, %v113
    %v124 = vunpack.c.l.b16 %v99
    %v125 = vunpack.c.l.b16 %v100
    %v126 = vunpack.c.l.b16 %v101
    %v127 = vunpack.c.l.b16 %v102
    %v128 = vunpack.c.l.b16 %v103
    %v129 = vunpack.c.l.b16 %v104
    %v130 = vunpack.c.l.b16 %v105
    %v131 = vunpack.c.l.b16 %v106
    %v132 = vpack.c.b16 %v125, %v124
    %v133 = vpack.c.b16 %v127, %v126
    %v134 = vpack.c.b16 %v129, %v128
    %v135 = vpack.c.b16 %v131, %v130
    %vm136 = vcmask 261120
    %v138 = vsel %vm136, %v115, 0
    %v141 = vsel %vm136, %v132, 0
    %v144 = vsel %vm136, %v133, 0
    %v147 = vsel %vm136, %v134, 0
    %v150 = vsel %vm136, %v135, 0
    %152 = vmatpush.bf16.xpose.msra.mxu0 0
    %153 = vmatpush.bf16.xpose.msra.mxu0 0
    %154 = vmatpush.bf16.xpose.msra.mxu0 0
    %155 = vmatpush.bf16.xpose.msra.mxu0 0
    %156 = vmatpush.bf16.xpose.msra.mxu0 %v150
    %157 = vmatpush.bf16.xpose.msra.mxu0 %v147
    %158 = vmatpush.bf16.xpose.msra.mxu0 %v144
    %159 = vmatpush.bf16.xpose.msra.mxu0 %v141
    %160 = vmatmul.bf16.gmra.mxu0 %v138
    %v161 = vpop.f32.mrf.mxu0
    %v162 = vadd.f32 %v109, %v161
    %v163 = vpop.f32.mrf.mxu0
    %v164 = vadd.f32 %v109, %v163
    %165 = vdwg.mxu0
    %vm166 = vcmask 523264
    %167 = vst.msk [vmem:[#allocation3] sm:$0xff] %vm166, %v162
    %168 = vst.msk [vmem:[#allocation3 + $0x8] sm:$0xff] %vm166, %v164
    // Predicated region
    $region26: #{_lambda_.25} parent=1 // pred_check
      _
    $region27: #{_lambda_.25} parent=1 // pred_check_branch
      %170 = sbr.rel (0) target = $region29
    $region28: #{_lambda_.25} parent=1 // pred_region
      %172 = vsyncadd [#allocation4], 0
      %s173 = sshll.u32 [#allocation3], 4
      %s174 = int_to_ptr.vmem [resolvable:$true] %s173
      %s175 = sshll.u32 %s5, 4
      %s176 = int_to_ptr.hbm [resolvable:$true] %s175
      %181 = dma.vmem_to_hbm [thread:$0]  %s174, 256, %s176, [#allocation4], 128, 128, 8
    $region29: #{_lambda_.25} parent=1 // pred_fallthru
      _
    // Predicated region
    $region30: #{_lambda_.25} parent=1 // pred_check
      _
    $region31: #{_lambda_.25} parent=1 // pred_check_branch
      %183 = sbr.rel (0) target = $region33
    $region32: #{_lambda_.25} parent=1 // pred_region
      %185 = dma.done [#allocation4], 256
    $region33: #{_lambda_.25} parent=1 // pred_fallthru
      _
    %186 = vsyncpa [#allocation4], 1

// kernel: _lambda_.18
$region0: #{_lambda_.18}
  #allocation0 [shape = 'u32[]', space=smem, size = 0x4, offset = 0x4, fixed_abs, tag = 'smem constant byte address 0x4 - core index']
  #allocation1 [shape = 'u32[72,128]{1,0:T(1,128)}', space=vmem, size = 0x9000, scoped, tag = 'internal scratch']
  #allocation2 [shape = 'f32[16,32]{1,0:T(8,128)}', space=vmem, size = 0x2000, scoped, tag = 'scratch operand']
  #allocation3 [shape = 'f32[16,32]{1,0:T(8,128)}', space=vmem, size = 0x2000, scoped, tag = 'scratch operand']
  %s0 = inlined_call_operand.vmem [shape: bf16[16,32], index: 0, kind: input, shape index: {}]
  %s1 = inlined_call_operand.vmem [shape: bf16[16,32], index: 1, kind: input, shape index: {}]
  %s2 = inlined_call_operand.vmem [shape: f32[1,32], index: 2, kind: input, shape index: {}, may-alias: {2,3}]
  %s3 = inlined_call_operand.vmem [shape: f32[1,32], index: 3, kind: input, shape index: {}, may-alias: {2,3}]
  %s4 = inlined_call_operand.vmem [shape: bf16[32,32], index: 4, kind: input, shape index: {}]
  %s5 = inlined_call_operand.vmem [shape: bf16[32,128], index: 5, kind: input, shape index: {}]
  %s6 = inlined_call_operand.vmem [shape: bf16[128,32], index: 6, kind: input, shape index: {}]
  %s7 = inlined_call_operand.vmem [shape: f32[16,32], index: 7, kind: input, shape index: {}]
  %s8 = inlined_call_operand.vmem [shape: f32[16,32], index: 8, kind: output, shape index: {}]
  %s9 = sld [smem:[#allocation0]]
  $region54: #{_lambda_.18} parent=0
    _
  %s11 = ssub.s32 1, %s9
  %s12 = scalar_select 0, %s11, %s9
  // Predicated region
  $region2: #{_lambda_.18} parent=0 // pred_check
    _
  $region3: #{_lambda_.18} parent=0 // pred_check_branch
    %14 = sbr.rel (0) target = $region5
  $region4: #{_lambda_.18} parent=0 // pred_region
    _
  $region5: #{_lambda_.18} parent=0 // pred_fallthru
    _
  // Predicated region
  $region6: #{_lambda_.18} parent=0 // pred_check
    _
  $region7: #{_lambda_.18} parent=0 // pred_check_branch
    %16 = sbr.rel (0) target = $region9
  $region8: #{_lambda_.18} parent=0 // pred_region
    _
  $region9: #{_lambda_.18} parent=0 // pred_fallthru
    _
  // Predicated region
  $region10: #{_lambda_.18} parent=0 // pred_check
    _
  $region11: #{_lambda_.18} parent=0 // pred_check_branch
    %18 = sbr.rel (0) target = $region13
  $region12: #{_lambda_.18} parent=0 // pred_region
    _
  $region13: #{_lambda_.18} parent=0 // pred_fallthru
    _
  // Predicated region
  $region14: #{_lambda_.18} parent=0 // pred_check
    _
  $region15: #{_lambda_.18} parent=0 // pred_check_branch
    %20 = sbr.rel (0) target = $region17
  $region16: #{_lambda_.18} parent=0 // pred_region
    _
  $region17: #{_lambda_.18} parent=0 // pred_fallthru
    _
  // Predicated region
  $region18: #{_lambda_.18} parent=0 // pred_check
    _
  $region19: #{_lambda_.18} parent=0 // pred_check_branch
    %22 = sbr.rel (0) target = $region21
  $region20: #{_lambda_.18} parent=0 // pred_region
    _
  $region21: #{_lambda_.18} parent=0 // pred_fallthru
    _
  // Predicated region
  $region22: #{_lambda_.18} parent=0 // pred_check
    _
  $region23: #{_lambda_.18} parent=0 // pred_check_branch
    %24 = sbr.rel (0) target = $region25
  $region24: #{_lambda_.18} parent=0 // pred_region
    _
  $region25: #{_lambda_.18} parent=0 // pred_fallthru
    _
  // Predicated region
  $region26: #{_lambda_.18} parent=0 // pred_check
    _
  $region27: #{_lambda_.18} parent=0 // pred_check_branch
    %26 = sbr.rel (0) target = $region29
  $region28: #{_lambda_.18} parent=0 // pred_region
    _
  $region29: #{_lambda_.18} parent=0 // pred_fallthru
    _
  // Predicated region
  $region30: #{_lambda_.18} parent=0 // pred_check
    _
  $region31: #{_lambda_.18} parent=0 // pred_check_branch
    %28 = sbr.rel (0) target = $region33
  $region32: #{_lambda_.18} parent=0 // pred_region
    _
  $region33: #{_lambda_.18} parent=0 // pred_fallthru
    _
  %v30 = vld [vmem:[%s0] sm:$0xf]
  %v31 = vld [vmem:[%s0 + $0x4] sm:$0xf]
  %v32 = vunpack.c.l.bf16 %v30
  %v33 = vunpack.c.l.bf16 %v31
  %v34 = vld [vmem:[%s1] sm:$0xf]
  %v35 = vld [vmem:[%s1 + $0x4] sm:$0xf]
  %v36 = vunpack.c.l.bf16 %v34
  %v37 = vunpack.c.l.bf16 %v35
  %p38 = scmp.eq.s32.totalorder 0, 0
  // Predicated region
  $region34: #{_lambda_.18} parent=0 // pred_check
    %p39 = pneg %p38
  $region35: #{_lambda_.18} parent=0 // pred_check_branch
    %41 = sbr.rel (%p39) target = $region37
  $region36: #{_lambda_.18} parent=0 // pred_region
    %vm42 = vcmask 261120
    %43 = vst.msk [vmem:[#allocation3] sm:$0xff] %vm42, 0.0
    %44 = vst.msk [vmem:[#allocation3 + $0x8] sm:$0xff] %vm42, 0.0
  $region37: #{_lambda_.18} parent=0 // pred_fallthru
    _
  %v45 = vld [vmem:[%s2] sm:$0x1]
  %v47 = vperm.slane %v45, 0
  %v49 = vmul.f32 %v36, %v47
  %v50 = vmul.f32 %v37, %v47
  %v51 = vadd.f32 %v32, %v49
  %v52 = vadd.f32 %v33, %v50
  %v53 = vpack.c.bf16 %v52, %v51
  // Predicated region
  $region38: #{_lambda_.18} parent=0 // pred_check
    %p54 = pneg %p38
  $region39: #{_lambda_.18} parent=0 // pred_check_branch
    %56 = sbr.rel (%p54) target = $region41
  $region40: #{_lambda_.18} parent=0 // pred_region
    %v57 = vld [vmem:[%s4] sm:$0xf]
    %v58 = vld [vmem:[%s4 + $0x4] sm:$0xf]
    %v59 = vld [vmem:[%s4 + $0x8] sm:$0xf]
    %v60 = vld [vmem:[%s4 + $0xc] sm:$0xf]
    %v65 = vunpack.c.l.b16 %v57
    %v66 = vunpack.c.l.b16 %v58
    %v67 = vunpack.c.l.b16 %v59
    %v68 = vunpack.c.l.b16 %v60
    %v69 = vpack.c.b16 %v66, %v65
    %v70 = vpack.c.b16 %v68, %v67
    %vm73 = vcmask 261120
    %v75 = vsel %vm73, %v53, 0
    %77 = vmatpush.bf16.msra.mxu0 0
    %78 = vmatpush.bf16.msra.mxu0 0
    %79 = vmatpush.bf16.msra.mxu0 0
    %80 = vmatpush.bf16.msra.mxu0 0
    %81 = vmatpush.bf16.msra.mxu0 0
    %82 = vmatpush.bf16.msra.mxu0 0
    %83 = vmatpush.bf16.msra.mxu0 %v70
    %84 = vmatpush.bf16.msra.mxu0 %v69
    %85 = vmatmul.bf16.gmra.mxu0 %v75
    %v86 = vpop.f32.mrf.mxu0
    %v87 = vadd.f32 0.0, %v86
    %v88 = vpop.f32.mrf.mxu0
    %v89 = vadd.f32 0.0, %v88
    %90 = vdwg.mxu0
    %91 = vst.msk [vmem:[#allocation2] sm:$0xff] %vm73, %v87
    %92 = vst.msk [vmem:[#allocation2 + $0x8] sm:$0xff] %vm73, %v89
  $region41: #{_lambda_.18} parent=0 // pred_fallthru
    _
  %v93 = vld [vmem:[%s3] sm:$0x1]
  %v95 = vperm.slane %v93, 0
  %v97 = vmul.f32 %v36, %v95
  %v98 = vmul.f32 %v37, %v95
  %v99 = vadd.f32 %v32, %v97
  %v100 = vadd.f32 %v33, %v98
  %v101 = vpack.c.bf16 %v100, %v99
  %v102 = vld [vmem:[%s5] sm:$0xf]
  %v103 = vld [vmem:[%s5 + $0x4] sm:$0xf]
  %v104 = vld [vmem:[%s5 + $0x8] sm:$0xf]
  %v105 = vld [vmem:[%s5 + $0xc] sm:$0xf]
  %v110 = vunpack.c.l.b16 %v102
  %v111 = vunpack.c.l.b16 %v103
  %v112 = vunpack.c.l.b16 %v104
  %v113 = vunpack.c.l.b16 %v105
  %v114 = vpack.c.b16 %v111, %v110
  %v115 = vpack.c.b16 %v113, %v112
  %vm118 = vcmask 261120
  %v120 = vsel %vm118, %v101, 0
  %122 = vmatpush.bf16.msra.mxu0 0
  %123 = vmatpush.bf16.msra.mxu0 0
  %124 = vmatpush.bf16.msra.mxu0 0
  %125 = vmatpush.bf16.msra.mxu0 0
  %126 = vmatpush.bf16.msra.mxu0 0
  %127 = vmatpush.bf16.msra.mxu0 0
  %128 = vmatpush.bf16.msra.mxu0 %v115
  %129 = vmatpush.bf16.msra.mxu0 %v114
  %130 = vmatmul.bf16.gmra.mxu0 %v120
  %v131 = vpop.f32.mrf.mxu0
  %v132 = vadd.f32 0.0, %v131
  %v133 = vpop.f32.mrf.mxu0
  %v134 = vadd.f32 0.0, %v133
  %135 = vdwg.mxu0
  %v136 = vmax.f32 %v132, 0.0
  %v137 = vmax.f32 %v134, 0.0
  %v138 = vmul.f32 %v136, %v136
  %v139 = vmul.f32 %v137, %v137
  %v140 = vpack.c.bf16 %v139, %v138
  %v141 = vld [vmem:[#allocation3] sm:$0xff]
  %v142 = vld [vmem:[#allocation3 + $0x8] sm:$0xff]
  %v143 = vld [vmem:[%s6] sm:$0xf]
  %v144 = vld [vmem:[%s6 + $0x4] sm:$0xf]
  %v145 = vld [vmem:[%s6 + $0x8] sm:$0xf]
  %v146 = vld [vmem:[%s6 + $0xc] sm:$0xf]
  %v147 = vld [vmem:[%s6 + $0x10] sm:$0xf]
  %v148 = vld [vmem:[%s6 + $0x14] sm:$0xf]
  %v149 = vld [vmem:[%s6 + $0x18] sm:$0xf]
  %v150 = vld [vmem:[%s6 + $0x1c] sm:$0xf]
  %v151 = vld [vmem:[%s6 + $0x20] sm:$0xf]
  %v152 = vld [vmem:[%s6 + $0x24] sm:$0xf]
  %v153 = vld [vmem:[%s6 + $0x28] sm:$0xf]
  %v154 = vld [vmem:[%s6 + $0x2c] sm:$0xf]
  %v155 = vld [vmem:[%s6 + $0x30] sm:$0xf]
  %v156 = vld [vmem:[%s6 + $0x34] sm:$0xf]
  %v157 = vld [vmem:[%s6 + $0x38] sm:$0xf]
  %v158 = vld [vmem:[%s6 + $0x3c] sm:$0xf]
  %v175 = vunpack.c.l.b16 %v143
  %v176 = vunpack.c.l.b16 %v144
  %v177 = vunpack.c.l.b16 %v145
  %v178 = vunpack.c.l.b16 %v146
  %v179 = vunpack.c.l.b16 %v147
  %v180 = vunpack.c.l.b16 %v148
  %v181 = vunpack.c.l.b16 %v149
  %v182 = vunpack.c.l.b16 %v150
  %v183 = vunpack.c.l.b16 %v151
  %v184 = vunpack.c.l.b16 %v152
  %v185 = vunpack.c.l.b16 %v153
  %v186 = vunpack.c.l.b16 %v154
  %v187 = vunpack.c.l.b16 %v155
  %v188 = vunpack.c.l.b16 %v156
  %v189 = vunpack.c.l.b16 %v157
  %v190 = vunpack.c.l.b16 %v158
  %v191 = vpack.c.b16 %v176, %v175
  %v192 = vpack.c.b16 %v178, %v177
  %v193 = vpack.c.b16 %v180, %v179
  %v194 = vpack.c.b16 %v182, %v181
  %v195 = vpack.c.b16 %v184, %v183
  %v196 = vpack.c.b16 %v186, %v185
  %v197 = vpack.c.b16 %v188, %v187
  %v198 = vpack.c.b16 %v190, %v189
  %207 = vmatpush.bf16.msra.mxu0 %v198
  %208 = vmatpush.bf16.msra.mxu0 %v197
  %209 = vmatpush.bf16.msra.mxu0 %v196
  %210 = vmatpush.bf16.msra.mxu0 %v195
  %211 = vmatpush.bf16.msra.mxu0 %v194
  %212 = vmatpush.bf16.msra.mxu0 %v193
  %213 = vmatpush.bf16.msra.mxu0 %v192
  %214 = vmatpush.bf16.msra.mxu0 %v191
  %215 = vmatmul.bf16.gmra.mxu0 %v140
  %v216 = vpop.f32.mrf.mxu0
  %v217 = vadd.f32 0.0, %v216
  %v218 = vpop.f32.mrf.mxu0
  %v219 = vadd.f32 0.0, %v218
  %220 = vdwg.mxu0
  %v221 = vadd.f32 %v141, %v217
  %v222 = vadd.f32 %v142, %v219
  %223 = vst.msk [vmem:[#allocation3] sm:$0xff] %vm118, %v221
  %224 = vst.msk [vmem:[#allocation3 + $0x8] sm:$0xff] %vm118, %v222
  // Predicated region
  $region42: #{_lambda_.18} parent=0 // pred_check
    %p225 = pneg %p38
  $region43: #{_lambda_.18} parent=0 // pred_check_branch
    %227 = sbr.rel (%p225) target = $region45
  $region44: #{_lambda_.18} parent=0 // pred_region
    %v228 = vld [vmem:[%s7] sm:$0xff]
    %v229 = vld [vmem:[%s7 + $0x8] sm:$0xff]
    %v230 = vld [vmem:[#allocation2] sm:$0xff]
    %v231 = vld [vmem:[#allocation2 + $0x8] sm:$0xff]
    %v232 = vxor.u32 %v230, 2147483648
    %v233 = vxor.u32 %v231, 2147483648
    %v234 = vmul.f32 %v232, 1.442695
    %v235 = vpow.pop %v234
    %v236 = vmul.f32 %v233, 1.442695
    %v237 = vpow.pop %v236
    %v238 = vadd.f32 %v235, 1.0
    %v239 = vadd.f32 %v237, 1.0
    %v240 = vrcp.pop %v238
    %v241 = vmul.f32 %v238, %v240
    %v242 = vsub.f32 1.0, %v241
    %v243 = vmul.f32 %v240, %v242
    %v244 = vadd.f32 %v240, %v243
    %vm245 = vweird.f32 %v238
    %vm246 = vweird.f32 %v240
    %vm247 = vmor %vm245, %vm246
    %v248 = vsel %vm247, %v240, %v244
    %v249 = vand.u32 2147483647, %v238
    %vm250 = vcmp.eq.f32.partialorder %v249, 8.507059e+37
    %v251 = vand.u32 %v238, 2147483648
    %v252 = vor.u32 1.1754944e-38, %v251
    %v253 = vsel %vm250, %v252, %v248
    %v254 = vmul.f32 1.0, %v253
    %v255 = vrcp.pop %v239
    %v256 = vmul.f32 %v239, %v255
    %v257 = vsub.f32 1.0, %v256
    %v258 = vmul.f32 %v255, %v257
    %v259 = vadd.f32 %v255, %v258
    %vm260 = vweird.f32 %v239
    %vm261 = vweird.f32 %v255
    %vm262 = vmor %vm260, %vm261
    %v263 = vsel %vm262, %v255, %v259
    %v264 = vand.u32 2147483647, %v239
    %vm265 = vcmp.eq.f32.partialorder %v264, 8.507059e+37
    %v266 = vand.u32 %v239, 2147483648
    %v267 = vor.u32 1.1754944e-38, %v266
    %v268 = vsel %vm265, %v267, %v263
    %v269 = vmul.f32 1.0, %v268
    %v270 = vld [vmem:[#allocation3] sm:$0xff]
    %v271 = vld [vmem:[#allocation3 + $0x8] sm:$0xff]
    %v272 = vmul.f32 %v254, %v270
    %v273 = vmul.f32 %v269, %v271
    %v274 = vadd.f32 %v228, %v272
    %v275 = vadd.f32 %v229, %v273
    %276 = vst.msk [vmem:[%s8] sm:$0xff] %vm118, %v274
    %277 = vst.msk [vmem:[%s8 + $0x8] sm:$0xff] %vm118, %v275
  $region45: #{_lambda_.18} parent=0 // pred_fallthru
    _
  // Predicated region
  $region46: #{_lambda_.18} parent=0 // pred_check
    _
  $region47: #{_lambda_.18} parent=0 // pred_check_branch
    %279 = sbr.rel (0) target = $region49
  $region48: #{_lambda_.18} parent=0 // pred_region
    _
  $region49: #{_lambda_.18} parent=0 // pred_fallthru
    _
  // Predicated region
  $region50: #{_lambda_.18} parent=0 // pred_check
    _
  $region51: #{_lambda_.18} parent=0 // pred_check_branch
    %281 = sbr.rel (0) target = $region53
  $region52: #{_lambda_.18} parent=0 // pred_region
    _
  $region53: #{_lambda_.18} parent=0 // pred_fallthru
    _

// kernel: _lambda_.20
$region0: #{_lambda_.20}
  #allocation0 [shape = 'u32[]', space=smem, size = 0x4, offset = 0x4, fixed_abs, tag = 'smem constant byte address 0x4 - core index']
  #allocation1 [shape = 'u32[72,128]{1,0:T(1,128)}', space=vmem, size = 0x9000, scoped, tag = 'internal scratch']
  #allocation2 [shape = 'bf16[16,32]{1,0:T(8,128)(2,1)}', space=vmem, size = 0x1000, scoped, tag = 'scratch operand']
  %s0 = inlined_call_operand.vmem [shape: bf16[16,32], index: 0, kind: input, shape index: {}]
  %s1 = inlined_call_operand.vmem [shape: bf16[16,32], index: 1, kind: input, shape index: {}]
  %s2 = inlined_call_operand.vmem [shape: bf16[3,32,64], index: 2, kind: input, shape index: {}]
  %s3 = inlined_call_operand.vmem [shape: bf16[3,64,32], index: 3, kind: input, shape index: {}]
  %s4 = inlined_call_operand.vmem [shape: f32[3,1,32], index: 4, kind: input, shape index: {}]
  %s5 = inlined_call_operand.vmem [shape: bf16[3,32,32], index: 5, kind: input, shape index: {}]
  %s6 = inlined_call_operand.vmem [shape: f32[16,8], index: 6, kind: input, shape index: {}]
  %s7 = inlined_call_operand.vmem [shape: f32[16,8], index: 7, kind: input, shape index: {}]
  %s8 = inlined_call_operand.vmem [shape: bf16[3,16,32], index: 8, kind: output, shape index: {}]
  %s9 = sld [smem:[#allocation0]]
  $region77: #{_lambda_.20} parent=0
    _
  %s11 = ssub.s32 1, %s9
  %s12 = scalar_select 0, %s11, %s9
  loop: start=0, step=1, limit=5
  $region2: #{_lambda_.20} parent=0 // loop_pre_header
    _
  $region3: #{_lambda_.20} parent=0 // loop_header
    %s14 = sphi 0, %s18
    %p15 = scmp.ge.s32.totalorder %s14, 5
    %s21 = sphi 0, %s40
    %s22 = sphi 0, %s36
    %s23 = sphi 0, %s32
    %s24 = sphi 0, %s21
    %s25 = sphi 0, %s22
    %s26 = sphi 0, %s23
    %s27 = sphi 0, %s24
    %s28 = sphi 0, %s25
    %s29 = sphi 0, %s26
    %s43 = sphi 0, %s45
    %s46 = sphi 0, %s43
    %s47 = sphi 0, %s46
    %s63 = sphi 0, %s47
    %s69 = sphi 0, %s71
    %s72 = sphi 0, %s69
    %s73 = sphi 0, %s72
    %s89 = sphi 0, %s73
    %s95 = sphi 0, %s97
    %s98 = sphi 0, %s95
    %s99 = sphi 0, %s98
    %s115 = sphi 0, %s99
    %s121 = sphi 0, %s123
    %s124 = sphi 0, %s121
    %s125 = sphi 0, %s124
    %s141 = sphi 0, %s125
    %s147 = sphi 0, %s149
    %s150 = sphi 0, %s147
    %s151 = sphi 0, %s150
    %s167 = sphi 0, %s151
    %s175 = sphi 0, %s177
    %s178 = sphi 0, %s175
    %s179 = sphi 0, %s178
    %s195 = sphi 0, %s179
    %s201 = sphi 0, %s203
    %s204 = sphi 0, %s201
    %s205 = sphi 0, %s204
    %s221 = sphi 0, %s205
    %s227 = sphi 0, %s229
    %s230 = sphi 0, %s227
    %s231 = sphi 0, %s230
    %s247 = sphi 0, %s231
    %s257 = sphi 0, %s259
    %s260 = sphi 0, %s257
    %s261 = sphi 0, %s260
    %s277 = sphi 0, %s261
  $region4: #{_lambda_.20} parent=0 // loop_header_branch
    %17 = sbr.rel (%p15) target = $region8
  $region5: #{_lambda_.20} parent=0 // loop_body
    %s19 = ssub.s32 %s14, 1
    %s20 = ssub.s32 %s14, 2
    %s30 = sadd.s32 1, %s23
    %p31 = scmp.ge.s32.totalorder %s30, 1
    %s32 = scalar_select %p31, 0, %s30
    %s33 = sadd.s32 1, %s22
    %s34 = scalar_select %p31, %s33, %s22
    %p35 = scmp.ge.s32.totalorder %s34, 3
    %s36 = scalar_select %p35, 0, %s34
    %s37 = sadd.s32 1, %s21
    %s38 = scalar_select %p35, %s37, %s21
    %p39 = scmp.ge.s32.totalorder %s38, 1
    %s40 = scalar_select %p39, 0, %s38
    %s41 = ssub.s32 %s21, %s40
    %p42 = scmp.eq.s32.totalorder %s41, 0
    %s44 = sadd.s32 %s43, 1
    %s45 = scalar_select %p42, %s43, %s44
    %p48 = pneg %p42
    %p49 = scmp.eq.s32.totalorder %s14, 2
    %p50 = por %p48, %p49
    %p51 = scmp.ne.s32.totalorder %s43, %s46
    %p52 = scmp.eq.s32.totalorder %s14, 0
    %p53 = por %p51, %p52
    %p54 = scmp.ne.s32.totalorder %s43, %s46
    %p55 = scmp.eq.s32.totalorder %s19, 2
    %p56 = por %p54, %p55
    %p57 = scmp.ne.s32.totalorder %s46, %s47
    %p58 = scmp.eq.s32.totalorder %s19, 0
    %p59 = por %p57, %p58
    %p60 = scmp.ne.s32.totalorder %s46, %s47
    %p61 = scmp.eq.s32.totalorder %s20, 2
    %p62 = por %p60, %p61
    %p64 = scmp.ne.s32.totalorder %s47, %s63
    %p65 = scmp.eq.s32.totalorder %s20, 0
    %p66 = por %p64, %p65
    %s67 = ssub.s32 %s21, %s40
    %p68 = scmp.eq.s32.totalorder %s67, 0
    %s70 = sadd.s32 %s69, 1
    %s71 = scalar_select %p68, %s69, %s70
    %p74 = pneg %p68
    %p75 = scmp.eq.s32.totalorder %s14, 2
    %p76 = por %p74, %p75
    %p77 = scmp.ne.s32.totalorder %s69, %s72
    %p78 = scmp.eq.s32.totalorder %s14, 0
    %p79 = por %p77, %p78
    %p80 = scmp.ne.s32.totalorder %s69, %s72
    %p81 = scmp.eq.s32.totalorder %s19, 2
    %p82 = por %p80, %p81
    %p83 = scmp.ne.s32.totalorder %s72, %s73
    %p84 = scmp.eq.s32.totalorder %s19, 0
    %p85 = por %p83, %p84
    %p86 = scmp.ne.s32.totalorder %s72, %s73
    %p87 = scmp.eq.s32.totalorder %s20, 2
    %p88 = por %p86, %p87
    %p90 = scmp.ne.s32.totalorder %s73, %s89
    %p91 = scmp.eq.s32.totalorder %s20, 0
    %p92 = por %p90, %p91
    %s93 = ssub.s32 %s22, %s36
    %p94 = scmp.eq.s32.totalorder %s93, 0
    %s96 = sadd.s32 %s95, 1
    %s97 = scalar_select %p94, %s95, %s96
    %p100 = pneg %p94
    %p101 = scmp.eq.s32.totalorder %s14, 2
    %p102 = por %p100, %p101
    %p103 = scmp.ne.s32.totalorder %s95, %s98
    %p104 = scmp.eq.s32.totalorder %s14, 0
    %p105 = por %p103, %p104
    %p106 = scmp.ne.s32.totalorder %s95, %s98
    %p107 = scmp.eq.s32.totalorder %s19, 2
    %p108 = por %p106, %p107
    %p109 = scmp.ne.s32.totalorder %s98, %s99
    %p110 = scmp.eq.s32.totalorder %s19, 0
    %p111 = por %p109, %p110
    %p112 = scmp.ne.s32.totalorder %s98, %s99
    %p113 = scmp.eq.s32.totalorder %s20, 2
    %p114 = por %p112, %p113
    %p116 = scmp.ne.s32.totalorder %s99, %s115
    %p117 = scmp.eq.s32.totalorder %s20, 0
    %p118 = por %p116, %p117
    %s119 = ssub.s32 %s22, %s36
    %p120 = scmp.eq.s32.totalorder %s119, 0
    %s122 = sadd.s32 %s121, 1
    %s123 = scalar_select %p120, %s121, %s122
    %p126 = pneg %p120
    %p127 = scmp.eq.s32.totalorder %s14, 2
    %p128 = por %p126, %p127
    %p129 = scmp.ne.s32.totalorder %s121, %s124
    %p130 = scmp.eq.s32.totalorder %s14, 0
    %p131 = por %p129, %p130
    %p132 = scmp.ne.s32.totalorder %s121, %s124
    %p133 = scmp.eq.s32.totalorder %s19, 2
    %p134 = por %p132, %p133
    %p135 = scmp.ne.s32.totalorder %s124, %s125
    %p136 = scmp.eq.s32.totalorder %s19, 0
    %p137 = por %p135, %p136
    %p138 = scmp.ne.s32.totalorder %s124, %s125
    %p139 = scmp.eq.s32.totalorder %s20, 2
    %p140 = por %p138, %p139
    %p142 = scmp.ne.s32.totalorder %s125, %s141
    %p143 = scmp.eq.s32.totalorder %s20, 0
    %p144 = por %p142, %p143
    %s145 = ssub.s32 %s22, %s36
    %p146 = scmp.eq.s32.totalorder %s145, 0
    %s148 = sadd.s32 %s147, 1
    %s149 = scalar_select %p146, %s147, %s148
    %p152 = pneg %p146
    %p153 = scmp.eq.s32.totalorder %s14, 2
    %p154 = por %p152, %p153
    %p155 = scmp.ne.s32.totalorder %s147, %s150
    %p156 = scmp.eq.s32.totalorder %s14, 0
    %p157 = por %p155, %p156
    %p158 = scmp.ne.s32.totalorder %s147, %s150
    %p159 = scmp.eq.s32.totalorder %s19, 2
    %p160 = por %p158, %p159
    %p161 = scmp.ne.s32.totalorder %s150, %s151
    %p162 = scmp.eq.s32.totalorder %s19, 0
    %p163 = por %p161, %p162
    %p164 = scmp.ne.s32.totalorder %s150, %s151
    %p165 = scmp.eq.s32.totalorder %s20, 2
    %p166 = por %p164, %p165
    %p168 = scmp.ne.s32.totalorder %s151, %s167
    %p169 = scmp.eq.s32.totalorder %s20, 0
    %p170 = por %p168, %p169
    %s171 = ssub.s32 %s22, %s36
    %s172 = ssub.s32 %s23, %s32
    %s173 = sor.u32 %s171, %s172
    %p174 = scmp.eq.s32.totalorder %s173, 0
    %s176 = sadd.s32 %s175, 1
    %s177 = scalar_select %p174, %s175, %s176
    %p180 = pneg %p174
    %p181 = scmp.eq.s32.totalorder %s14, 2
    %p182 = por %p180, %p181
    %p183 = scmp.ne.s32.totalorder %s175, %s178
    %p184 = scmp.eq.s32.totalorder %s14, 0
    %p185 = por %p183, %p184
    %p186 = scmp.ne.s32.totalorder %s175, %s178
    %p187 = scmp.eq.s32.totalorder %s19, 2
    %p188 = por %p186, %p187
    %p189 = scmp.ne.s32.totalorder %s178, %s179
    %p190 = scmp.eq.s32.totalorder %s19, 0
    %p191 = por %p189, %p190
    %p192 = scmp.ne.s32.totalorder %s178, %s179
    %p193 = scmp.eq.s32.totalorder %s20, 2
    %p194 = por %p192, %p193
    %p196 = scmp.ne.s32.totalorder %s179, %s195
    %p197 = scmp.eq.s32.totalorder %s20, 0
    %p198 = por %p196, %p197
    %s199 = ssub.s32 %s21, %s40
    %p200 = scmp.eq.s32.totalorder %s199, 0
    %s202 = sadd.s32 %s201, 1
    %s203 = scalar_select %p200, %s201, %s202
    %p206 = pneg %p200
    %p207 = scmp.eq.s32.totalorder %s14, 2
    %p208 = por %p206, %p207
    %p209 = scmp.ne.s32.totalorder %s201, %s204
    %p210 = scmp.eq.s32.totalorder %s14, 0
    %p211 = por %p209, %p210
    %p212 = scmp.ne.s32.totalorder %s201, %s204
    %p213 = scmp.eq.s32.totalorder %s19, 2
    %p214 = por %p212, %p213
    %p215 = scmp.ne.s32.totalorder %s204, %s205
    %p216 = scmp.eq.s32.totalorder %s19, 0
    %p217 = por %p215, %p216
    %p218 = scmp.ne.s32.totalorder %s204, %s205
    %p219 = scmp.eq.s32.totalorder %s20, 2
    %p220 = por %p218, %p219
    %p222 = scmp.ne.s32.totalorder %s205, %s221
    %p223 = scmp.eq.s32.totalorder %s20, 0
    %p224 = por %p222, %p223
    %s225 = ssub.s32 %s21, %s40
    %p226 = scmp.eq.s32.totalorder %s225, 0
    %s228 = sadd.s32 %s227, 1
    %s229 = scalar_select %p226, %s227, %s228
    %p232 = pneg %p226
    %p233 = scmp.eq.s32.totalorder %s14, 2
    %p234 = por %p232, %p233
    %p235 = scmp.ne.s32.totalorder %s227, %s230
    %p236 = scmp.eq.s32.totalorder %s14, 0
    %p237 = por %p235, %p236
    %p238 = scmp.ne.s32.totalorder %s227, %s230
    %p239 = scmp.eq.s32.totalorder %s19, 2
    %p240 = por %p238, %p239
    %p241 = scmp.ne.s32.totalorder %s230, %s231
    %p242 = scmp.eq.s32.totalorder %s19, 0
    %p243 = por %p241, %p242
    %p244 = scmp.ne.s32.totalorder %s230, %s231
    %p245 = scmp.eq.s32.totalorder %s20, 2
    %p246 = por %p244, %p245
    %p248 = scmp.ne.s32.totalorder %s231, %s247
    %p249 = scmp.eq.s32.totalorder %s20, 0
    %p250 = por %p248, %p249
    %s251 = ssub.s32 %s22, %s36
    %s252 = ssub.s32 %s21, %s40
    %s253 = sor.u32 %s251, %s252
    %s254 = ssub.s32 %s23, %s32
    %s255 = sor.u32 %s253, %s254
    %p256 = scmp.eq.s32.totalorder %s255, 0
    %s258 = sadd.s32 %s257, 1
    %s259 = scalar_select %p256, %s257, %s258
    %p262 = pneg %p256
    %p263 = scmp.eq.s32.totalorder %s14, 2
    %p264 = por %p262, %p263
    %p265 = scmp.ne.s32.totalorder %s257, %s260
    %p266 = scmp.eq.s32.totalorder %s14, 0
    %p267 = por %p265, %p266
    %p268 = scmp.ne.s32.totalorder %s257, %s260
    %p269 = scmp.eq.s32.totalorder %s19, 2
    %p270 = por %p268, %p269
    %p271 = scmp.ne.s32.totalorder %s260, %s261
    %p272 = scmp.eq.s32.totalorder %s19, 0
    %p273 = por %p271, %p272
    %p274 = scmp.ne.s32.totalorder %s260, %s261
    %p275 = scmp.eq.s32.totalorder %s20, 2
    %p276 = por %p274, %p275
    %p278 = scmp.ne.s32.totalorder %s261, %s277
    %p279 = scmp.eq.s32.totalorder %s20, 0
    %p280 = por %p278, %p279
    %p281 = scmp.le.s32.totalorder 1, %s14
    %p282 = scmp.lt.s32.totalorder %s14, 4
    %p283 = pnand %p281, %p282
    %p284 = pneg %p283
    // Predicated region
    $region9: #{_lambda_.20} parent=5 // pred_check
      _
    $region10: #{_lambda_.20} parent=5 // pred_check_branch
      %286 = sbr.rel (%p283) target = $region12
    $region11: #{_lambda_.20} parent=5 // pred_region
      %s287 = ssub.s32 %s14, 1
      // Predicated region
      $region13: #{_lambda_.20} parent=11 // pred_check
        %p288 = pneg %p59
      $region14: #{_lambda_.20} parent=11 // pred_check_branch
        %290 = sbr.rel (%p288) target = $region16
      $region15: #{_lambda_.20} parent=11 // pred_region
        %s291 = smul.u32 2, %s24
        %p292 = scmp.lt.s32.totalorder %s291, 1
        %s293 = scalar_select %p292, %s291, 1
        %s294 = smul.addr %s293, 4
        %s295 = scalar_lea.vmem %s0, %s294
        %s296 = smul.u32 2, %s24
      $region16: #{_lambda_.20} parent=11 // pred_fallthru
        _
      // Predicated region
      $region17: #{_lambda_.20} parent=11 // pred_check
        %p297 = pneg %p85
      $region18: #{_lambda_.20} parent=11 // pred_check_branch
        %299 = sbr.rel (%p297) target = $region20
      $region19: #{_lambda_.20} parent=11 // pred_region
        %s300 = smul.u32 2, %s24
        %p301 = scmp.lt.s32.totalorder %s300, 1
        %s302 = scalar_select %p301, %s300, 1
        %s303 = smul.addr %s302, 4
        %s304 = scalar_lea.vmem %s1, %s303
        %s305 = smul.u32 2, %s24
      $region20: #{_lambda_.20} parent=11 // pred_fallthru
        _
      // Predicated region
      $region21: #{_lambda_.20} parent=11 // pred_check
        %p306 = pneg %p217
      $region22: #{_lambda_.20} parent=11 // pred_check_branch
        %308 = sbr.rel (%p306) target = $region24
      $region23: #{_lambda_.20} parent=11 // pred_region
        %s309 = smul.u32 2, %s24
        %p310 = scmp.lt.s32.totalorder %s309, 1
        %s311 = scalar_select %p310, %s309, 1
        %s312 = smul.addr %s311, 8
        %s313 = scalar_lea.vmem %s6, %s312
        %s314 = smul.u32 2, %s24
      $region24: #{_lambda_.20} parent=11 // pred_fallthru
        _
      // Predicated region
      $region25: #{_lambda_.20} parent=11 // pred_check
        %p315 = pneg %p243
      $region26: #{_lambda_.20} parent=11 // pred_check_branch
        %317 = sbr.rel (%p315) target = $region28
      $region27: #{_lambda_.20} parent=11 // pred_region
        %s318 = smul.u32 2, %s24
        %p319 = scmp.lt.s32.totalorder %s318, 1
        %s320 = scalar_select %p319, %s318, 1
        %s321 = smul.addr %s320, 8
        %s322 = scalar_lea.vmem %s7, %s321
        %s323 = smul.u32 2, %s24
      $region28: #{_lambda_.20} parent=11 // pred_fallthru
        _
    $region12: #{_lambda_.20} parent=5 // pred_fallthru
      _
    %p324 = scmp.lt.s32.totalorder %s14, 3
    // Predicated region
    $region29: #{_lambda_.20} parent=5 // pred_check
      %p325 = pneg %p324
    $region30: #{_lambda_.20} parent=5 // pred_check_branch
      %327 = sbr.rel (%p325) target = $region32
    $region31: #{_lambda_.20} parent=5 // pred_region
      // Predicated region
      $region33: #{_lambda_.20} parent=31 // pred_check
        %p328 = pneg %p105
      $region34: #{_lambda_.20} parent=31 // pred_check_branch
        %330 = sbr.rel (%p328) target = $region36
      $region35: #{_lambda_.20} parent=31 // pred_region
        %p331 = scmp.lt.s32.totalorder %s22, 2
        %s332 = scalar_select %p331, %s22, 2
        %s333 = smul.addr %s332, 4
        %s334 = smul.addr %s333, 4
        %s335 = scalar_lea.vmem %s2, %s334
      $region36: #{_lambda_.20} parent=31 // pred_fallthru
        _
      // Predicated region
      $region37: #{_lambda_.20} parent=31 // pred_check
        %p336 = pneg %p131
      $region38: #{_lambda_.20} parent=31 // pred_check_branch
        %338 = sbr.rel (%p336) target = $region40
      $region39: #{_lambda_.20} parent=31 // pred_region
        %p339 = scmp.lt.s32.totalorder %s22, 2
        %s340 = scalar_select %p339, %s22, 2
        %s341 = smul.addr %s340, 8
        %s342 = smul.addr %s341, 4
        %s343 = scalar_lea.vmem %s3, %s342
      $region40: #{_lambda_.20} parent=31 // pred_fallthru
        _
      // Predicated region
      $region41: #{_lambda_.20} parent=31 // pred_check
        %p344 = pneg %p157
      $region42: #{_lambda_.20} parent=31 // pred_check_branch
        %346 = sbr.rel (%p344) target = $region44
      $region43: #{_lambda_.20} parent=31 // pred_region
        %p347 = scmp.lt.s32.totalorder %s22, 2
        %s348 = scalar_select %p347, %s22, 2
        %s349 = scalar_lea.vmem %s4, %s348
      $region44: #{_lambda_.20} parent=31 // pred_fallthru
        _
      // Predicated region
      $region45: #{_lambda_.20} parent=31 // pred_check
        %p350 = pneg %p185
      $region46: #{_lambda_.20} parent=31 // pred_check_branch
        %352 = sbr.rel (%p350) target = $region48
      $region47: #{_lambda_.20} parent=31 // pred_region
        %p353 = scmp.lt.s32.totalorder %s22, 2
        %s354 = scalar_select %p353, %s22, 2
        %p355 = scmp.lt.s32.totalorder %s23, 0
        %s356 = scalar_select %p355, %s23, 0
        %s357 = smul.addr %s354, 4
        %s358 = sadd.s32 %s356, %s357
        %s359 = smul.addr %s358, 4
        %s360 = scalar_lea.vmem %s5, %s359
      $region48: #{_lambda_.20} parent=31 // pred_fallthru
        _
    $region32: #{_lambda_.20} parent=5 // pred_fallthru
      _
    %p361 = scmp.le.s32.totalorder 1, %s14
    %p362 = scmp.lt.s32.totalorder %s14, 4
    %p363 = pnand %p361, %p362
    %p364 = pneg %p363
    // Predicated region
    $region49: #{_lambda_.20} parent=5 // pred_check
      _
    $region50: #{_lambda_.20} parent=5 // pred_check_branch
      %366 = sbr.rel (%p363) target = $region52
    $region51: #{_lambda_.20} parent=5 // pred_region
      %s367 = ssub.s32 %s14, 1
      %s368 = smul.u32 2, %s24
      %p369 = scmp.lt.s32.totalorder %s368, 1
      %s370 = scalar_select %p369, %s368, 1
      %s371 = smul.addr %s370, 4
      %s372 = scalar_lea.vmem %s0, %s371
      %p373 = pneg %p59
      %p374 = pneg %p56
      %s375 = smul.u32 2, %s24
      %p376 = scmp.lt.s32.totalorder %s375, 1
      %s377 = scalar_select %p376, %s375, 1
      %s378 = smul.addr %s377, 4
      %s379 = scalar_lea.vmem %s1, %s378
      %p380 = pneg %p85
      %p381 = pneg %p82
      %p382 = scmp.lt.s32.totalorder %s25, 2
      %s383 = scalar_select %p382, %s25, 2
      %s384 = smul.addr %s383, 4
      %s385 = smul.addr %s384, 4
      %s386 = scalar_lea.vmem %s2, %s385
      %p387 = pneg %p111
      %p388 = pneg %p108
      %p389 = scmp.lt.s32.totalorder %s25, 2
      %s390 = scalar_select %p389, %s25, 2
      %s391 = smul.addr %s390, 8
      %s392 = smul.addr %s391, 4
      %s393 = scalar_lea.vmem %s3, %s392
      %p394 = pneg %p137
      %p395 = pneg %p134
      %p396 = scmp.lt.s32.totalorder %s25, 2
      %s397 = scalar_select %p396, %s25, 2
      %s398 = scalar_lea.vmem %s4, %s397
      %p399 = pneg %p163
      %p400 = pneg %p160
      %p401 = scmp.lt.s32.totalorder %s25, 2
      %s402 = scalar_select %p401, %s25, 2
      %p403 = scmp.lt.s32.totalorder %s26, 0
      %s404 = scalar_select %p403, %s26, 0
      %s405 = smul.addr %s402, 4
      %s406 = sadd.s32 %s404, %s405
      %s407 = smul.addr %s406, 4
      %s408 = scalar_lea.vmem %s5, %s407
      %p409 = pneg %p191
      %p410 = pneg %p188
      %s411 = smul.u32 2, %s24
      %p412 = scmp.lt.s32.totalorder %s411, 1
      %s413 = scalar_select %p412, %s411, 1
      %s414 = smul.addr %s413, 8
      %s415 = scalar_lea.vmem %s6, %s414
      %p416 = pneg %p217
      %p417 = pneg %p214
      %s418 = smul.u32 2, %s24
      %p419 = scmp.lt.s32.totalorder %s418, 1
      %s420 = scalar_select %p419, %s418, 1
      %s421 = smul.addr %s420, 8
      %s422 = scalar_lea.vmem %s7, %s421
      %p423 = pneg %p243
      %p424 = pneg %p240
      %p425 = pneg %p273
      %p426 = pneg %p270
      %s427 = smul.u32 2, %s24
      %p428 = scmp.lt.s32.totalorder %s25, 2
      %s429 = scalar_select %p428, %s25, 2
      %p430 = scmp.lt.s32.totalorder %s427, 1
      %s431 = scalar_select %p430, %s427, 1
      %p432 = scmp.lt.s32.totalorder %s26, 0
      %s433 = scalar_select %p432, %s26, 0
      %s434 = sadd.s32 %s433, %s431
      %s435 = smul.addr %s429, 2
      %s436 = sadd.s32 %s434, %s435
      %s437 = smul.addr %s436, 4
      %s438 = scalar_lea.vmem %s8, %s437
      %s439 = smul.u32 2, %s24
      %p440 = scmp.lt.s32.totalorder %s439, 1
      %s441 = scalar_select %p440, %s439, 1
      %s442 = smul.addr %s441, 4
      %s443 = scalar_lea.vmem %s0, %s442
      %s444 = smul.u32 2, %s24
      %s445 = smul.u32 2, %s24
      %p446 = scmp.lt.s32.totalorder %s445, 1
      %s447 = scalar_select %p446, %s445, 1
      %s448 = smul.addr %s447, 4
      %s449 = scalar_lea.vmem %s1, %s448
      %s450 = smul.u32 2, %s24
      %p451 = scmp.lt.s32.totalorder %s25, 2
      %s452 = scalar_select %p451, %s25, 2
      %s453 = smul.addr %s452, 4
      %s454 = smul.addr %s453, 4
      %s455 = scalar_lea.vmem %s2, %s454
      %p456 = scmp.lt.s32.totalorder %s25, 2
      %s457 = scalar_select %p456, %s25, 2
      %s458 = smul.addr %s457, 8
      %s459 = smul.addr %s458, 4
      %s460 = scalar_lea.vmem %s3, %s459
      %p461 = scmp.lt.s32.totalorder %s25, 2
      %s462 = scalar_select %p461, %s25, 2
      %s463 = scalar_lea.vmem %s4, %s462
      %p464 = scmp.lt.s32.totalorder %s25, 2
      %s465 = scalar_select %p464, %s25, 2
      %p466 = scmp.lt.s32.totalorder %s26, 0
      %s467 = scalar_select %p466, %s26, 0
      %s468 = smul.addr %s465, 4
      %s469 = sadd.s32 %s467, %s468
      %s470 = smul.addr %s469, 4
      %s471 = scalar_lea.vmem %s5, %s470
      %s472 = smul.u32 2, %s24
      %p473 = scmp.lt.s32.totalorder %s472, 1
      %s474 = scalar_select %p473, %s472, 1
      %s475 = smul.addr %s474, 8
      %s476 = scalar_lea.vmem %s6, %s475
      %s477 = smul.u32 2, %s24
      %s478 = smul.u32 2, %s24
      %p479 = scmp.lt.s32.totalorder %s478, 1
      %s480 = scalar_select %p479, %s478, 1
      %s481 = smul.addr %s480, 8
      %s482 = scalar_lea.vmem %s7, %s481
      %s483 = smul.u32 2, %s24
      %s484 = smul.u32 2, %s24
      %p485 = scmp.lt.s32.totalorder %s25, 2
      %s486 = scalar_select %p485, %s25, 2
      %p487 = scmp.lt.s32.totalorder %s484, 1
      %s488 = scalar_select %p487, %s484, 1
      %p489 = scmp.lt.s32.totalorder %s26, 0
      %s490 = scalar_select %p489, %s26, 0
      %s491 = sadd.s32 %s490, %s488
      %s492 = smul.addr %s486, 2
      %s493 = sadd.s32 %s491, %s492
      %s494 = smul.addr %s493, 4
      %s495 = scalar_lea.vmem %s8, %s494
      %s496 = smul.u32 2, %s24
      %p498 = scmp.eq.s32.totalorder %s26, 0
      // Predicated region
      $region53: #{_lambda_.20} parent=51 // pred_check
        %p499 = pneg %p498
      $region54: #{_lambda_.20} parent=51 // pred_check_branch
        %501 = sbr.rel (%p499) target = $region56
      $region55: #{_lambda_.20} parent=51 // pred_region
        %v502 = vld [vmem:[%s443] sm:$0xf]
        %v503 = vld [vmem:[%s443 + $0x4] sm:$0xf]
        %v504 = vunpack.c.l.bf16 %v502
        %v505 = vunpack.c.l.bf16 %v503
        %v506 = vld [vmem:[%s449] sm:$0xf]
        %v507 = vld [vmem:[%s449 + $0x4] sm:$0xf]
        %v508 = vunpack.c.l.bf16 %v506
        %v509 = vunpack.c.l.bf16 %v507
        %v510 = vld [vmem:[%s455] sm:$0xf]
        %v511 = vld [vmem:[%s455 + $0x4] sm:$0xf]
        %v512 = vld [vmem:[%s455 + $0x8] sm:$0xf]
        %v513 = vld [vmem:[%s455 + $0xc] sm:$0xf]
        %v516 = vunpack.c.l.b16 %v502
        %v517 = vunpack.c.l.b16 %v503
        %v518 = vpack.c.b16 %v517, %v516
        %v523 = vunpack.c.l.b16 %v510
        %v524 = vunpack.c.l.b16 %v511
        %v525 = vunpack.c.l.b16 %v512
        %v526 = vunpack.c.l.b16 %v513
        %v527 = vpack.c.b16 %v524, %v523
        %v528 = vpack.c.b16 %v526, %v525
        %vm531 = vcmask 261120
        %v533 = vsel %vm531, %v518, 0
        %535 = vmatpush.bf16.msra.mxu0 0
        %536 = vmatpush.bf16.msra.mxu0 0
        %537 = vmatpush.bf16.msra.mxu0 0
        %538 = vmatpush.bf16.msra.mxu0 0
        %539 = vmatpush.bf16.msra.mxu0 0
        %540 = vmatpush.bf16.msra.mxu0 0
        %541 = vmatpush.bf16.msra.mxu0 %v528
        %542 = vmatpush.bf16.msra.mxu0 %v527
        %543 = vmatmul.bf16.gmra.mxu0 %v533
        %v544 = vpop.f32.mrf.mxu0
        %v545 = vadd.f32 0.0, %v544
        %v546 = vpop.f32.mrf.mxu0
        %v547 = vadd.f32 0.0, %v546
        %548 = vdwg.mxu0
        %v549 = vtanh.pop %v545
        %v550 = vtanh.pop %v547
        %v551 = vpack.c.bf16 %v550, %v549
        %v552 = vld [vmem:[%s460] sm:$0xf]
        %v553 = vld [vmem:[%s460 + $0x4] sm:$0xf]
        %v554 = vld [vmem:[%s460 + $0x8] sm:$0xf]
        %v555 = vld [vmem:[%s460 + $0xc] sm:$0xf]
        %v556 = vld [vmem:[%s460 + $0x10] sm:$0xf]
        %v557 = vld [vmem:[%s460 + $0x14] sm:$0xf]
        %v558 = vld [vmem:[%s460 + $0x18] sm:$0xf]
        %v559 = vld [vmem:[%s460 + $0x1c] sm:$0xf]
        %v560 = vld [vmem:[%s463] sm:$0x1]
        %v562 = vperm.slane %v560, 0
        %v572 = vunpack.c.l.b16 %v552
        %v573 = vunpack.c.l.b16 %v553
        %v574 = vunpack.c.l.b16 %v554
        %v575 = vunpack.c.l.b16 %v555
        %v576 = vunpack.c.l.b16 %v556
        %v577 = vunpack.c.l.b16 %v557
        %v578 = vunpack.c.l.b16 %v558
        %v579 = vunpack.c.l.b16 %v559
        %v580 = vpack.c.b16 %v573, %v572
        %v581 = vpack.c.b16 %v575, %v574
        %v582 = vpack.c.b16 %v577, %v576
        %v583 = vpack.c.b16 %v579, %v578
        %vm588 = vcmask 523264
        %v590 = vsel %vm588, %v551, 0
        %592 = vmatpush.bf16.msra.mxu0 0
        %593 = vmatpush.bf16.msra.mxu0 0
        %594 = vmatpush.bf16.msra.mxu0 0
        %595 = vmatpush.bf16.msra.mxu0 0
        %596 = vmatpush.bf16.msra.mxu0 %v583
        %597 = vmatpush.bf16.msra.mxu0 %v582
        %598 = vmatpush.bf16.msra.mxu0 %v581
        %599 = vmatpush.bf16.msra.mxu0 %v580
        %600 = vmatmul.bf16.gmra.mxu0 %v590
        %v601 = vpop.f32.mrf.mxu0
        %v602 = vadd.f32 %v562, %v601
        %v603 = vpop.f32.mrf.mxu0
        %v604 = vadd.f32 %v562, %v603
        %605 = vdwg.mxu0
        %v606 = vmul.f32 %v508, %v602
        %v607 = vmul.f32 %v509, %v604
        %v608 = vadd.f32 %v504, %v606
        %v609 = vadd.f32 %v505, %v607
        %v610 = vpack.c.bf16 %v608, %v608
        %v611 = vpack.c.bf16 %v609, %v609
        %vm612 = vcmask 257024
        %613 = vst.msk [vmem:[#allocation2] sm:$0xf] %vm612, %v610
        %614 = vst.msk [vmem:[#allocation2 + $0x4] sm:$0xf] %vm612, %v611
      $region56: #{_lambda_.20} parent=51 // pred_fallthru
        _
      %v615 = vld [vmem:[#allocation2] sm:$0xf]
      %v616 = vld [vmem:[#allocation2 + $0x4] sm:$0xf]
      %v617 = vld [vmem:[%s471] sm:$0xf]
      %v618 = vld [vmem:[%s471 + $0x4] sm:$0xf]
      %v619 = vld [vmem:[%s471 + $0x8] sm:$0xf]
      %v620 = vld [vmem:[%s471 + $0xc] sm:$0xf]
      %v623 = vunpack.c.l.b16 %v615
      %v624 = vunpack.c.l.b16 %v616
      %v625 = vpack.c.b16 %v624, %v623
      %v630 = vunpack.c.l.b16 %v617
      %v631 = vunpack.c.l.b16 %v618
      %v632 = vunpack.c.l.b16 %v619
      %v633 = vunpack.c.l.b16 %v620
      %v634 = vpack.c.b16 %v631, %v630
      %v635 = vpack.c.b16 %v633, %v632
      %vm638 = vcmask 261120
      %v640 = vsel %vm638, %v625, 0
      %642 = vmatpush.bf16.msra.mxu0 0
      %643 = vmatpush.bf16.msra.mxu0 0
      %644 = vmatpush.bf16.msra.mxu0 0
      %645 = vmatpush.bf16.msra.mxu0 0
      %646 = vmatpush.bf16.msra.mxu0 0
      %647 = vmatpush.bf16.msra.mxu0 0
      %648 = vmatpush.bf16.msra.mxu0 %v635
      %649 = vmatpush.bf16.msra.mxu0 %v634
      %650 = vmatmul.bf16.gmra.mxu0 %v640
      %v651 = vpop.f32.mrf.mxu0
      %v652 = vadd.f32 0.0, %v651
      %v653 = vpop.f32.mrf.mxu0
      %v654 = vadd.f32 0.0, %v653
      %655 = vdwg.mxu0
      %p656 = scmp.lt.s32.totalorder %s25, 2
      // Predicated region
      $region57: #{_lambda_.20} parent=51 // pred_check
        %p657 = pneg %p656
      $region58: #{_lambda_.20} parent=51 // pred_check_branch
        %659 = sbr.rel (%p657) target = $region60
      $region59: #{_lambda_.20} parent=51 // pred_region
        %v660 = vld [vmem:[%s476] sm:$0xff]
        %v661 = vld [vmem:[%s476 + $0x8] sm:$0xff]
        %v662 = vld [vmem:[%s482] sm:$0xff]
        %v663 = vld [vmem:[%s482 + $0x8] sm:$0xff]
        %666 = vrot.lane.b32.xlu0 %v660, 8
        %v667 = vpop.permute.xlu0 %666
        %668 = vrot.lane.b32.xlu0 %v661, 8
        %v669 = vpop.permute.xlu0 %668
        %672 = vrot.lane.b32.xlu0 %v660, 16
        %v673 = vpop.permute.xlu0 %672
        %674 = vrot.lane.b32.xlu0 %v661, 16
        %v675 = vpop.permute.xlu0 %674
        %678 = vrot.lane.b32.xlu0 %v660, 24
        %v679 = vpop.permute.xlu0 %678
        %680 = vrot.lane.b32.xlu0 %v661, 24
        %v681 = vpop.permute.xlu0 %680
        %vm684 = vcmask 64512
        %v685 = vsel %vm684, %v660, %v667
        %v686 = vsel %vm684, %v661, %v669
        %vm687 = vcmask 130048
        %v688 = vsel %vm687, %v685, %v673
        %v689 = vsel %vm687, %v686, %v675
        %vm690 = vcmask 195584
        %v691 = vsel %vm690, %v688, %v679
        %v692 = vsel %vm690, %v689, %v681
        %695 = vrot.lane.b32.xlu0 %v662, 8
        %v696 = vpop.permute.xlu0 %695
        %697 = vrot.lane.b32.xlu0 %v663, 8
        %v698 = vpop.permute.xlu0 %697
        %701 = vrot.lane.b32.xlu0 %v662, 16
        %v702 = vpop.permute.xlu0 %701
        %703 = vrot.lane.b32.xlu0 %v663, 16
        %v704 = vpop.permute.xlu0 %703
        %707 = vrot.lane.b32.xlu0 %v662, 24
        %v708 = vpop.permute.xlu0 %707
        %709 = vrot.lane.b32.xlu0 %v663, 24
        %v710 = vpop.permute.xlu0 %709
        %v713 = vsel %vm684, %v662, %v696
        %v714 = vsel %vm684, %v663, %v698
        %v715 = vsel %vm687, %v713, %v702
        %v716 = vsel %vm687, %v714, %v704
        %v717 = vsel %vm690, %v715, %v708
        %v718 = vsel %vm690, %v716, %v710
        %721 = vrot.lane.b32.xlu0 %v652, 124
        %v722 = vpop.permute.xlu0 %721
        %723 = vrot.lane.b32.xlu0 %v654, 124
        %v724 = vpop.permute.xlu0 %723
        %727 = vrot.lane.b32.xlu0 %v652, 4
        %v728 = vpop.permute.xlu0 %727
        %729 = vrot.lane.b32.xlu0 %v654, 4
        %v730 = vpop.permute.xlu0 %729
        %vm733 = vcmask 31744
        %v734 = vsel %vm733, %v722, %v728
        %v735 = vsel %vm733, %v724, %v730
        %v736 = vsel %vm684, %v734, %v722
        %v737 = vsel %vm684, %v735, %v724
        %vm738 = vcmask 97280
        %v739 = vsel %vm738, %v736, %v728
        %v740 = vsel %vm738, %v737, %v730
        %v741 = vsel %vm687, %v739, %v722
        %v742 = vsel %vm687, %v740, %v724
        %vm743 = vcmask 162816
        %v744 = vsel %vm743, %v741, %v728
        %v745 = vsel %vm743, %v742, %v730
        %v746 = vsel %vm690, %v744, %v722
        %v747 = vsel %vm690, %v745, %v724
        %vm748 = vcmask 228352
        %v749 = vsel %vm748, %v746, %v728
        %v750 = vsel %vm748, %v747, %v730
        %v751 = vmul.f32 %v652, %v691
        %v752 = vmul.f32 %v654, %v692
        %v753 = vmul.f32 %v749, %v717
        %v754 = vmul.f32 %v750, %v718
        %v755 = vadd.f32 %v751, %v753
        %v756 = vadd.f32 %v752, %v754
        %p757 = scmp.eq.s32.totalorder %s25, 0
        %s758 = scalar_select %p757, 0.35355338, 1.0
        %v759 = vstv %s758
        %v760 = vmul.f32 %v755, %v759
        %v761 = vmul.f32 %v756, %v759
        %v762 = vpack.c.bf16 %v760, %v760
        %v763 = vpack.c.bf16 %v761, %v761
        %vm764 = vcmask 257024
        %765 = vst.msk [vmem:[%s495] sm:$0xf] %vm764, %v762
        %766 = vst.msk [vmem:[%s495 + $0x4] sm:$0xf] %vm764, %v763
      $region60: #{_lambda_.20} parent=51 // pred_fallthru
        _
      %p767 = scmp.eq.s32.totalorder %s25, 2
      // Predicated region
      $region61: #{_lambda_.20} parent=51 // pred_check
        %p768 = pneg %p767
      $region62: #{_lambda_.20} parent=51 // pred_check_branch
        %770 = sbr.rel (%p768) target = $region64
      $region63: #{_lambda_.20} parent=51 // pred_region
        %v771 = vpack.c.bf16 %v652, %v652
        %v772 = vpack.c.bf16 %v654, %v654
        %vm773 = vcmask 257024
        %774 = vst.msk [vmem:[%s495] sm:$0xf] %vm773, %v771
        %775 = vst.msk [vmem:[%s495 + $0x4] sm:$0xf] %vm773, %v772
      $region64: #{_lambda_.20} parent=51 // pred_fallthru
        _
      %s776 = smul.u32 2, %s24
      %p777 = scmp.lt.s32.totalorder %s25, 2
      %s778 = scalar_select %p777, %s25, 2
      %p779 = scmp.lt.s32.totalorder %s776, 1
      %s780 = scalar_select %p779, %s776, 1
      %p781 = scmp.lt.s32.totalorder %s26, 0
      %s782 = scalar_select %p781, %s26, 0
      %s783 = sadd.s32 %s782, %s780
      %s784 = smul.addr %s778, 2
      %s785 = sadd.s32 %s783, %s784
      %s786 = smul.addr %s785, 4
      %s787 = scalar_lea.vmem %s8, %s786
      // Predicated region
      $region65: #{_lambda_.20} parent=51 // pred_check
        %p788 = pneg %p270
      $region66: #{_lambda_.20} parent=51 // pred_check_branch
        %790 = sbr.rel (%p788) target = $region68
      $region67: #{_lambda_.20} parent=51 // pred_region
        %s791 = smul.u32 2, %s24
      $region68: #{_lambda_.20} parent=51 // pred_fallthru
        _
    $region52: #{_lambda_.20} parent=5 // pred_fallthru
      _
    %p792 = scmp.le.s32.totalorder 2, %s14
    // Predicated region
    $region69: #{_lambda_.20} parent=5 // pred_check
      %p793 = pneg %p792
    $region70: #{_lambda_.20} parent=5 // pred_check_branch
      %795 = sbr.rel (%p793) target = $region72
    $region71: #{_lambda_.20} parent=5 // pred_region
      %s796 = ssub.s32 %s14, 2
      // Predicated region
      $region73: #{_lambda_.20} parent=71 // pred_check
        %p797 = pneg %p276
      $region74: #{_lambda_.20} parent=71 // pred_check_branch
        %799 = sbr.rel (%p797) target = $region76
      $region75: #{_lambda_.20} parent=71 // pred_region
        %s800 = smul.u32 2, %s27
        %p801 = scmp.lt.s32.totalorder %s28, 2
        %s802 = scalar_select %p801, %s28, 2
        %p803 = scmp.lt.s32.totalorder %s800, 1
        %s804 = scalar_select %p803, %s800, 1
        %p805 = scmp.lt.s32.totalorder %s29, 0
        %s806 = scalar_select %p805, %s29, 0
        %s807 = sadd.s32 %s806, %s804
        %s808 = smul.addr %s802, 2
        %s809 = sadd.s32 %s807, %s808
        %s810 = smul.addr %s809, 4
        %s811 = scalar_lea.vmem %s8, %s810
      $region76: #{_lambda_.20} parent=71 // pred_fallthru
        _
    $region72: #{_lambda_.20} parent=5 // pred_fallthru
      _
  $region6: #{_lambda_.20} parent=0 // loop_footer
    %s18 = sadd.s32 1, %s14
  $region7: #{_lambda_.20} parent=0 // loop_footer_branch
    %13 = sbr.rel target = $region3
  $region8: #{_lambda_.20} parent=0 // loop_exit
    _

</llo_original>
